<compile_context>
chip_gen: v7x
topology: tpu7x:2x2x1
jax: 0.10.0
libtpu: 0.0.40
codegen_flags: <defaults>
</compile_context>

<pallas_src>
import jax
import jax.numpy as jnp
from jax.experimental import pallas as pl
from jax.experimental.pallas import tpu as pltpu

NH = 32  # number of hidden units (params['Nh'])


def wavefn_kernel(b_ref, c_ref, w_ref, x_ref, o_ref):
    # b_ref: SMEM (1,), c_ref/w_ref: SMEM (NH,), x_ref/o_ref: VMEM (bm, n) tiles.
    half = NH // 2

    # Hoist every scalar SMEM read off the vector critical path.
    b = b_ref[0]
    cs = [c_ref[i] for i in range(half)]
    ws = [w_ref[i] for i in range(half)]

    x = x_ref[...]

    # Single monotone running product seeded with the quadratic factor:
    #   acc = exp(x*(b - 0.5x)) * prod_i (1 + exp(c_i + x*w_i))
    # No logs, no half-product split -> 17 transcendentals / element and only
    # one live product chain (lower vreg pressure in the unrolled body).
    acc = jnp.exp(x * (b - 0.5 * x))
    for i in range(half):
        acc = acc * (1.0 + jnp.exp(cs[i] + x * ws[i]))
    o_ref[...] = acc


def _num_tensorcores_per_chip():
    """Best-effort TensorCore-per-chip count (v7x/v4/v5p -> 2, v5e/v6e -> 1)."""
    try:
        dev = jax.devices()[0]
        nc = getattr(dev, "num_cores", None)
        if isinstance(nc, int) and nc >= 1:
            return nc
        kind = str(getattr(dev, "device_kind", "")).lower()
        if any(tag in kind for tag in ("v7", "v4", "v5p")):
            return 2
        return 1
    except Exception:  # pragma: no cover - conservative fallback
        return 1


_BM_CANDIDATES = (8192, 4096, 2048, 1024, 512, 256, 128, 64, 32, 16, 8)


def _choose_block_m(M, N, n_cores, max_tile_bytes=4 << 20):
    """Largest power-of-two row tile dividing M, capped at ~4 MiB per tile.

    On multi-TensorCore chips keep the grid a multiple of the core count so
    `parallel` sharding gives every core equal work; on single-TC chips prefer
    one grid step (no parallelism to buy, only ~0.35 us/step overhead to pay).
    """
    max_rows = max(8, max_tile_bytes // (N * 4))
    cands = [bm for bm in _BM_CANDIDATES if bm <= max_rows]
    for bm in cands:
        if M % bm == 0 and (M // bm) % n_cores == 0:
            return bm
    for bm in cands:
        if M % bm == 0:
            return bm
    return M  # full-extent tile (always legal as a block shape)


def wavefunction_forward(b, c, w, x, *, block_m=None):
    M, N = x.shape
    orig_shape = x.shape

    # Lane-dense repack: fold 8 rows into one 1024-lane row when possible
    # (pure elementwise op + scalar params -> semantics unchanged).
    if N == 128 and M % 8 == 0 and M >= 8:
        x2 = x.reshape(M // 8, N * 8)
    else:
        x2 = x
    Me, Ne = x2.shape

    n_cores = _num_tensorcores_per_chip()
    bm = block_m if block_m is not None else _choose_block_m(Me, Ne, n_cores)
    assert Me % bm == 0, (Me, bm)
    grid = (Me // bm,)

    # Advisory cost hint for XLA scheduling around the custom call.
    elems = M * N
    cost = pl.CostEstimate(
        flops=70 * elems,
        transcendentals=17 * elems,
        bytes_accessed=8 * elems,
    )

    out = pl.pallas_call(
        wavefn_kernel,
        out_shape=jax.ShapeDtypeStruct((Me, Ne), x.dtype),
        grid_spec=pl.GridSpec(
            grid=grid,
            in_specs=[
                pl.BlockSpec(memory_space=pltpu.MemorySpace.SMEM),  # b
                pl.BlockSpec(memory_space=pltpu.MemorySpace.SMEM),  # c
                pl.BlockSpec(memory_space=pltpu.MemorySpace.SMEM),  # w
                pl.BlockSpec((bm, Ne), lambda i: (i, 0)),           # x tile
            ],
            out_specs=pl.BlockSpec((bm, Ne), lambda i: (i, 0)),
        ),
        compiler_params=pltpu.CompilerParams(
            dimension_semantics=("parallel",),
        ),
        cost_estimate=cost,
    )(b, c, w, x2)

    return out.reshape(orig_shape)


if __name__ == "__main__":
    key = jax.random.PRNGKey(0)
    kb, kc, kw, kx = jax.random.split(key, 4)

    # Deterministic synthetic parameters (module __init__ shapes: b scalar,
    # c[Nh], w[Nh]); small magnitudes keep exp() well-conditioned in f32.
    b = 0.1 * jax.random.normal(kb, (1,), dtype=jnp.float32)
    c = 0.1 * jax.random.normal(kc, (NH,), dtype=jnp.float32)
    w = 0.1 * jax.random.normal(kw, (NH,), dtype=jnp.float32)

    # x: batch of sampled configurations, shape (256, 128) float32.
    x = jax.random.normal(kx, (256, 128), dtype=jnp.float32)

    out = jax.block_until_ready(wavefunction_forward(b, c, w, x))

    # Pure-JAX reference in the original sum-of-log1p(exp) form.
    add = jnp.zeros_like(x)
    for i in range(NH // 2):
        add = add + jnp.log1p(jnp.exp(c[i] + x * w[i]))
    ref = jnp.exp(-0.5 * x ** 2 + x * b[0] + add)

    assert out.shape == x.shape and out.dtype == x.dtype
    assert jnp.allclose(out, ref, rtol=1e-4, atol=1e-5), "mismatch vs reference"
    print("KERNEL_OK")
</pallas_src>

<mosaic_0001>
module attributes {stable_mosaic.version = 11 : i64} {
  func.func @wavefn_kernel(%arg0: i32, %arg1: memref<1xf32, #tpu.memory_space<smem>>, %arg2: memref<32xf32, #tpu.memory_space<smem>>, %arg3: memref<32xf32, #tpu.memory_space<smem>>, %arg4: memref<32x1024xf32, #tpu.memory_space<vmem>>, %arg5: memref<32x1024xf32, #tpu.memory_space<vmem>>) attributes {dimension_semantics = [#tpu.dimension_semantics<parallel>], iteration_bounds = array<i64: 1>, scalar_prefetch = 0 : i64, scratch_operands = 0 : i64, tpu.core_type = #tpu.core_type<tc>, window_params = [{transform_indices = @transform_0, window_bounds = array<i64: 1>}, {transform_indices = @transform_1, window_bounds = array<i64: 32>}, {transform_indices = @transform_2, window_bounds = array<i64: 32>}, {transform_indices = @transform_3, window_bounds = array<i64: 32, 1024>}, {transform_indices = @transform_4, window_bounds = array<i64: 32, 1024>}]} {
    %c0 = arith.constant 0 : index
    %0 = memref.load %arg1[%c0] : memref<1xf32, #tpu.memory_space<smem>>
    %c0_0 = arith.constant 0 : index
    %1 = memref.load %arg2[%c0_0] : memref<32xf32, #tpu.memory_space<smem>>
    %c1 = arith.constant 1 : index
    %2 = memref.load %arg2[%c1] : memref<32xf32, #tpu.memory_space<smem>>
    %c2 = arith.constant 2 : index
    %3 = memref.load %arg2[%c2] : memref<32xf32, #tpu.memory_space<smem>>
    %c3 = arith.constant 3 : index
    %4 = memref.load %arg2[%c3] : memref<32xf32, #tpu.memory_space<smem>>
    %c4 = arith.constant 4 : index
    %5 = memref.load %arg2[%c4] : memref<32xf32, #tpu.memory_space<smem>>
    %c5 = arith.constant 5 : index
    %6 = memref.load %arg2[%c5] : memref<32xf32, #tpu.memory_space<smem>>
    %c6 = arith.constant 6 : index
    %7 = memref.load %arg2[%c6] : memref<32xf32, #tpu.memory_space<smem>>
    %c7 = arith.constant 7 : index
    %8 = memref.load %arg2[%c7] : memref<32xf32, #tpu.memory_space<smem>>
    %c8 = arith.constant 8 : index
    %9 = memref.load %arg2[%c8] : memref<32xf32, #tpu.memory_space<smem>>
    %c9 = arith.constant 9 : index
    %10 = memref.load %arg2[%c9] : memref<32xf32, #tpu.memory_space<smem>>
    %c10 = arith.constant 10 : index
    %11 = memref.load %arg2[%c10] : memref<32xf32, #tpu.memory_space<smem>>
    %c11 = arith.constant 11 : index
    %12 = memref.load %arg2[%c11] : memref<32xf32, #tpu.memory_space<smem>>
    %c12 = arith.constant 12 : index
    %13 = memref.load %arg2[%c12] : memref<32xf32, #tpu.memory_space<smem>>
    %c13 = arith.constant 13 : index
    %14 = memref.load %arg2[%c13] : memref<32xf32, #tpu.memory_space<smem>>
    %c14 = arith.constant 14 : index
    %15 = memref.load %arg2[%c14] : memref<32xf32, #tpu.memory_space<smem>>
    %c15 = arith.constant 15 : index
    %16 = memref.load %arg2[%c15] : memref<32xf32, #tpu.memory_space<smem>>
    %c0_1 = arith.constant 0 : index
    %17 = memref.load %arg3[%c0_1] : memref<32xf32, #tpu.memory_space<smem>>
    %c1_2 = arith.constant 1 : index
    %18 = memref.load %arg3[%c1_2] : memref<32xf32, #tpu.memory_space<smem>>
    %c2_3 = arith.constant 2 : index
    %19 = memref.load %arg3[%c2_3] : memref<32xf32, #tpu.memory_space<smem>>
    %c3_4 = arith.constant 3 : index
    %20 = memref.load %arg3[%c3_4] : memref<32xf32, #tpu.memory_space<smem>>
    %c4_5 = arith.constant 4 : index
    %21 = memref.load %arg3[%c4_5] : memref<32xf32, #tpu.memory_space<smem>>
    %c5_6 = arith.constant 5 : index
    %22 = memref.load %arg3[%c5_6] : memref<32xf32, #tpu.memory_space<smem>>
    %c6_7 = arith.constant 6 : index
    %23 = memref.load %arg3[%c6_7] : memref<32xf32, #tpu.memory_space<smem>>
    %c7_8 = arith.constant 7 : index
    %24 = memref.load %arg3[%c7_8] : memref<32xf32, #tpu.memory_space<smem>>
    %c8_9 = arith.constant 8 : index
    %25 = memref.load %arg3[%c8_9] : memref<32xf32, #tpu.memory_space<smem>>
    %c9_10 = arith.constant 9 : index
    %26 = memref.load %arg3[%c9_10] : memref<32xf32, #tpu.memory_space<smem>>
    %c10_11 = arith.constant 10 : index
    %27 = memref.load %arg3[%c10_11] : memref<32xf32, #tpu.memory_space<smem>>
    %c11_12 = arith.constant 11 : index
    %28 = memref.load %arg3[%c11_12] : memref<32xf32, #tpu.memory_space<smem>>
    %c12_13 = arith.constant 12 : index
    %29 = memref.load %arg3[%c12_13] : memref<32xf32, #tpu.memory_space<smem>>
    %c13_14 = arith.constant 13 : index
    %30 = memref.load %arg3[%c13_14] : memref<32xf32, #tpu.memory_space<smem>>
    %c14_15 = arith.constant 14 : index
    %31 = memref.load %arg3[%c14_15] : memref<32xf32, #tpu.memory_space<smem>>
    %c15_16 = arith.constant 15 : index
    %32 = memref.load %arg3[%c15_16] : memref<32xf32, #tpu.memory_space<smem>>
    %c0_17 = arith.constant 0 : index
    %c0_18 = arith.constant 0 : index
    %33 = vector.load %arg4[%c0_17, %c0_18] : memref<32x1024xf32, #tpu.memory_space<vmem>>, vector<32x1024xf32>
    %cst = arith.constant 5.000000e-01 : f32
    %34 = vector.broadcast %cst : f32 to vector<32x1024xf32>
    %35 = arith.mulf %34, %33 : vector<32x1024xf32>
    %36 = vector.broadcast %0 : f32 to vector<32x1024xf32>
    %37 = arith.subf %36, %35 : vector<32x1024xf32>
    %38 = arith.mulf %33, %37 : vector<32x1024xf32>
    %39 = math.exp %38 : vector<32x1024xf32>
    %40 = vector.broadcast %17 : f32 to vector<32x1024xf32>
    %41 = arith.mulf %33, %40 : vector<32x1024xf32>
    %42 = vector.broadcast %1 : f32 to vector<32x1024xf32>
    %43 = arith.addf %42, %41 : vector<32x1024xf32>
    %44 = math.exp %43 : vector<32x1024xf32>
    %cst_19 = arith.constant 1.000000e+00 : f32
    %45 = vector.broadcast %cst_19 : f32 to vector<32x1024xf32>
    %46 = arith.addf %45, %44 : vector<32x1024xf32>
    %47 = arith.mulf %39, %46 : vector<32x1024xf32>
    %48 = vector.broadcast %18 : f32 to vector<32x1024xf32>
    %49 = arith.mulf %33, %48 : vector<32x1024xf32>
    %50 = vector.broadcast %2 : f32 to vector<32x1024xf32>
    %51 = arith.addf %50, %49 : vector<32x1024xf32>
    %52 = math.exp %51 : vector<32x1024xf32>
    %cst_20 = arith.constant 1.000000e+00 : f32
    %53 = vector.broadcast %cst_20 : f32 to vector<32x1024xf32>
    %54 = arith.addf %53, %52 : vector<32x1024xf32>
    %55 = arith.mulf %47, %54 : vector<32x1024xf32>
    %56 = vector.broadcast %19 : f32 to vector<32x1024xf32>
    %57 = arith.mulf %33, %56 : vector<32x1024xf32>
    %58 = vector.broadcast %3 : f32 to vector<32x1024xf32>
    %59 = arith.addf %58, %57 : vector<32x1024xf32>
    %60 = math.exp %59 : vector<32x1024xf32>
    %cst_21 = arith.constant 1.000000e+00 : f32
    %61 = vector.broadcast %cst_21 : f32 to vector<32x1024xf32>
    %62 = arith.addf %61, %60 : vector<32x1024xf32>
    %63 = arith.mulf %55, %62 : vector<32x1024xf32>
    %64 = vector.broadcast %20 : f32 to vector<32x1024xf32>
    %65 = arith.mulf %33, %64 : vector<32x1024xf32>
    %66 = vector.broadcast %4 : f32 to vector<32x1024xf32>
    %67 = arith.addf %66, %65 : vector<32x1024xf32>
    %68 = math.exp %67 : vector<32x1024xf32>
    %cst_22 = arith.constant 1.000000e+00 : f32
    %69 = vector.broadcast %cst_22 : f32 to vector<32x1024xf32>
    %70 = arith.addf %69, %68 : vector<32x1024xf32>
    %71 = arith.mulf %63, %70 : vector<32x1024xf32>
    %72 = vector.broadcast %21 : f32 to vector<32x1024xf32>
    %73 = arith.mulf %33, %72 : vector<32x1024xf32>
    %74 = vector.broadcast %5 : f32 to vector<32x1024xf32>
    %75 = arith.addf %74, %73 : vector<32x1024xf32>
    %76 = math.exp %75 : vector<32x1024xf32>
    %cst_23 = arith.constant 1.000000e+00 : f32
    %77 = vector.broadcast %cst_23 : f32 to vector<32x1024xf32>
    %78 = arith.addf %77, %76 : vector<32x1024xf32>
    %79 = arith.mulf %71, %78 : vector<32x1024xf32>
    %80 = vector.broadcast %22 : f32 to vector<32x1024xf32>
    %81 = arith.mulf %33, %80 : vector<32x1024xf32>
    %82 = vector.broadcast %6 : f32 to vector<32x1024xf32>
    %83 = arith.addf %82, %81 : vector<32x1024xf32>
    %84 = math.exp %83 : vector<32x1024xf32>
    %cst_24 = arith.constant 1.000000e+00 : f32
    %85 = vector.broadcast %cst_24 : f32 to vector<32x1024xf32>
    %86 = arith.addf %85, %84 : vector<32x1024xf32>
    %87 = arith.mulf %79, %86 : vector<32x1024xf32>
    %88 = vector.broadcast %23 : f32 to vector<32x1024xf32>
    %89 = arith.mulf %33, %88 : vector<32x1024xf32>
    %90 = vector.broadcast %7 : f32 to vector<32x1024xf32>
    %91 = arith.addf %90, %89 : vector<32x1024xf32>
    %92 = math.exp %91 : vector<32x1024xf32>
    %cst_25 = arith.constant 1.000000e+00 : f32
    %93 = vector.broadcast %cst_25 : f32 to vector<32x1024xf32>
    %94 = arith.addf %93, %92 : vector<32x1024xf32>
    %95 = arith.mulf %87, %94 : vector<32x1024xf32>
    %96 = vector.broadcast %24 : f32 to vector<32x1024xf32>
    %97 = arith.mulf %33, %96 : vector<32x1024xf32>
    %98 = vector.broadcast %8 : f32 to vector<32x1024xf32>
    %99 = arith.addf %98, %97 : vector<32x1024xf32>
    %100 = math.exp %99 : vector<32x1024xf32>
    %cst_26 = arith.constant 1.000000e+00 : f32
    %101 = vector.broadcast %cst_26 : f32 to vector<32x1024xf32>
    %102 = arith.addf %101, %100 : vector<32x1024xf32>
    %103 = arith.mulf %95, %102 : vector<32x1024xf32>
    %104 = vector.broadcast %25 : f32 to vector<32x1024xf32>
    %105 = arith.mulf %33, %104 : vector<32x1024xf32>
    %106 = vector.broadcast %9 : f32 to vector<32x1024xf32>
    %107 = arith.addf %106, %105 : vector<32x1024xf32>
    %108 = math.exp %107 : vector<32x1024xf32>
    %cst_27 = arith.constant 1.000000e+00 : f32
    %109 = vector.broadcast %cst_27 : f32 to vector<32x1024xf32>
    %110 = arith.addf %109, %108 : vector<32x1024xf32>
    %111 = arith.mulf %103, %110 : vector<32x1024xf32>
    %112 = vector.broadcast %26 : f32 to vector<32x1024xf32>
    %113 = arith.mulf %33, %112 : vector<32x1024xf32>
    %114 = vector.broadcast %10 : f32 to vector<32x1024xf32>
    %115 = arith.addf %114, %113 : vector<32x1024xf32>
    %116 = math.exp %115 : vector<32x1024xf32>
    %cst_28 = arith.constant 1.000000e+00 : f32
    %117 = vector.broadcast %cst_28 : f32 to vector<32x1024xf32>
    %118 = arith.addf %117, %116 : vector<32x1024xf32>
    %119 = arith.mulf %111, %118 : vector<32x1024xf32>
    %120 = vector.broadcast %27 : f32 to vector<32x1024xf32>
    %121 = arith.mulf %33, %120 : vector<32x1024xf32>
    %122 = vector.broadcast %11 : f32 to vector<32x1024xf32>
    %123 = arith.addf %122, %121 : vector<32x1024xf32>
    %124 = math.exp %123 : vector<32x1024xf32>
    %cst_29 = arith.constant 1.000000e+00 : f32
    %125 = vector.broadcast %cst_29 : f32 to vector<32x1024xf32>
    %126 = arith.addf %125, %124 : vector<32x1024xf32>
    %127 = arith.mulf %119, %126 : vector<32x1024xf32>
    %128 = vector.broadcast %28 : f32 to vector<32x1024xf32>
    %129 = arith.mulf %33, %128 : vector<32x1024xf32>
    %130 = vector.broadcast %12 : f32 to vector<32x1024xf32>
    %131 = arith.addf %130, %129 : vector<32x1024xf32>
    %132 = math.exp %131 : vector<32x1024xf32>
    %cst_30 = arith.constant 1.000000e+00 : f32
    %133 = vector.broadcast %cst_30 : f32 to vector<32x1024xf32>
    %134 = arith.addf %133, %132 : vector<32x1024xf32>
    %135 = arith.mulf %127, %134 : vector<32x1024xf32>
    %136 = vector.broadcast %29 : f32 to vector<32x1024xf32>
    %137 = arith.mulf %33, %136 : vector<32x1024xf32>
    %138 = vector.broadcast %13 : f32 to vector<32x1024xf32>
    %139 = arith.addf %138, %137 : vector<32x1024xf32>
    %140 = math.exp %139 : vector<32x1024xf32>
    %cst_31 = arith.constant 1.000000e+00 : f32
    %141 = vector.broadcast %cst_31 : f32 to vector<32x1024xf32>
    %142 = arith.addf %141, %140 : vector<32x1024xf32>
    %143 = arith.mulf %135, %142 : vector<32x1024xf32>
    %144 = vector.broadcast %30 : f32 to vector<32x1024xf32>
    %145 = arith.mulf %33, %144 : vector<32x1024xf32>
    %146 = vector.broadcast %14 : f32 to vector<32x1024xf32>
    %147 = arith.addf %146, %145 : vector<32x1024xf32>
    %148 = math.exp %147 : vector<32x1024xf32>
    %cst_32 = arith.constant 1.000000e+00 : f32
    %149 = vector.broadcast %cst_32 : f32 to vector<32x1024xf32>
    %150 = arith.addf %149, %148 : vector<32x1024xf32>
    %151 = arith.mulf %143, %150 : vector<32x1024xf32>
    %152 = vector.broadcast %31 : f32 to vector<32x1024xf32>
    %153 = arith.mulf %33, %152 : vector<32x1024xf32>
    %154 = vector.broadcast %15 : f32 to vector<32x1024xf32>
    %155 = arith.addf %154, %153 : vector<32x1024xf32>
    %156 = math.exp %155 : vector<32x1024xf32>
    %cst_33 = arith.constant 1.000000e+00 : f32
    %157 = vector.broadcast %cst_33 : f32 to vector<32x1024xf32>
    %158 = arith.addf %157, %156 : vector<32x1024xf32>
    %159 = arith.mulf %151, %158 : vector<32x1024xf32>
    %160 = vector.broadcast %32 : f32 to vector<32x1024xf32>
    %161 = arith.mulf %33, %160 : vector<32x1024xf32>
    %162 = vector.broadcast %16 : f32 to vector<32x1024xf32>
    %163 = arith.addf %162, %161 : vector<32x1024xf32>
    %164 = math.exp %163 : vector<32x1024xf32>
    %cst_34 = arith.constant 1.000000e+00 : f32
    %165 = vector.broadcast %cst_34 : f32 to vector<32x1024xf32>
    %166 = arith.addf %165, %164 : vector<32x1024xf32>
    %167 = arith.mulf %159, %166 : vector<32x1024xf32>
    %c0_35 = arith.constant 0 : index
    %c0_36 = arith.constant 0 : index
    %168 = vector.load %arg5[%c0_35, %c0_36] : memref<32x1024xf32, #tpu.memory_space<vmem>>, vector<32x1024xf32>
    tpu.vector_store %arg5[%c0_35, %c0_36], %167 {strides = array<i32>} : memref<32x1024xf32, #tpu.memory_space<vmem>>, vector<32x1024xf32>,
    return
  }
  func.func @transform_0(%arg0: i32) -> i32 {
    %c0_i32 = arith.constant 0 : i32
    %c0_i32_0 = arith.constant 0 : i32
    return %c0_i32 : i32
  }
  func.func @transform_1(%arg0: i32) -> i32 {
    %c0_i32 = arith.constant 0 : i32
    %c0_i32_0 = arith.constant 0 : i32
    return %c0_i32 : i32
  }
  func.func @transform_2(%arg0: i32) -> i32 {
    %c0_i32 = arith.constant 0 : i32
    %c0_i32_0 = arith.constant 0 : i32
    return %c0_i32 : i32
  }
  func.func @transform_3(%arg0: i32) -> (i32, i32) {
    %c0_i32 = arith.constant 0 : i32
    %c0_i32_0 = arith.constant 0 : i32
    return %arg0, %c0_i32 : i32, i32
  }
  func.func @transform_4(%arg0: i32) -> (i32, i32) {
    %c0_i32 = arith.constant 0 : i32
    %c0_i32_0 = arith.constant 0 : i32
    return %arg0, %c0_i32 : i32, i32
  }
}

</mosaic_0001>

<llo_original>
// kernel: tpu_custom_call.1
$region0: #{tpu_custom_call.1}
  #allocation0 [shape = 'u32[]', space=smem, size = 0x4, offset = 0x4, fixed_abs, tag = 'smem constant byte address 0x4 - core index']
  #allocation1 [shape = 'u32[144,128]{1,0:T(1,128)}', space=vmem, size = 0x12000, scoped, tag = 'internal scratch']
  #allocation2 [shape = 'f32[1]{0:T(128)S(6)}', space=smem, size = 0x200, scoped, tag = 'scoped memory for tpu_custom_call.1']
  %s0 = inlined_call_operand.<no memory space> [shape: f32[1], index: 0, kind: input, shape index: {}]
  %s1 = inlined_call_operand.vmem [shape: f32[32], index: 1, kind: input, shape index: {}]
  %s2 = inlined_call_operand.vmem [shape: f32[32], index: 2, kind: input, shape index: {}]
  %s3 = inlined_call_operand.hbm [shape: f32[32,1024], index: 3, kind: input, shape index: {}]
  %s4 = inlined_call_operand.hbm [shape: f32[32,1024], index: 4, kind: output, shape index: {}]
  %s5 = sld [smem:[#allocation0]]
  $region38: #{tpu_custom_call.1} parent=0
    _
  %s7 = ssub.s32 1, %s5
  %s8 = scalar_select 0, %s7, %s5
  %9 = sst [smem:[#allocation2]] %s0
  $region1: #{tpu_custom_call.1} parent=0
    #allocation3 [shape = 'u8[512]{0}', space=smem, size = 0x200, scoped, tag = 'input window, operand 1, single buffered']
    #allocation4 [shape = 's32[1]{0}', space=sflag, size = 0x4, scoped, tag = 'scoped memory for tpu_custom_call.1']
    #allocation5 [shape = 's32[1]{0}', space=sflag, size = 0x4, scoped, tag = 'scoped memory for tpu_custom_call.1']
    #allocation6 [shape = 's32[1]{0}', space=sflag, size = 0x4, scoped, tag = 'scoped memory for tpu_custom_call.1']
    #allocation7 [shape = 'u8[512]{0}', space=smem, size = 0x200, scoped, tag = 'input window, operand 2, single buffered']
    #allocation8 [shape = 's32[1]{0}', space=sflag, size = 0x4, scoped, tag = 'scoped memory for tpu_custom_call.1']
    #allocation9 [shape = 'u8[131072]{0}', space=vmem, size = 0x20000, scoped, tag = 'input window, operand 3, single buffered']
    #allocation10 [shape = 'u8[131072]{0}', space=vmem, size = 0x20000, scoped, tag = 'output window, operand 0, single buffered']
    %10 = vsyncpa [#allocation6], 0
    %11 = vsyncpa [#allocation8], 0
    %12 = vsyncpa [#allocation4], 0
    %13 = vsyncpa [#allocation5], 0
    // Predicated region
    $region2: #{tpu_custom_call.1} parent=1 // pred_check
      _
    $region3: #{tpu_custom_call.1} parent=1 // pred_check_branch
      %15 = sbr.rel (0) target = $region5
    $region4: #{tpu_custom_call.1} parent=1 // pred_region
      _
    $region5: #{tpu_custom_call.1} parent=1 // pred_fallthru
      _
    // Predicated region
    $region6: #{tpu_custom_call.1} parent=1 // pred_check
      _
    $region7: #{tpu_custom_call.1} parent=1 // pred_check_branch
      %17 = sbr.rel (0) target = $region9
    $region8: #{tpu_custom_call.1} parent=1 // pred_region
      %s19 = ssub.s32 16, 16
      %20 = vsyncadd [#allocation6], %s19
      %s22 = sshll.u32 %s1, 4
      %s23 = int_to_ptr.vmem [resolvable:$true] %s22
      %25 = dma.vmem_to_smem %s23, 16, [#allocation3], [#allocation6]
    $region9: #{tpu_custom_call.1} parent=1 // pred_fallthru
      _
    // Predicated region
    $region10: #{tpu_custom_call.1} parent=1 // pred_check
      _
    $region11: #{tpu_custom_call.1} parent=1 // pred_check_branch
      %27 = sbr.rel (0) target = $region13
    $region12: #{tpu_custom_call.1} parent=1 // pred_region
      %s29 = ssub.s32 16, 16
      %30 = vsyncadd [#allocation8], %s29
      %s32 = sshll.u32 %s2, 4
      %s33 = int_to_ptr.vmem [resolvable:$true] %s32
      %35 = dma.vmem_to_smem %s33, 16, [#allocation7], [#allocation8]
    $region13: #{tpu_custom_call.1} parent=1 // pred_fallthru
      _
    // Predicated region
    $region14: #{tpu_custom_call.1} parent=1 // pred_check
      _
    $region15: #{tpu_custom_call.1} parent=1 // pred_check_branch
      %37 = sbr.rel (0) target = $region17
    $region16: #{tpu_custom_call.1} parent=1 // pred_region
      %s39 = ssub.s32 4096, 4096
      %40 = vsyncadd [#allocation4], %s39
      %s41 = sshll.u32 [#allocation9], 4
      %s42 = int_to_ptr.vmem [resolvable:$true] %s41
      %47 = dma.hbm_to_vmem [thread:$0]  %s3, 4096, %s42, [#allocation4], 1024, 1024, 64
    $region17: #{tpu_custom_call.1} parent=1 // pred_fallthru
      _
    // Predicated region
    $region18: #{tpu_custom_call.1} parent=1 // pred_check
      _
    $region19: #{tpu_custom_call.1} parent=1 // pred_check_branch
      %49 = sbr.rel (0) target = $region21
    $region20: #{tpu_custom_call.1} parent=1 // pred_region
      %50 = dma.done [#allocation6], 16
    $region21: #{tpu_custom_call.1} parent=1 // pred_fallthru
      _
    // Predicated region
    $region22: #{tpu_custom_call.1} parent=1 // pred_check
      _
    $region23: #{tpu_custom_call.1} parent=1 // pred_check_branch
      %52 = sbr.rel (0) target = $region25
    $region24: #{tpu_custom_call.1} parent=1 // pred_region
      %53 = dma.done [#allocation8], 16
    $region25: #{tpu_custom_call.1} parent=1 // pred_fallthru
      _
    // Predicated region
    $region26: #{tpu_custom_call.1} parent=1 // pred_check
      _
    $region27: #{tpu_custom_call.1} parent=1 // pred_check_branch
      %55 = sbr.rel (0) target = $region29
    $region28: #{tpu_custom_call.1} parent=1 // pred_region
      %56 = dma.done [#allocation4], 4096
    $region29: #{tpu_custom_call.1} parent=1 // pred_fallthru
      _
    %57 = sfence
    %s58 = sld [smem:[#allocation2]]
    %s59 = sld [smem:[#allocation3]]
    %s60 = sld [smem:[#allocation3 + $0x1]]
    %s61 = sld [smem:[#allocation3 + $0x2]]
    %s62 = sld [smem:[#allocation3 + $0x3]]
    %s63 = sld [smem:[#allocation3 + $0x4]]
    %s64 = sld [smem:[#allocation3 + $0x5]]
    %s65 = sld [smem:[#allocation3 + $0x6]]
    %s66 = sld [smem:[#allocation3 + $0x7]]
    %s67 = sld [smem:[#allocation3 + $0x8]]
    %s68 = sld [smem:[#allocation3 + $0x9]]
    %s69 = sld [smem:[#allocation3 + $0xa]]
    %s70 = sld [smem:[#allocation3 + $0xb]]
    %s71 = sld [smem:[#allocation3 + $0xc]]
    %s72 = sld [smem:[#allocation3 + $0xd]]
    %s73 = sld [smem:[#allocation3 + $0xe]]
    %s74 = sld [smem:[#allocation3 + $0xf]]
    %s75 = sld [smem:[#allocation7]]
    %s76 = sld [smem:[#allocation7 + $0x1]]
    %s77 = sld [smem:[#allocation7 + $0x2]]
    %s78 = sld [smem:[#allocation7 + $0x3]]
    %s79 = sld [smem:[#allocation7 + $0x4]]
    %s80 = sld [smem:[#allocation7 + $0x5]]
    %s81 = sld [smem:[#allocation7 + $0x6]]
    %s82 = sld [smem:[#allocation7 + $0x7]]
    %s83 = sld [smem:[#allocation7 + $0x8]]
    %s84 = sld [smem:[#allocation7 + $0x9]]
    %s85 = sld [smem:[#allocation7 + $0xa]]
    %s86 = sld [smem:[#allocation7 + $0xb]]
    %s87 = sld [smem:[#allocation7 + $0xc]]
    %s88 = sld [smem:[#allocation7 + $0xd]]
    %s89 = sld [smem:[#allocation7 + $0xe]]
    %s90 = sld [smem:[#allocation7 + $0xf]]
    %v91 = vld [vmem:[#allocation9] sm:$0xff]
    %v92 = vld [vmem:[#allocation9 + $0x8] sm:$0xff]
    %v93 = vld [vmem:[#allocation9 + $0x10] sm:$0xff]
    %v94 = vld [vmem:[#allocation9 + $0x18] sm:$0xff]
    %v95 = vld [vmem:[#allocation9 + $0x20] sm:$0xff]
    %v96 = vld [vmem:[#allocation9 + $0x28] sm:$0xff]
    %v97 = vld [vmem:[#allocation9 + $0x30] sm:$0xff]
    %v98 = vld [vmem:[#allocation9 + $0x38] sm:$0xff]
    %v99 = vld [vmem:[#allocation9 + $0x40] sm:$0xff]
    %v100 = vld [vmem:[#allocation9 + $0x48] sm:$0xff]
    %v101 = vld [vmem:[#allocation9 + $0x50] sm:$0xff]
    %v102 = vld [vmem:[#allocation9 + $0x58] sm:$0xff]
    %v103 = vld [vmem:[#allocation9 + $0x60] sm:$0xff]
    %v104 = vld [vmem:[#allocation9 + $0x68] sm:$0xff]
    %v105 = vld [vmem:[#allocation9 + $0x70] sm:$0xff]
    %v106 = vld [vmem:[#allocation9 + $0x78] sm:$0xff]
    %v107 = vld [vmem:[#allocation9 + $0x80] sm:$0xff]
    %v108 = vld [vmem:[#allocation9 + $0x88] sm:$0xff]
    %v109 = vld [vmem:[#allocation9 + $0x90] sm:$0xff]
    %v110 = vld [vmem:[#allocation9 + $0x98] sm:$0xff]
    %v111 = vld [vmem:[#allocation9 + $0xa0] sm:$0xff]
    %v112 = vld [vmem:[#allocation9 + $0xa8] sm:$0xff]
    %v113 = vld [vmem:[#allocation9 + $0xb0] sm:$0xff]
    %v114 = vld [vmem:[#allocation9 + $0xb8] sm:$0xff]
    %v115 = vld [vmem:[#allocation9 + $0xc0] sm:$0xff]
    %v116 = vld [vmem:[#allocation9 + $0xc8] sm:$0xff]
    %v117 = vld [vmem:[#allocation9 + $0xd0] sm:$0xff]
    %v118 = vld [vmem:[#allocation9 + $0xd8] sm:$0xff]
    %v119 = vld [vmem:[#allocation9 + $0xe0] sm:$0xff]
    %v120 = vld [vmem:[#allocation9 + $0xe8] sm:$0xff]
    %v121 = vld [vmem:[#allocation9 + $0xf0] sm:$0xff]
    %v122 = vld [vmem:[#allocation9 + $0xf8] sm:$0xff]
    %v123 = vmul.f32 %v91, 0.5
    %v124 = vmul.f32 %v92, 0.5
    %v125 = vmul.f32 %v93, 0.5
    %v126 = vmul.f32 %v94, 0.5
    %v127 = vmul.f32 %v95, 0.5
    %v128 = vmul.f32 %v96, 0.5
    %v129 = vmul.f32 %v97, 0.5
    %v130 = vmul.f32 %v98, 0.5
    %v131 = vmul.f32 %v99, 0.5
    %v132 = vmul.f32 %v100, 0.5
    %v133 = vmul.f32 %v101, 0.5
    %v134 = vmul.f32 %v102, 0.5
    %v135 = vmul.f32 %v103, 0.5
    %v136 = vmul.f32 %v104, 0.5
    %v137 = vmul.f32 %v105, 0.5
    %v138 = vmul.f32 %v106, 0.5
    %v139 = vmul.f32 %v107, 0.5
    %v140 = vmul.f32 %v108, 0.5
    %v141 = vmul.f32 %v109, 0.5
    %v142 = vmul.f32 %v110, 0.5
    %v143 = vmul.f32 %v111, 0.5
    %v144 = vmul.f32 %v112, 0.5
    %v145 = vmul.f32 %v113, 0.5
    %v146 = vmul.f32 %v114, 0.5
    %v147 = vmul.f32 %v115, 0.5
    %v148 = vmul.f32 %v116, 0.5
    %v149 = vmul.f32 %v117, 0.5
    %v150 = vmul.f32 %v118, 0.5
    %v151 = vmul.f32 %v119, 0.5
    %v152 = vmul.f32 %v120, 0.5
    %v153 = vmul.f32 %v121, 0.5
    %v154 = vmul.f32 %v122, 0.5
    %v155 = vstv %s58
    %v156 = vsub.f32 %v155, %v123
    %v157 = vsub.f32 %v155, %v124
    %v158 = vsub.f32 %v155, %v125
    %v159 = vsub.f32 %v155, %v126
    %v160 = vsub.f32 %v155, %v127
    %v161 = vsub.f32 %v155, %v128
    %v162 = vsub.f32 %v155, %v129
    %v163 = vsub.f32 %v155, %v130
    %v164 = vsub.f32 %v155, %v131
    %v165 = vsub.f32 %v155, %v132
    %v166 = vsub.f32 %v155, %v133
    %v167 = vsub.f32 %v155, %v134
    %v168 = vsub.f32 %v155, %v135
    %v169 = vsub.f32 %v155, %v136
    %v170 = vsub.f32 %v155, %v137
    %v171 = vsub.f32 %v155, %v138
    %v172 = vsub.f32 %v155, %v139
    %v173 = vsub.f32 %v155, %v140
    %v174 = vsub.f32 %v155, %v141
    %v175 = vsub.f32 %v155, %v142
    %v176 = vsub.f32 %v155, %v143
    %v177 = vsub.f32 %v155, %v144
    %v178 = vsub.f32 %v155, %v145
    %v179 = vsub.f32 %v155, %v146
    %v180 = vsub.f32 %v155, %v147
    %v181 = vsub.f32 %v155, %v148
    %v182 = vsub.f32 %v155, %v149
    %v183 = vsub.f32 %v155, %v150
    %v184 = vsub.f32 %v155, %v151
    %v185 = vsub.f32 %v155, %v152
    %v186 = vsub.f32 %v155, %v153
    %v187 = vsub.f32 %v155, %v154
    %v188 = vmul.f32 %v91, %v156
    %v189 = vmul.f32 %v92, %v157
    %v190 = vmul.f32 %v93, %v158
    %v191 = vmul.f32 %v94, %v159
    %v192 = vmul.f32 %v95, %v160
    %v193 = vmul.f32 %v96, %v161
    %v194 = vmul.f32 %v97, %v162
    %v195 = vmul.f32 %v98, %v163
    %v196 = vmul.f32 %v99, %v164
    %v197 = vmul.f32 %v100, %v165
    %v198 = vmul.f32 %v101, %v166
    %v199 = vmul.f32 %v102, %v167
    %v200 = vmul.f32 %v103, %v168
    %v201 = vmul.f32 %v104, %v169
    %v202 = vmul.f32 %v105, %v170
    %v203 = vmul.f32 %v106, %v171
    %v204 = vmul.f32 %v107, %v172
    %v205 = vmul.f32 %v108, %v173
    %v206 = vmul.f32 %v109, %v174
    %v207 = vmul.f32 %v110, %v175
    %v208 = vmul.f32 %v111, %v176
    %v209 = vmul.f32 %v112, %v177
    %v210 = vmul.f32 %v113, %v178
    %v211 = vmul.f32 %v114, %v179
    %v212 = vmul.f32 %v115, %v180
    %v213 = vmul.f32 %v116, %v181
    %v214 = vmul.f32 %v117, %v182
    %v215 = vmul.f32 %v118, %v183
    %v216 = vmul.f32 %v119, %v184
    %v217 = vmul.f32 %v120, %v185
    %v218 = vmul.f32 %v121, %v186
    %v219 = vmul.f32 %v122, %v187
    %v220 = vmul.f32 %v188, 1.442695
    %v221 = vpow.pop %v220
    %v222 = vmul.f32 %v189, 1.442695
    %v223 = vpow.pop %v222
    %v224 = vmul.f32 %v190, 1.442695
    %v225 = vpow.pop %v224
    %v226 = vmul.f32 %v191, 1.442695
    %v227 = vpow.pop %v226
    %v228 = vmul.f32 %v192, 1.442695
    %v229 = vpow.pop %v228
    %v230 = vmul.f32 %v193, 1.442695
    %v231 = vpow.pop %v230
    %v232 = vmul.f32 %v194, 1.442695
    %v233 = vpow.pop %v232
    %v234 = vmul.f32 %v195, 1.442695
    %v235 = vpow.pop %v234
    %v236 = vmul.f32 %v196, 1.442695
    %v237 = vpow.pop %v236
    %v238 = vmul.f32 %v197, 1.442695
    %v239 = vpow.pop %v238
    %v240 = vmul.f32 %v198, 1.442695
    %v241 = vpow.pop %v240
    %v242 = vmul.f32 %v199, 1.442695
    %v243 = vpow.pop %v242
    %v244 = vmul.f32 %v200, 1.442695
    %v245 = vpow.pop %v244
    %v246 = vmul.f32 %v201, 1.442695
    %v247 = vpow.pop %v246
    %v248 = vmul.f32 %v202, 1.442695
    %v249 = vpow.pop %v248
    %v250 = vmul.f32 %v203, 1.442695
    %v251 = vpow.pop %v250
    %v252 = vmul.f32 %v204, 1.442695
    %v253 = vpow.pop %v252
    %v254 = vmul.f32 %v205, 1.442695
    %v255 = vpow.pop %v254
    %v256 = vmul.f32 %v206, 1.442695
    %v257 = vpow.pop %v256
    %v258 = vmul.f32 %v207, 1.442695
    %v259 = vpow.pop %v258
    %v260 = vmul.f32 %v208, 1.442695
    %v261 = vpow.pop %v260
    %v262 = vmul.f32 %v209, 1.442695
    %v263 = vpow.pop %v262
    %v264 = vmul.f32 %v210, 1.442695
    %v265 = vpow.pop %v264
    %v266 = vmul.f32 %v211, 1.442695
    %v267 = vpow.pop %v266
    %v268 = vmul.f32 %v212, 1.442695
    %v269 = vpow.pop %v268
    %v270 = vmul.f32 %v213, 1.442695
    %v271 = vpow.pop %v270
    %v272 = vmul.f32 %v214, 1.442695
    %v273 = vpow.pop %v272
    %v274 = vmul.f32 %v215, 1.442695
    %v275 = vpow.pop %v274
    %v276 = vmul.f32 %v216, 1.442695
    %v277 = vpow.pop %v276
    %v278 = vmul.f32 %v217, 1.442695
    %v279 = vpow.pop %v278
    %v280 = vmul.f32 %v218, 1.442695
    %v281 = vpow.pop %v280
    %v282 = vmul.f32 %v219, 1.442695
    %v283 = vpow.pop %v282
    %v284 = vstv %s75
    %v285 = vmul.f32 %v91, %v284
    %v286 = vmul.f32 %v92, %v284
    %v287 = vmul.f32 %v93, %v284
    %v288 = vmul.f32 %v94, %v284
    %v289 = vmul.f32 %v95, %v284
    %v290 = vmul.f32 %v96, %v284
    %v291 = vmul.f32 %v97, %v284
    %v292 = vmul.f32 %v98, %v284
    %v293 = vmul.f32 %v99, %v284
    %v294 = vmul.f32 %v100, %v284
    %v295 = vmul.f32 %v101, %v284
    %v296 = vmul.f32 %v102, %v284
    %v297 = vmul.f32 %v103, %v284
    %v298 = vmul.f32 %v104, %v284
    %v299 = vmul.f32 %v105, %v284
    %v300 = vmul.f32 %v106, %v284
    %v301 = vmul.f32 %v107, %v284
    %v302 = vmul.f32 %v108, %v284
    %v303 = vmul.f32 %v109, %v284
    %v304 = vmul.f32 %v110, %v284
    %v305 = vmul.f32 %v111, %v284
    %v306 = vmul.f32 %v112, %v284
    %v307 = vmul.f32 %v113, %v284
    %v308 = vmul.f32 %v114, %v284
    %v309 = vmul.f32 %v115, %v284
    %v310 = vmul.f32 %v116, %v284
    %v311 = vmul.f32 %v117, %v284
    %v312 = vmul.f32 %v118, %v284
    %v313 = vmul.f32 %v119, %v284
    %v314 = vmul.f32 %v120, %v284
    %v315 = vmul.f32 %v121, %v284
    %v316 = vmul.f32 %v122, %v284
    %v317 = vstv %s59
    %v318 = vadd.f32 %v317, %v285
    %v319 = vadd.f32 %v317, %v286
    %v320 = vadd.f32 %v317, %v287
    %v321 = vadd.f32 %v317, %v288
    %v322 = vadd.f32 %v317, %v289
    %v323 = vadd.f32 %v317, %v290
    %v324 = vadd.f32 %v317, %v291
    %v325 = vadd.f32 %v317, %v292
    %v326 = vadd.f32 %v317, %v293
    %v327 = vadd.f32 %v317, %v294
    %v328 = vadd.f32 %v317, %v295
    %v329 = vadd.f32 %v317, %v296
    %v330 = vadd.f32 %v317, %v297
    %v331 = vadd.f32 %v317, %v298
    %v332 = vadd.f32 %v317, %v299
    %v333 = vadd.f32 %v317, %v300
    %v334 = vadd.f32 %v317, %v301
    %v335 = vadd.f32 %v317, %v302
    %v336 = vadd.f32 %v317, %v303
    %v337 = vadd.f32 %v317, %v304
    %v338 = vadd.f32 %v317, %v305
    %v339 = vadd.f32 %v317, %v306
    %v340 = vadd.f32 %v317, %v307
    %v341 = vadd.f32 %v317, %v308
    %v342 = vadd.f32 %v317, %v309
    %v343 = vadd.f32 %v317, %v310
    %v344 = vadd.f32 %v317, %v311
    %v345 = vadd.f32 %v317, %v312
    %v346 = vadd.f32 %v317, %v313
    %v347 = vadd.f32 %v317, %v314
    %v348 = vadd.f32 %v317, %v315
    %v349 = vadd.f32 %v317, %v316
    %v350 = vmul.f32 %v318, 1.442695
    %v351 = vpow.pop %v350
    %v352 = vmul.f32 %v319, 1.442695
    %v353 = vpow.pop %v352
    %v354 = vmul.f32 %v320, 1.442695
    %v355 = vpow.pop %v354
    %v356 = vmul.f32 %v321, 1.442695
    %v357 = vpow.pop %v356
    %v358 = vmul.f32 %v322, 1.442695
    %v359 = vpow.pop %v358
    %v360 = vmul.f32 %v323, 1.442695
    %v361 = vpow.pop %v360
    %v362 = vmul.f32 %v324, 1.442695
    %v363 = vpow.pop %v362
    %v364 = vmul.f32 %v325, 1.442695
    %v365 = vpow.pop %v364
    %v366 = vmul.f32 %v326, 1.442695
    %v367 = vpow.pop %v366
    %v368 = vmul.f32 %v327, 1.442695
    %v369 = vpow.pop %v368
    %v370 = vmul.f32 %v328, 1.442695
    %v371 = vpow.pop %v370
    %v372 = vmul.f32 %v329, 1.442695
    %v373 = vpow.pop %v372
    %v374 = vmul.f32 %v330, 1.442695
    %v375 = vpow.pop %v374
    %v376 = vmul.f32 %v331, 1.442695
    %v377 = vpow.pop %v376
    %v378 = vmul.f32 %v332, 1.442695
    %v379 = vpow.pop %v378
    %v380 = vmul.f32 %v333, 1.442695
    %v381 = vpow.pop %v380
    %v382 = vmul.f32 %v334, 1.442695
    %v383 = vpow.pop %v382
    %v384 = vmul.f32 %v335, 1.442695
    %v385 = vpow.pop %v384
    %v386 = vmul.f32 %v336, 1.442695
    %v387 = vpow.pop %v386
    %v388 = vmul.f32 %v337, 1.442695
    %v389 = vpow.pop %v388
    %v390 = vmul.f32 %v338, 1.442695
    %v391 = vpow.pop %v390
    %v392 = vmul.f32 %v339, 1.442695
    %v393 = vpow.pop %v392
    %v394 = vmul.f32 %v340, 1.442695
    %v395 = vpow.pop %v394
    %v396 = vmul.f32 %v341, 1.442695
    %v397 = vpow.pop %v396
    %v398 = vmul.f32 %v342, 1.442695
    %v399 = vpow.pop %v398
    %v400 = vmul.f32 %v343, 1.442695
    %v401 = vpow.pop %v400
    %v402 = vmul.f32 %v344, 1.442695
    %v403 = vpow.pop %v402
    %v404 = vmul.f32 %v345, 1.442695
    %v405 = vpow.pop %v404
    %v406 = vmul.f32 %v346, 1.442695
    %v407 = vpow.pop %v406
    %v408 = vmul.f32 %v347, 1.442695
    %v409 = vpow.pop %v408
    %v410 = vmul.f32 %v348, 1.442695
    %v411 = vpow.pop %v410
    %v412 = vmul.f32 %v349, 1.442695
    %v413 = vpow.pop %v412
    %v414 = vadd.f32 %v351, 1.0
    %v415 = vadd.f32 %v353, 1.0
    %v416 = vadd.f32 %v355, 1.0
    %v417 = vadd.f32 %v357, 1.0
    %v418 = vadd.f32 %v359, 1.0
    %v419 = vadd.f32 %v361, 1.0
    %v420 = vadd.f32 %v363, 1.0
    %v421 = vadd.f32 %v365, 1.0
    %v422 = vadd.f32 %v367, 1.0
    %v423 = vadd.f32 %v369, 1.0
    %v424 = vadd.f32 %v371, 1.0
    %v425 = vadd.f32 %v373, 1.0
    %v426 = vadd.f32 %v375, 1.0
    %v427 = vadd.f32 %v377, 1.0
    %v428 = vadd.f32 %v379, 1.0
    %v429 = vadd.f32 %v381, 1.0
    %v430 = vadd.f32 %v383, 1.0
    %v431 = vadd.f32 %v385, 1.0
    %v432 = vadd.f32 %v387, 1.0
    %v433 = vadd.f32 %v389, 1.0
    %v434 = vadd.f32 %v391, 1.0
    %v435 = vadd.f32 %v393, 1.0
    %v436 = vadd.f32 %v395, 1.0
    %v437 = vadd.f32 %v397, 1.0
    %v438 = vadd.f32 %v399, 1.0
    %v439 = vadd.f32 %v401, 1.0
    %v440 = vadd.f32 %v403, 1.0
    %v441 = vadd.f32 %v405, 1.0
    %v442 = vadd.f32 %v407, 1.0
    %v443 = vadd.f32 %v409, 1.0
    %v444 = vadd.f32 %v411, 1.0
    %v445 = vadd.f32 %v413, 1.0
    %v446 = vmul.f32 %v221, %v414
    %v447 = vmul.f32 %v223, %v415
    %v448 = vmul.f32 %v225, %v416
    %v449 = vmul.f32 %v227, %v417
    %v450 = vmul.f32 %v229, %v418
    %v451 = vmul.f32 %v231, %v419
    %v452 = vmul.f32 %v233, %v420
    %v453 = vmul.f32 %v235, %v421
    %v454 = vmul.f32 %v237, %v422
    %v455 = vmul.f32 %v239, %v423
    %v456 = vmul.f32 %v241, %v424
    %v457 = vmul.f32 %v243, %v425
    %v458 = vmul.f32 %v245, %v426
    %v459 = vmul.f32 %v247, %v427
    %v460 = vmul.f32 %v249, %v428
    %v461 = vmul.f32 %v251, %v429
    %v462 = vmul.f32 %v253, %v430
    %v463 = vmul.f32 %v255, %v431
    %v464 = vmul.f32 %v257, %v432
    %v465 = vmul.f32 %v259, %v433
    %v466 = vmul.f32 %v261, %v434
    %v467 = vmul.f32 %v263, %v435
    %v468 = vmul.f32 %v265, %v436
    %v469 = vmul.f32 %v267, %v437
    %v470 = vmul.f32 %v269, %v438
    %v471 = vmul.f32 %v271, %v439
    %v472 = vmul.f32 %v273, %v440
    %v473 = vmul.f32 %v275, %v441
    %v474 = vmul.f32 %v277, %v442
    %v475 = vmul.f32 %v279, %v443
    %v476 = vmul.f32 %v281, %v444
    %v477 = vmul.f32 %v283, %v445
    %v478 = vstv %s76
    %v479 = vmul.f32 %v91, %v478
    %v480 = vmul.f32 %v92, %v478
    %v481 = vmul.f32 %v93, %v478
    %v482 = vmul.f32 %v94, %v478
    %v483 = vmul.f32 %v95, %v478
    %v484 = vmul.f32 %v96, %v478
    %v485 = vmul.f32 %v97, %v478
    %v486 = vmul.f32 %v98, %v478
    %v487 = vmul.f32 %v99, %v478
    %v488 = vmul.f32 %v100, %v478
    %v489 = vmul.f32 %v101, %v478
    %v490 = vmul.f32 %v102, %v478
    %v491 = vmul.f32 %v103, %v478
    %v492 = vmul.f32 %v104, %v478
    %v493 = vmul.f32 %v105, %v478
    %v494 = vmul.f32 %v106, %v478
    %v495 = vmul.f32 %v107, %v478
    %v496 = vmul.f32 %v108, %v478
    %v497 = vmul.f32 %v109, %v478
    %v498 = vmul.f32 %v110, %v478
    %v499 = vmul.f32 %v111, %v478
    %v500 = vmul.f32 %v112, %v478
    %v501 = vmul.f32 %v113, %v478
    %v502 = vmul.f32 %v114, %v478
    %v503 = vmul.f32 %v115, %v478
    %v504 = vmul.f32 %v116, %v478
    %v505 = vmul.f32 %v117, %v478
    %v506 = vmul.f32 %v118, %v478
    %v507 = vmul.f32 %v119, %v478
    %v508 = vmul.f32 %v120, %v478
    %v509 = vmul.f32 %v121, %v478
    %v510 = vmul.f32 %v122, %v478
    %v511 = vstv %s60
    %v512 = vadd.f32 %v511, %v479
    %v513 = vadd.f32 %v511, %v480
    %v514 = vadd.f32 %v511, %v481
    %v515 = vadd.f32 %v511, %v482
    %v516 = vadd.f32 %v511, %v483
    %v517 = vadd.f32 %v511, %v484
    %v518 = vadd.f32 %v511, %v485
    %v519 = vadd.f32 %v511, %v486
    %v520 = vadd.f32 %v511, %v487
    %v521 = vadd.f32 %v511, %v488
    %v522 = vadd.f32 %v511, %v489
    %v523 = vadd.f32 %v511, %v490
    %v524 = vadd.f32 %v511, %v491
    %v525 = vadd.f32 %v511, %v492
    %v526 = vadd.f32 %v511, %v493
    %v527 = vadd.f32 %v511, %v494
    %v528 = vadd.f32 %v511, %v495
    %v529 = vadd.f32 %v511, %v496
    %v530 = vadd.f32 %v511, %v497
    %v531 = vadd.f32 %v511, %v498
    %v532 = vadd.f32 %v511, %v499
    %v533 = vadd.f32 %v511, %v500
    %v534 = vadd.f32 %v511, %v501
    %v535 = vadd.f32 %v511, %v502
    %v536 = vadd.f32 %v511, %v503
    %v537 = vadd.f32 %v511, %v504
    %v538 = vadd.f32 %v511, %v505
    %v539 = vadd.f32 %v511, %v506
    %v540 = vadd.f32 %v511, %v507
    %v541 = vadd.f32 %v511, %v508
    %v542 = vadd.f32 %v511, %v509
    %v543 = vadd.f32 %v511, %v510
    %v544 = vmul.f32 %v512, 1.442695
    %v545 = vpow.pop %v544
    %v546 = vmul.f32 %v513, 1.442695
    %v547 = vpow.pop %v546
    %v548 = vmul.f32 %v514, 1.442695
    %v549 = vpow.pop %v548
    %v550 = vmul.f32 %v515, 1.442695
    %v551 = vpow.pop %v550
    %v552 = vmul.f32 %v516, 1.442695
    %v553 = vpow.pop %v552
    %v554 = vmul.f32 %v517, 1.442695
    %v555 = vpow.pop %v554
    %v556 = vmul.f32 %v518, 1.442695
    %v557 = vpow.pop %v556
    %v558 = vmul.f32 %v519, 1.442695
    %v559 = vpow.pop %v558
    %v560 = vmul.f32 %v520, 1.442695
    %v561 = vpow.pop %v560
    %v562 = vmul.f32 %v521, 1.442695
    %v563 = vpow.pop %v562
    %v564 = vmul.f32 %v522, 1.442695
    %v565 = vpow.pop %v564
    %v566 = vmul.f32 %v523, 1.442695
    %v567 = vpow.pop %v566
    %v568 = vmul.f32 %v524, 1.442695
    %v569 = vpow.pop %v568
    %v570 = vmul.f32 %v525, 1.442695
    %v571 = vpow.pop %v570
    %v572 = vmul.f32 %v526, 1.442695
    %v573 = vpow.pop %v572
    %v574 = vmul.f32 %v527, 1.442695
    %v575 = vpow.pop %v574
    %v576 = vmul.f32 %v528, 1.442695
    %v577 = vpow.pop %v576
    %v578 = vmul.f32 %v529, 1.442695
    %v579 = vpow.pop %v578
    %v580 = vmul.f32 %v530, 1.442695
    %v581 = vpow.pop %v580
    %v582 = vmul.f32 %v531, 1.442695
    %v583 = vpow.pop %v582
    %v584 = vmul.f32 %v532, 1.442695
    %v585 = vpow.pop %v584
    %v586 = vmul.f32 %v533, 1.442695
    %v587 = vpow.pop %v586
    %v588 = vmul.f32 %v534, 1.442695
    %v589 = vpow.pop %v588
    %v590 = vmul.f32 %v535, 1.442695
    %v591 = vpow.pop %v590
    %v592 = vmul.f32 %v536, 1.442695
    %v593 = vpow.pop %v592
    %v594 = vmul.f32 %v537, 1.442695
    %v595 = vpow.pop %v594
    %v596 = vmul.f32 %v538, 1.442695
    %v597 = vpow.pop %v596
    %v598 = vmul.f32 %v539, 1.442695
    %v599 = vpow.pop %v598
    %v600 = vmul.f32 %v540, 1.442695
    %v601 = vpow.pop %v600
    %v602 = vmul.f32 %v541, 1.442695
    %v603 = vpow.pop %v602
    %v604 = vmul.f32 %v542, 1.442695
    %v605 = vpow.pop %v604
    %v606 = vmul.f32 %v543, 1.442695
    %v607 = vpow.pop %v606
    %v608 = vadd.f32 %v545, 1.0
    %v609 = vadd.f32 %v547, 1.0
    %v610 = vadd.f32 %v549, 1.0
    %v611 = vadd.f32 %v551, 1.0
    %v612 = vadd.f32 %v553, 1.0
    %v613 = vadd.f32 %v555, 1.0
    %v614 = vadd.f32 %v557, 1.0
    %v615 = vadd.f32 %v559, 1.0
    %v616 = vadd.f32 %v561, 1.0
    %v617 = vadd.f32 %v563, 1.0
    %v618 = vadd.f32 %v565, 1.0
    %v619 = vadd.f32 %v567, 1.0
    %v620 = vadd.f32 %v569, 1.0
    %v621 = vadd.f32 %v571, 1.0
    %v622 = vadd.f32 %v573, 1.0
    %v623 = vadd.f32 %v575, 1.0
    %v624 = vadd.f32 %v577, 1.0
    %v625 = vadd.f32 %v579, 1.0
    %v626 = vadd.f32 %v581, 1.0
    %v627 = vadd.f32 %v583, 1.0
    %v628 = vadd.f32 %v585, 1.0
    %v629 = vadd.f32 %v587, 1.0
    %v630 = vadd.f32 %v589, 1.0
    %v631 = vadd.f32 %v591, 1.0
    %v632 = vadd.f32 %v593, 1.0
    %v633 = vadd.f32 %v595, 1.0
    %v634 = vadd.f32 %v597, 1.0
    %v635 = vadd.f32 %v599, 1.0
    %v636 = vadd.f32 %v601, 1.0
    %v637 = vadd.f32 %v603, 1.0
    %v638 = vadd.f32 %v605, 1.0
    %v639 = vadd.f32 %v607, 1.0
    %v640 = vmul.f32 %v446, %v608
    %v641 = vmul.f32 %v447, %v609
    %v642 = vmul.f32 %v448, %v610
    %v643 = vmul.f32 %v449, %v611
    %v644 = vmul.f32 %v450, %v612
    %v645 = vmul.f32 %v451, %v613
    %v646 = vmul.f32 %v452, %v614
    %v647 = vmul.f32 %v453, %v615
    %v648 = vmul.f32 %v454, %v616
    %v649 = vmul.f32 %v455, %v617
    %v650 = vmul.f32 %v456, %v618
    %v651 = vmul.f32 %v457, %v619
    %v652 = vmul.f32 %v458, %v620
    %v653 = vmul.f32 %v459, %v621
    %v654 = vmul.f32 %v460, %v622
    %v655 = vmul.f32 %v461, %v623
    %v656 = vmul.f32 %v462, %v624
    %v657 = vmul.f32 %v463, %v625
    %v658 = vmul.f32 %v464, %v626
    %v659 = vmul.f32 %v465, %v627
    %v660 = vmul.f32 %v466, %v628
    %v661 = vmul.f32 %v467, %v629
    %v662 = vmul.f32 %v468, %v630
    %v663 = vmul.f32 %v469, %v631
    %v664 = vmul.f32 %v470, %v632
    %v665 = vmul.f32 %v471, %v633
    %v666 = vmul.f32 %v472, %v634
    %v667 = vmul.f32 %v473, %v635
    %v668 = vmul.f32 %v474, %v636
    %v669 = vmul.f32 %v475, %v637
    %v670 = vmul.f32 %v476, %v638
    %v671 = vmul.f32 %v477, %v639
    %v672 = vstv %s77
    %v673 = vmul.f32 %v91, %v672
    %v674 = vmul.f32 %v92, %v672
    %v675 = vmul.f32 %v93, %v672
    %v676 = vmul.f32 %v94, %v672
    %v677 = vmul.f32 %v95, %v672
    %v678 = vmul.f32 %v96, %v672
    %v679 = vmul.f32 %v97, %v672
    %v680 = vmul.f32 %v98, %v672
    %v681 = vmul.f32 %v99, %v672
    %v682 = vmul.f32 %v100, %v672
    %v683 = vmul.f32 %v101, %v672
    %v684 = vmul.f32 %v102, %v672
    %v685 = vmul.f32 %v103, %v672
    %v686 = vmul.f32 %v104, %v672
    %v687 = vmul.f32 %v105, %v672
    %v688 = vmul.f32 %v106, %v672
    %v689 = vmul.f32 %v107, %v672
    %v690 = vmul.f32 %v108, %v672
    %v691 = vmul.f32 %v109, %v672
    %v692 = vmul.f32 %v110, %v672
    %v693 = vmul.f32 %v111, %v672
    %v694 = vmul.f32 %v112, %v672
    %v695 = vmul.f32 %v113, %v672
    %v696 = vmul.f32 %v114, %v672
    %v697 = vmul.f32 %v115, %v672
    %v698 = vmul.f32 %v116, %v672
    %v699 = vmul.f32 %v117, %v672
    %v700 = vmul.f32 %v118, %v672
    %v701 = vmul.f32 %v119, %v672
    %v702 = vmul.f32 %v120, %v672
    %v703 = vmul.f32 %v121, %v672
    %v704 = vmul.f32 %v122, %v672
    %v705 = vstv %s61
    %v706 = vadd.f32 %v705, %v673
    %v707 = vadd.f32 %v705, %v674
    %v708 = vadd.f32 %v705, %v675
    %v709 = vadd.f32 %v705, %v676
    %v710 = vadd.f32 %v705, %v677
    %v711 = vadd.f32 %v705, %v678
    %v712 = vadd.f32 %v705, %v679
    %v713 = vadd.f32 %v705, %v680
    %v714 = vadd.f32 %v705, %v681
    %v715 = vadd.f32 %v705, %v682
    %v716 = vadd.f32 %v705, %v683
    %v717 = vadd.f32 %v705, %v684
    %v718 = vadd.f32 %v705, %v685
    %v719 = vadd.f32 %v705, %v686
    %v720 = vadd.f32 %v705, %v687
    %v721 = vadd.f32 %v705, %v688
    %v722 = vadd.f32 %v705, %v689
    %v723 = vadd.f32 %v705, %v690
    %v724 = vadd.f32 %v705, %v691
    %v725 = vadd.f32 %v705, %v692
    %v726 = vadd.f32 %v705, %v693
    %v727 = vadd.f32 %v705, %v694
    %v728 = vadd.f32 %v705, %v695
    %v729 = vadd.f32 %v705, %v696
    %v730 = vadd.f32 %v705, %v697
    %v731 = vadd.f32 %v705, %v698
    %v732 = vadd.f32 %v705, %v699
    %v733 = vadd.f32 %v705, %v700
    %v734 = vadd.f32 %v705, %v701
    %v735 = vadd.f32 %v705, %v702
    %v736 = vadd.f32 %v705, %v703
    %v737 = vadd.f32 %v705, %v704
    %v738 = vmul.f32 %v706, 1.442695
    %v739 = vpow.pop %v738
    %v740 = vmul.f32 %v707, 1.442695
    %v741 = vpow.pop %v740
    %v742 = vmul.f32 %v708, 1.442695
    %v743 = vpow.pop %v742
    %v744 = vmul.f32 %v709, 1.442695
    %v745 = vpow.pop %v744
    %v746 = vmul.f32 %v710, 1.442695
    %v747 = vpow.pop %v746
    %v748 = vmul.f32 %v711, 1.442695
    %v749 = vpow.pop %v748
    %v750 = vmul.f32 %v712, 1.442695
    %v751 = vpow.pop %v750
    %v752 = vmul.f32 %v713, 1.442695
    %v753 = vpow.pop %v752
    %v754 = vmul.f32 %v714, 1.442695
    %v755 = vpow.pop %v754
    %v756 = vmul.f32 %v715, 1.442695
    %v757 = vpow.pop %v756
    %v758 = vmul.f32 %v716, 1.442695
    %v759 = vpow.pop %v758
    %v760 = vmul.f32 %v717, 1.442695
    %v761 = vpow.pop %v760
    %v762 = vmul.f32 %v718, 1.442695
    %v763 = vpow.pop %v762
    %v764 = vmul.f32 %v719, 1.442695
    %v765 = vpow.pop %v764
    %v766 = vmul.f32 %v720, 1.442695
    %v767 = vpow.pop %v766
    %v768 = vmul.f32 %v721, 1.442695
    %v769 = vpow.pop %v768
    %v770 = vmul.f32 %v722, 1.442695
    %v771 = vpow.pop %v770
    %v772 = vmul.f32 %v723, 1.442695
    %v773 = vpow.pop %v772
    %v774 = vmul.f32 %v724, 1.442695
    %v775 = vpow.pop %v774
    %v776 = vmul.f32 %v725, 1.442695
    %v777 = vpow.pop %v776
    %v778 = vmul.f32 %v726, 1.442695
    %v779 = vpow.pop %v778
    %v780 = vmul.f32 %v727, 1.442695
    %v781 = vpow.pop %v780
    %v782 = vmul.f32 %v728, 1.442695
    %v783 = vpow.pop %v782
    %v784 = vmul.f32 %v729, 1.442695
    %v785 = vpow.pop %v784
    %v786 = vmul.f32 %v730, 1.442695
    %v787 = vpow.pop %v786
    %v788 = vmul.f32 %v731, 1.442695
    %v789 = vpow.pop %v788
    %v790 = vmul.f32 %v732, 1.442695
    %v791 = vpow.pop %v790
    %v792 = vmul.f32 %v733, 1.442695
    %v793 = vpow.pop %v792
    %v794 = vmul.f32 %v734, 1.442695
    %v795 = vpow.pop %v794
    %v796 = vmul.f32 %v735, 1.442695
    %v797 = vpow.pop %v796
    %v798 = vmul.f32 %v736, 1.442695
    %v799 = vpow.pop %v798
    %v800 = vmul.f32 %v737, 1.442695
    %v801 = vpow.pop %v800
    %v802 = vadd.f32 %v739, 1.0
    %v803 = vadd.f32 %v741, 1.0
    %v804 = vadd.f32 %v743, 1.0
    %v805 = vadd.f32 %v745, 1.0
    %v806 = vadd.f32 %v747, 1.0
    %v807 = vadd.f32 %v749, 1.0
    %v808 = vadd.f32 %v751, 1.0
    %v809 = vadd.f32 %v753, 1.0
    %v810 = vadd.f32 %v755, 1.0
    %v811 = vadd.f32 %v757, 1.0
    %v812 = vadd.f32 %v759, 1.0
    %v813 = vadd.f32 %v761, 1.0
    %v814 = vadd.f32 %v763, 1.0
    %v815 = vadd.f32 %v765, 1.0
    %v816 = vadd.f32 %v767, 1.0
    %v817 = vadd.f32 %v769, 1.0
    %v818 = vadd.f32 %v771, 1.0
    %v819 = vadd.f32 %v773, 1.0
    %v820 = vadd.f32 %v775, 1.0
    %v821 = vadd.f32 %v777, 1.0
    %v822 = vadd.f32 %v779, 1.0
    %v823 = vadd.f32 %v781, 1.0
    %v824 = vadd.f32 %v783, 1.0
    %v825 = vadd.f32 %v785, 1.0
    %v826 = vadd.f32 %v787, 1.0
    %v827 = vadd.f32 %v789, 1.0
    %v828 = vadd.f32 %v791, 1.0
    %v829 = vadd.f32 %v793, 1.0
    %v830 = vadd.f32 %v795, 1.0
    %v831 = vadd.f32 %v797, 1.0
    %v832 = vadd.f32 %v799, 1.0
    %v833 = vadd.f32 %v801, 1.0
    %v834 = vmul.f32 %v640, %v802
    %v835 = vmul.f32 %v641, %v803
    %v836 = vmul.f32 %v642, %v804
    %v837 = vmul.f32 %v643, %v805
    %v838 = vmul.f32 %v644, %v806
    %v839 = vmul.f32 %v645, %v807
    %v840 = vmul.f32 %v646, %v808
    %v841 = vmul.f32 %v647, %v809
    %v842 = vmul.f32 %v648, %v810
    %v843 = vmul.f32 %v649, %v811
    %v844 = vmul.f32 %v650, %v812
    %v845 = vmul.f32 %v651, %v813
    %v846 = vmul.f32 %v652, %v814
    %v847 = vmul.f32 %v653, %v815
    %v848 = vmul.f32 %v654, %v816
    %v849 = vmul.f32 %v655, %v817
    %v850 = vmul.f32 %v656, %v818
    %v851 = vmul.f32 %v657, %v819
    %v852 = vmul.f32 %v658, %v820
    %v853 = vmul.f32 %v659, %v821
    %v854 = vmul.f32 %v660, %v822
    %v855 = vmul.f32 %v661, %v823
    %v856 = vmul.f32 %v662, %v824
    %v857 = vmul.f32 %v663, %v825
    %v858 = vmul.f32 %v664, %v826
    %v859 = vmul.f32 %v665, %v827
    %v860 = vmul.f32 %v666, %v828
    %v861 = vmul.f32 %v667, %v829
    %v862 = vmul.f32 %v668, %v830
    %v863 = vmul.f32 %v669, %v831
    %v864 = vmul.f32 %v670, %v832
    %v865 = vmul.f32 %v671, %v833
    %v866 = vstv %s78
    %v867 = vmul.f32 %v91, %v866
    %v868 = vmul.f32 %v92, %v866
    %v869 = vmul.f32 %v93, %v866
    %v870 = vmul.f32 %v94, %v866
    %v871 = vmul.f32 %v95, %v866
    %v872 = vmul.f32 %v96, %v866
    %v873 = vmul.f32 %v97, %v866
    %v874 = vmul.f32 %v98, %v866
    %v875 = vmul.f32 %v99, %v866
    %v876 = vmul.f32 %v100, %v866
    %v877 = vmul.f32 %v101, %v866
    %v878 = vmul.f32 %v102, %v866
    %v879 = vmul.f32 %v103, %v866
    %v880 = vmul.f32 %v104, %v866
    %v881 = vmul.f32 %v105, %v866
    %v882 = vmul.f32 %v106, %v866
    %v883 = vmul.f32 %v107, %v866
    %v884 = vmul.f32 %v108, %v866
    %v885 = vmul.f32 %v109, %v866
    %v886 = vmul.f32 %v110, %v866
    %v887 = vmul.f32 %v111, %v866
    %v888 = vmul.f32 %v112, %v866
    %v889 = vmul.f32 %v113, %v866
    %v890 = vmul.f32 %v114, %v866
    %v891 = vmul.f32 %v115, %v866
    %v892 = vmul.f32 %v116, %v866
    %v893 = vmul.f32 %v117, %v866
    %v894 = vmul.f32 %v118, %v866
    %v895 = vmul.f32 %v119, %v866
    %v896 = vmul.f32 %v120, %v866
    %v897 = vmul.f32 %v121, %v866
    %v898 = vmul.f32 %v122, %v866
    %v899 = vstv %s62
    %v900 = vadd.f32 %v899, %v867
    %v901 = vadd.f32 %v899, %v868
    %v902 = vadd.f32 %v899, %v869
    %v903 = vadd.f32 %v899, %v870
    %v904 = vadd.f32 %v899, %v871
    %v905 = vadd.f32 %v899, %v872
    %v906 = vadd.f32 %v899, %v873
    %v907 = vadd.f32 %v899, %v874
    %v908 = vadd.f32 %v899, %v875
    %v909 = vadd.f32 %v899, %v876
    %v910 = vadd.f32 %v899, %v877
    %v911 = vadd.f32 %v899, %v878
    %v912 = vadd.f32 %v899, %v879
    %v913 = vadd.f32 %v899, %v880
    %v914 = vadd.f32 %v899, %v881
    %v915 = vadd.f32 %v899, %v882
    %v916 = vadd.f32 %v899, %v883
    %v917 = vadd.f32 %v899, %v884
    %v918 = vadd.f32 %v899, %v885
    %v919 = vadd.f32 %v899, %v886
    %v920 = vadd.f32 %v899, %v887
    %v921 = vadd.f32 %v899, %v888
    %v922 = vadd.f32 %v899, %v889
    %v923 = vadd.f32 %v899, %v890
    %v924 = vadd.f32 %v899, %v891
    %v925 = vadd.f32 %v899, %v892
    %v926 = vadd.f32 %v899, %v893
    %v927 = vadd.f32 %v899, %v894
    %v928 = vadd.f32 %v899, %v895
    %v929 = vadd.f32 %v899, %v896
    %v930 = vadd.f32 %v899, %v897
    %v931 = vadd.f32 %v899, %v898
    %v932 = vmul.f32 %v900, 1.442695
    %v933 = vpow.pop %v932
    %v934 = vmul.f32 %v901, 1.442695
    %v935 = vpow.pop %v934
    %v936 = vmul.f32 %v902, 1.442695
    %v937 = vpow.pop %v936
    %v938 = vmul.f32 %v903, 1.442695
    %v939 = vpow.pop %v938
    %v940 = vmul.f32 %v904, 1.442695
    %v941 = vpow.pop %v940
    %v942 = vmul.f32 %v905, 1.442695
    %v943 = vpow.pop %v942
    %v944 = vmul.f32 %v906, 1.442695
    %v945 = vpow.pop %v944
    %v946 = vmul.f32 %v907, 1.442695
    %v947 = vpow.pop %v946
    %v948 = vmul.f32 %v908, 1.442695
    %v949 = vpow.pop %v948
    %v950 = vmul.f32 %v909, 1.442695
    %v951 = vpow.pop %v950
    %v952 = vmul.f32 %v910, 1.442695
    %v953 = vpow.pop %v952
    %v954 = vmul.f32 %v911, 1.442695
    %v955 = vpow.pop %v954
    %v956 = vmul.f32 %v912, 1.442695
    %v957 = vpow.pop %v956
    %v958 = vmul.f32 %v913, 1.442695
    %v959 = vpow.pop %v958
    %v960 = vmul.f32 %v914, 1.442695
    %v961 = vpow.pop %v960
    %v962 = vmul.f32 %v915, 1.442695
    %v963 = vpow.pop %v962
    %v964 = vmul.f32 %v916, 1.442695
    %v965 = vpow.pop %v964
    %v966 = vmul.f32 %v917, 1.442695
    %v967 = vpow.pop %v966
    %v968 = vmul.f32 %v918, 1.442695
    %v969 = vpow.pop %v968
    %v970 = vmul.f32 %v919, 1.442695
    %v971 = vpow.pop %v970
    %v972 = vmul.f32 %v920, 1.442695
    %v973 = vpow.pop %v972
    %v974 = vmul.f32 %v921, 1.442695
    %v975 = vpow.pop %v974
    %v976 = vmul.f32 %v922, 1.442695
    %v977 = vpow.pop %v976
    %v978 = vmul.f32 %v923, 1.442695
    %v979 = vpow.pop %v978
    %v980 = vmul.f32 %v924, 1.442695
    %v981 = vpow.pop %v980
    %v982 = vmul.f32 %v925, 1.442695
    %v983 = vpow.pop %v982
    %v984 = vmul.f32 %v926, 1.442695
    %v985 = vpow.pop %v984
    %v986 = vmul.f32 %v927, 1.442695
    %v987 = vpow.pop %v986
    %v988 = vmul.f32 %v928, 1.442695
    %v989 = vpow.pop %v988
    %v990 = vmul.f32 %v929, 1.442695
    %v991 = vpow.pop %v990
    %v992 = vmul.f32 %v930, 1.442695
    %v993 = vpow.pop %v992
    %v994 = vmul.f32 %v931, 1.442695
    %v995 = vpow.pop %v994
    %v996 = vadd.f32 %v933, 1.0
    %v997 = vadd.f32 %v935, 1.0
    %v998 = vadd.f32 %v937, 1.0
    %v999 = vadd.f32 %v939, 1.0
    %v1000 = vadd.f32 %v941, 1.0
    %v1001 = vadd.f32 %v943, 1.0
    %v1002 = vadd.f32 %v945, 1.0
    %v1003 = vadd.f32 %v947, 1.0
    %v1004 = vadd.f32 %v949, 1.0
    %v1005 = vadd.f32 %v951, 1.0
    %v1006 = vadd.f32 %v953, 1.0
    %v1007 = vadd.f32 %v955, 1.0
    %v1008 = vadd.f32 %v957, 1.0
    %v1009 = vadd.f32 %v959, 1.0
    %v1010 = vadd.f32 %v961, 1.0
    %v1011 = vadd.f32 %v963, 1.0
    %v1012 = vadd.f32 %v965, 1.0
    %v1013 = vadd.f32 %v967, 1.0
    %v1014 = vadd.f32 %v969, 1.0
    %v1015 = vadd.f32 %v971, 1.0
    %v1016 = vadd.f32 %v973, 1.0
    %v1017 = vadd.f32 %v975, 1.0
    %v1018 = vadd.f32 %v977, 1.0
    %v1019 = vadd.f32 %v979, 1.0
    %v1020 = vadd.f32 %v981, 1.0
    %v1021 = vadd.f32 %v983, 1.0
    %v1022 = vadd.f32 %v985, 1.0
    %v1023 = vadd.f32 %v987, 1.0
    %v1024 = vadd.f32 %v989, 1.0
    %v1025 = vadd.f32 %v991, 1.0
    %v1026 = vadd.f32 %v993, 1.0
    %v1027 = vadd.f32 %v995, 1.0
    %v1028 = vmul.f32 %v834, %v996
    %v1029 = vmul.f32 %v835, %v997
    %v1030 = vmul.f32 %v836, %v998
    %v1031 = vmul.f32 %v837, %v999
    %v1032 = vmul.f32 %v838, %v1000
    %v1033 = vmul.f32 %v839, %v1001
    %v1034 = vmul.f32 %v840, %v1002
    %v1035 = vmul.f32 %v841, %v1003
    %v1036 = vmul.f32 %v842, %v1004
    %v1037 = vmul.f32 %v843, %v1005
    %v1038 = vmul.f32 %v844, %v1006
    %v1039 = vmul.f32 %v845, %v1007
    %v1040 = vmul.f32 %v846, %v1008
    %v1041 = vmul.f32 %v847, %v1009
    %v1042 = vmul.f32 %v848, %v1010
    %v1043 = vmul.f32 %v849, %v1011
    %v1044 = vmul.f32 %v850, %v1012
    %v1045 = vmul.f32 %v851, %v1013
    %v1046 = vmul.f32 %v852, %v1014
    %v1047 = vmul.f32 %v853, %v1015
    %v1048 = vmul.f32 %v854, %v1016
    %v1049 = vmul.f32 %v855, %v1017
    %v1050 = vmul.f32 %v856, %v1018
    %v1051 = vmul.f32 %v857, %v1019
    %v1052 = vmul.f32 %v858, %v1020
    %v1053 = vmul.f32 %v859, %v1021
    %v1054 = vmul.f32 %v860, %v1022
    %v1055 = vmul.f32 %v861, %v1023
    %v1056 = vmul.f32 %v862, %v1024
    %v1057 = vmul.f32 %v863, %v1025
    %v1058 = vmul.f32 %v864, %v1026
    %v1059 = vmul.f32 %v865, %v1027
    %v1060 = vstv %s79
    %v1061 = vmul.f32 %v91, %v1060
    %v1062 = vmul.f32 %v92, %v1060
    %v1063 = vmul.f32 %v93, %v1060
    %v1064 = vmul.f32 %v94, %v1060
    %v1065 = vmul.f32 %v95, %v1060
    %v1066 = vmul.f32 %v96, %v1060
    %v1067 = vmul.f32 %v97, %v1060
    %v1068 = vmul.f32 %v98, %v1060
    %v1069 = vmul.f32 %v99, %v1060
    %v1070 = vmul.f32 %v100, %v1060
    %v1071 = vmul.f32 %v101, %v1060
    %v1072 = vmul.f32 %v102, %v1060
    %v1073 = vmul.f32 %v103, %v1060
    %v1074 = vmul.f32 %v104, %v1060
    %v1075 = vmul.f32 %v105, %v1060
    %v1076 = vmul.f32 %v106, %v1060
    %v1077 = vmul.f32 %v107, %v1060
    %v1078 = vmul.f32 %v108, %v1060
    %v1079 = vmul.f32 %v109, %v1060
    %v1080 = vmul.f32 %v110, %v1060
    %v1081 = vmul.f32 %v111, %v1060
    %v1082 = vmul.f32 %v112, %v1060
    %v1083 = vmul.f32 %v113, %v1060
    %v1084 = vmul.f32 %v114, %v1060
    %v1085 = vmul.f32 %v115, %v1060
    %v1086 = vmul.f32 %v116, %v1060
    %v1087 = vmul.f32 %v117, %v1060
    %v1088 = vmul.f32 %v118, %v1060
    %v1089 = vmul.f32 %v119, %v1060
    %v1090 = vmul.f32 %v120, %v1060
    %v1091 = vmul.f32 %v121, %v1060
    %v1092 = vmul.f32 %v122, %v1060
    %v1093 = vstv %s63
    %v1094 = vadd.f32 %v1093, %v1061
    %v1095 = vadd.f32 %v1093, %v1062
    %v1096 = vadd.f32 %v1093, %v1063
    %v1097 = vadd.f32 %v1093, %v1064
    %v1098 = vadd.f32 %v1093, %v1065
    %v1099 = vadd.f32 %v1093, %v1066
    %v1100 = vadd.f32 %v1093, %v1067
    %v1101 = vadd.f32 %v1093, %v1068
    %v1102 = vadd.f32 %v1093, %v1069
    %v1103 = vadd.f32 %v1093, %v1070
    %v1104 = vadd.f32 %v1093, %v1071
    %v1105 = vadd.f32 %v1093, %v1072
    %v1106 = vadd.f32 %v1093, %v1073
    %v1107 = vadd.f32 %v1093, %v1074
    %v1108 = vadd.f32 %v1093, %v1075
    %v1109 = vadd.f32 %v1093, %v1076
    %v1110 = vadd.f32 %v1093, %v1077
    %v1111 = vadd.f32 %v1093, %v1078
    %v1112 = vadd.f32 %v1093, %v1079
    %v1113 = vadd.f32 %v1093, %v1080
    %v1114 = vadd.f32 %v1093, %v1081
    %v1115 = vadd.f32 %v1093, %v1082
    %v1116 = vadd.f32 %v1093, %v1083
    %v1117 = vadd.f32 %v1093, %v1084
    %v1118 = vadd.f32 %v1093, %v1085
    %v1119 = vadd.f32 %v1093, %v1086
    %v1120 = vadd.f32 %v1093, %v1087
    %v1121 = vadd.f32 %v1093, %v1088
    %v1122 = vadd.f32 %v1093, %v1089
    %v1123 = vadd.f32 %v1093, %v1090
    %v1124 = vadd.f32 %v1093, %v1091
    %v1125 = vadd.f32 %v1093, %v1092
    %v1126 = vmul.f32 %v1094, 1.442695
    %v1127 = vpow.pop %v1126
    %v1128 = vmul.f32 %v1095, 1.442695
    %v1129 = vpow.pop %v1128
    %v1130 = vmul.f32 %v1096, 1.442695
    %v1131 = vpow.pop %v1130
    %v1132 = vmul.f32 %v1097, 1.442695
    %v1133 = vpow.pop %v1132
    %v1134 = vmul.f32 %v1098, 1.442695
    %v1135 = vpow.pop %v1134
    %v1136 = vmul.f32 %v1099, 1.442695
    %v1137 = vpow.pop %v1136
    %v1138 = vmul.f32 %v1100, 1.442695
    %v1139 = vpow.pop %v1138
    %v1140 = vmul.f32 %v1101, 1.442695
    %v1141 = vpow.pop %v1140
    %v1142 = vmul.f32 %v1102, 1.442695
    %v1143 = vpow.pop %v1142
    %v1144 = vmul.f32 %v1103, 1.442695
    %v1145 = vpow.pop %v1144
    %v1146 = vmul.f32 %v1104, 1.442695
    %v1147 = vpow.pop %v1146
    %v1148 = vmul.f32 %v1105, 1.442695
    %v1149 = vpow.pop %v1148
    %v1150 = vmul.f32 %v1106, 1.442695
    %v1151 = vpow.pop %v1150
    %v1152 = vmul.f32 %v1107, 1.442695
    %v1153 = vpow.pop %v1152
    %v1154 = vmul.f32 %v1108, 1.442695
    %v1155 = vpow.pop %v1154
    %v1156 = vmul.f32 %v1109, 1.442695
    %v1157 = vpow.pop %v1156
    %v1158 = vmul.f32 %v1110, 1.442695
    %v1159 = vpow.pop %v1158
    %v1160 = vmul.f32 %v1111, 1.442695
    %v1161 = vpow.pop %v1160
    %v1162 = vmul.f32 %v1112, 1.442695
    %v1163 = vpow.pop %v1162
    %v1164 = vmul.f32 %v1113, 1.442695
    %v1165 = vpow.pop %v1164
    %v1166 = vmul.f32 %v1114, 1.442695
    %v1167 = vpow.pop %v1166
    %v1168 = vmul.f32 %v1115, 1.442695
    %v1169 = vpow.pop %v1168
    %v1170 = vmul.f32 %v1116, 1.442695
    %v1171 = vpow.pop %v1170
    %v1172 = vmul.f32 %v1117, 1.442695
    %v1173 = vpow.pop %v1172
    %v1174 = vmul.f32 %v1118, 1.442695
    %v1175 = vpow.pop %v1174
    %v1176 = vmul.f32 %v1119, 1.442695
    %v1177 = vpow.pop %v1176
    %v1178 = vmul.f32 %v1120, 1.442695
    %v1179 = vpow.pop %v1178
    %v1180 = vmul.f32 %v1121, 1.442695
    %v1181 = vpow.pop %v1180
    %v1182 = vmul.f32 %v1122, 1.442695
    %v1183 = vpow.pop %v1182
    %v1184 = vmul.f32 %v1123, 1.442695
    %v1185 = vpow.pop %v1184
    %v1186 = vmul.f32 %v1124, 1.442695
    %v1187 = vpow.pop %v1186
    %v1188 = vmul.f32 %v1125, 1.442695
    %v1189 = vpow.pop %v1188
    %v1190 = vadd.f32 %v1127, 1.0
    %v1191 = vadd.f32 %v1129, 1.0
    %v1192 = vadd.f32 %v1131, 1.0
    %v1193 = vadd.f32 %v1133, 1.0
    %v1194 = vadd.f32 %v1135, 1.0
    %v1195 = vadd.f32 %v1137, 1.0
    %v1196 = vadd.f32 %v1139, 1.0
    %v1197 = vadd.f32 %v1141, 1.0
    %v1198 = vadd.f32 %v1143, 1.0
    %v1199 = vadd.f32 %v1145, 1.0
    %v1200 = vadd.f32 %v1147, 1.0
    %v1201 = vadd.f32 %v1149, 1.0
    %v1202 = vadd.f32 %v1151, 1.0
    %v1203 = vadd.f32 %v1153, 1.0
    %v1204 = vadd.f32 %v1155, 1.0
    %v1205 = vadd.f32 %v1157, 1.0
    %v1206 = vadd.f32 %v1159, 1.0
    %v1207 = vadd.f32 %v1161, 1.0
    %v1208 = vadd.f32 %v1163, 1.0
    %v1209 = vadd.f32 %v1165, 1.0
    %v1210 = vadd.f32 %v1167, 1.0
    %v1211 = vadd.f32 %v1169, 1.0
    %v1212 = vadd.f32 %v1171, 1.0
    %v1213 = vadd.f32 %v1173, 1.0
    %v1214 = vadd.f32 %v1175, 1.0
    %v1215 = vadd.f32 %v1177, 1.0
    %v1216 = vadd.f32 %v1179, 1.0
    %v1217 = vadd.f32 %v1181, 1.0
    %v1218 = vadd.f32 %v1183, 1.0
    %v1219 = vadd.f32 %v1185, 1.0
    %v1220 = vadd.f32 %v1187, 1.0
    %v1221 = vadd.f32 %v1189, 1.0
    %v1222 = vmul.f32 %v1028, %v1190
    %v1223 = vmul.f32 %v1029, %v1191
    %v1224 = vmul.f32 %v1030, %v1192
    %v1225 = vmul.f32 %v1031, %v1193
    %v1226 = vmul.f32 %v1032, %v1194
    %v1227 = vmul.f32 %v1033, %v1195
    %v1228 = vmul.f32 %v1034, %v1196
    %v1229 = vmul.f32 %v1035, %v1197
    %v1230 = vmul.f32 %v1036, %v1198
    %v1231 = vmul.f32 %v1037, %v1199
    %v1232 = vmul.f32 %v1038, %v1200
    %v1233 = vmul.f32 %v1039, %v1201
    %v1234 = vmul.f32 %v1040, %v1202
    %v1235 = vmul.f32 %v1041, %v1203
    %v1236 = vmul.f32 %v1042, %v1204
    %v1237 = vmul.f32 %v1043, %v1205
    %v1238 = vmul.f32 %v1044, %v1206
    %v1239 = vmul.f32 %v1045, %v1207
    %v1240 = vmul.f32 %v1046, %v1208
    %v1241 = vmul.f32 %v1047, %v1209
    %v1242 = vmul.f32 %v1048, %v1210
    %v1243 = vmul.f32 %v1049, %v1211
    %v1244 = vmul.f32 %v1050, %v1212
    %v1245 = vmul.f32 %v1051, %v1213
    %v1246 = vmul.f32 %v1052, %v1214
    %v1247 = vmul.f32 %v1053, %v1215
    %v1248 = vmul.f32 %v1054, %v1216
    %v1249 = vmul.f32 %v1055, %v1217
    %v1250 = vmul.f32 %v1056, %v1218
    %v1251 = vmul.f32 %v1057, %v1219
    %v1252 = vmul.f32 %v1058, %v1220
    %v1253 = vmul.f32 %v1059, %v1221
    %v1254 = vstv %s80
    %v1255 = vmul.f32 %v91, %v1254
    %v1256 = vmul.f32 %v92, %v1254
    %v1257 = vmul.f32 %v93, %v1254
    %v1258 = vmul.f32 %v94, %v1254
    %v1259 = vmul.f32 %v95, %v1254
    %v1260 = vmul.f32 %v96, %v1254
    %v1261 = vmul.f32 %v97, %v1254
    %v1262 = vmul.f32 %v98, %v1254
    %v1263 = vmul.f32 %v99, %v1254
    %v1264 = vmul.f32 %v100, %v1254
    %v1265 = vmul.f32 %v101, %v1254
    %v1266 = vmul.f32 %v102, %v1254
    %v1267 = vmul.f32 %v103, %v1254
    %v1268 = vmul.f32 %v104, %v1254
    %v1269 = vmul.f32 %v105, %v1254
    %v1270 = vmul.f32 %v106, %v1254
    %v1271 = vmul.f32 %v107, %v1254
    %v1272 = vmul.f32 %v108, %v1254
    %v1273 = vmul.f32 %v109, %v1254
    %v1274 = vmul.f32 %v110, %v1254
    %v1275 = vmul.f32 %v111, %v1254
    %v1276 = vmul.f32 %v112, %v1254
    %v1277 = vmul.f32 %v113, %v1254
    %v1278 = vmul.f32 %v114, %v1254
    %v1279 = vmul.f32 %v115, %v1254
    %v1280 = vmul.f32 %v116, %v1254
    %v1281 = vmul.f32 %v117, %v1254
    %v1282 = vmul.f32 %v118, %v1254
    %v1283 = vmul.f32 %v119, %v1254
    %v1284 = vmul.f32 %v120, %v1254
    %v1285 = vmul.f32 %v121, %v1254
    %v1286 = vmul.f32 %v122, %v1254
    %v1287 = vstv %s64
    %v1288 = vadd.f32 %v1287, %v1255
    %v1289 = vadd.f32 %v1287, %v1256
    %v1290 = vadd.f32 %v1287, %v1257
    %v1291 = vadd.f32 %v1287, %v1258
    %v1292 = vadd.f32 %v1287, %v1259
    %v1293 = vadd.f32 %v1287, %v1260
    %v1294 = vadd.f32 %v1287, %v1261
    %v1295 = vadd.f32 %v1287, %v1262
    %v1296 = vadd.f32 %v1287, %v1263
    %v1297 = vadd.f32 %v1287, %v1264
    %v1298 = vadd.f32 %v1287, %v1265
    %v1299 = vadd.f32 %v1287, %v1266
    %v1300 = vadd.f32 %v1287, %v1267
    %v1301 = vadd.f32 %v1287, %v1268
    %v1302 = vadd.f32 %v1287, %v1269
    %v1303 = vadd.f32 %v1287, %v1270
    %v1304 = vadd.f32 %v1287, %v1271
    %v1305 = vadd.f32 %v1287, %v1272
    %v1306 = vadd.f32 %v1287, %v1273
    %v1307 = vadd.f32 %v1287, %v1274
    %v1308 = vadd.f32 %v1287, %v1275
    %v1309 = vadd.f32 %v1287, %v1276
    %v1310 = vadd.f32 %v1287, %v1277
    %v1311 = vadd.f32 %v1287, %v1278
    %v1312 = vadd.f32 %v1287, %v1279
    %v1313 = vadd.f32 %v1287, %v1280
    %v1314 = vadd.f32 %v1287, %v1281
    %v1315 = vadd.f32 %v1287, %v1282
    %v1316 = vadd.f32 %v1287, %v1283
    %v1317 = vadd.f32 %v1287, %v1284
    %v1318 = vadd.f32 %v1287, %v1285
    %v1319 = vadd.f32 %v1287, %v1286
    %v1320 = vmul.f32 %v1288, 1.442695
    %v1321 = vpow.pop %v1320
    %v1322 = vmul.f32 %v1289, 1.442695
    %v1323 = vpow.pop %v1322
    %v1324 = vmul.f32 %v1290, 1.442695
    %v1325 = vpow.pop %v1324
    %v1326 = vmul.f32 %v1291, 1.442695
    %v1327 = vpow.pop %v1326
    %v1328 = vmul.f32 %v1292, 1.442695
    %v1329 = vpow.pop %v1328
    %v1330 = vmul.f32 %v1293, 1.442695
    %v1331 = vpow.pop %v1330
    %v1332 = vmul.f32 %v1294, 1.442695
    %v1333 = vpow.pop %v1332
    %v1334 = vmul.f32 %v1295, 1.442695
    %v1335 = vpow.pop %v1334
    %v1336 = vmul.f32 %v1296, 1.442695
    %v1337 = vpow.pop %v1336
    %v1338 = vmul.f32 %v1297, 1.442695
    %v1339 = vpow.pop %v1338
    %v1340 = vmul.f32 %v1298, 1.442695
    %v1341 = vpow.pop %v1340
    %v1342 = vmul.f32 %v1299, 1.442695
    %v1343 = vpow.pop %v1342
    %v1344 = vmul.f32 %v1300, 1.442695
    %v1345 = vpow.pop %v1344
    %v1346 = vmul.f32 %v1301, 1.442695
    %v1347 = vpow.pop %v1346
    %v1348 = vmul.f32 %v1302, 1.442695
    %v1349 = vpow.pop %v1348
    %v1350 = vmul.f32 %v1303, 1.442695
    %v1351 = vpow.pop %v1350
    %v1352 = vmul.f32 %v1304, 1.442695
    %v1353 = vpow.pop %v1352
    %v1354 = vmul.f32 %v1305, 1.442695
    %v1355 = vpow.pop %v1354
    %v1356 = vmul.f32 %v1306, 1.442695
    %v1357 = vpow.pop %v1356
    %v1358 = vmul.f32 %v1307, 1.442695
    %v1359 = vpow.pop %v1358
    %v1360 = vmul.f32 %v1308, 1.442695
    %v1361 = vpow.pop %v1360
    %v1362 = vmul.f32 %v1309, 1.442695
    %v1363 = vpow.pop %v1362
    %v1364 = vmul.f32 %v1310, 1.442695
    %v1365 = vpow.pop %v1364
    %v1366 = vmul.f32 %v1311, 1.442695
    %v1367 = vpow.pop %v1366
    %v1368 = vmul.f32 %v1312, 1.442695
    %v1369 = vpow.pop %v1368
    %v1370 = vmul.f32 %v1313, 1.442695
    %v1371 = vpow.pop %v1370
    %v1372 = vmul.f32 %v1314, 1.442695
    %v1373 = vpow.pop %v1372
    %v1374 = vmul.f32 %v1315, 1.442695
    %v1375 = vpow.pop %v1374
    %v1376 = vmul.f32 %v1316, 1.442695
    %v1377 = vpow.pop %v1376
    %v1378 = vmul.f32 %v1317, 1.442695
    %v1379 = vpow.pop %v1378
    %v1380 = vmul.f32 %v1318, 1.442695
    %v1381 = vpow.pop %v1380
    %v1382 = vmul.f32 %v1319, 1.442695
    %v1383 = vpow.pop %v1382
    %v1384 = vadd.f32 %v1321, 1.0
    %v1385 = vadd.f32 %v1323, 1.0
    %v1386 = vadd.f32 %v1325, 1.0
    %v1387 = vadd.f32 %v1327, 1.0
    %v1388 = vadd.f32 %v1329, 1.0
    %v1389 = vadd.f32 %v1331, 1.0
    %v1390 = vadd.f32 %v1333, 1.0
    %v1391 = vadd.f32 %v1335, 1.0
    %v1392 = vadd.f32 %v1337, 1.0
    %v1393 = vadd.f32 %v1339, 1.0
    %v1394 = vadd.f32 %v1341, 1.0
    %v1395 = vadd.f32 %v1343, 1.0
    %v1396 = vadd.f32 %v1345, 1.0
    %v1397 = vadd.f32 %v1347, 1.0
    %v1398 = vadd.f32 %v1349, 1.0
    %v1399 = vadd.f32 %v1351, 1.0
    %v1400 = vadd.f32 %v1353, 1.0
    %v1401 = vadd.f32 %v1355, 1.0
    %v1402 = vadd.f32 %v1357, 1.0
    %v1403 = vadd.f32 %v1359, 1.0
    %v1404 = vadd.f32 %v1361, 1.0
    %v1405 = vadd.f32 %v1363, 1.0
    %v1406 = vadd.f32 %v1365, 1.0
    %v1407 = vadd.f32 %v1367, 1.0
    %v1408 = vadd.f32 %v1369, 1.0
    %v1409 = vadd.f32 %v1371, 1.0
    %v1410 = vadd.f32 %v1373, 1.0
    %v1411 = vadd.f32 %v1375, 1.0
    %v1412 = vadd.f32 %v1377, 1.0
    %v1413 = vadd.f32 %v1379, 1.0
    %v1414 = vadd.f32 %v1381, 1.0
    %v1415 = vadd.f32 %v1383, 1.0
    %v1416 = vmul.f32 %v1222, %v1384
    %v1417 = vmul.f32 %v1223, %v1385
    %v1418 = vmul.f32 %v1224, %v1386
    %v1419 = vmul.f32 %v1225, %v1387
    %v1420 = vmul.f32 %v1226, %v1388
    %v1421 = vmul.f32 %v1227, %v1389
    %v1422 = vmul.f32 %v1228, %v1390
    %v1423 = vmul.f32 %v1229, %v1391
    %v1424 = vmul.f32 %v1230, %v1392
    %v1425 = vmul.f32 %v1231, %v1393
    %v1426 = vmul.f32 %v1232, %v1394
    %v1427 = vmul.f32 %v1233, %v1395
    %v1428 = vmul.f32 %v1234, %v1396
    %v1429 = vmul.f32 %v1235, %v1397
    %v1430 = vmul.f32 %v1236, %v1398
    %v1431 = vmul.f32 %v1237, %v1399
    %v1432 = vmul.f32 %v1238, %v1400
    %v1433 = vmul.f32 %v1239, %v1401
    %v1434 = vmul.f32 %v1240, %v1402
    %v1435 = vmul.f32 %v1241, %v1403
    %v1436 = vmul.f32 %v1242, %v1404
    %v1437 = vmul.f32 %v1243, %v1405
    %v1438 = vmul.f32 %v1244, %v1406
    %v1439 = vmul.f32 %v1245, %v1407
    %v1440 = vmul.f32 %v1246, %v1408
    %v1441 = vmul.f32 %v1247, %v1409
    %v1442 = vmul.f32 %v1248, %v1410
    %v1443 = vmul.f32 %v1249, %v1411
    %v1444 = vmul.f32 %v1250, %v1412
    %v1445 = vmul.f32 %v1251, %v1413
    %v1446 = vmul.f32 %v1252, %v1414
    %v1447 = vmul.f32 %v1253, %v1415
    %v1448 = vstv %s81
    %v1449 = vmul.f32 %v91, %v1448
    %v1450 = vmul.f32 %v92, %v1448
    %v1451 = vmul.f32 %v93, %v1448
    %v1452 = vmul.f32 %v94, %v1448
    %v1453 = vmul.f32 %v95, %v1448
    %v1454 = vmul.f32 %v96, %v1448
    %v1455 = vmul.f32 %v97, %v1448
    %v1456 = vmul.f32 %v98, %v1448
    %v1457 = vmul.f32 %v99, %v1448
    %v1458 = vmul.f32 %v100, %v1448
    %v1459 = vmul.f32 %v101, %v1448
    %v1460 = vmul.f32 %v102, %v1448
    %v1461 = vmul.f32 %v103, %v1448
    %v1462 = vmul.f32 %v104, %v1448
    %v1463 = vmul.f32 %v105, %v1448
    %v1464 = vmul.f32 %v106, %v1448
    %v1465 = vmul.f32 %v107, %v1448
    %v1466 = vmul.f32 %v108, %v1448
    %v1467 = vmul.f32 %v109, %v1448
    %v1468 = vmul.f32 %v110, %v1448
    %v1469 = vmul.f32 %v111, %v1448
    %v1470 = vmul.f32 %v112, %v1448
    %v1471 = vmul.f32 %v113, %v1448
    %v1472 = vmul.f32 %v114, %v1448
    %v1473 = vmul.f32 %v115, %v1448
    %v1474 = vmul.f32 %v116, %v1448
    %v1475 = vmul.f32 %v117, %v1448
    %v1476 = vmul.f32 %v118, %v1448
    %v1477 = vmul.f32 %v119, %v1448
    %v1478 = vmul.f32 %v120, %v1448
    %v1479 = vmul.f32 %v121, %v1448
    %v1480 = vmul.f32 %v122, %v1448
    %v1481 = vstv %s65
    %v1482 = vadd.f32 %v1481, %v1449
    %v1483 = vadd.f32 %v1481, %v1450
    %v1484 = vadd.f32 %v1481, %v1451
    %v1485 = vadd.f32 %v1481, %v1452
    %v1486 = vadd.f32 %v1481, %v1453
    %v1487 = vadd.f32 %v1481, %v1454
    %v1488 = vadd.f32 %v1481, %v1455
    %v1489 = vadd.f32 %v1481, %v1456
    %v1490 = vadd.f32 %v1481, %v1457
    %v1491 = vadd.f32 %v1481, %v1458
    %v1492 = vadd.f32 %v1481, %v1459
    %v1493 = vadd.f32 %v1481, %v1460
    %v1494 = vadd.f32 %v1481, %v1461
    %v1495 = vadd.f32 %v1481, %v1462
    %v1496 = vadd.f32 %v1481, %v1463
    %v1497 = vadd.f32 %v1481, %v1464
    %v1498 = vadd.f32 %v1481, %v1465
    %v1499 = vadd.f32 %v1481, %v1466
    %v1500 = vadd.f32 %v1481, %v1467
    %v1501 = vadd.f32 %v1481, %v1468
    %v1502 = vadd.f32 %v1481, %v1469
    %v1503 = vadd.f32 %v1481, %v1470
    %v1504 = vadd.f32 %v1481, %v1471
    %v1505 = vadd.f32 %v1481, %v1472
    %v1506 = vadd.f32 %v1481, %v1473
    %v1507 = vadd.f32 %v1481, %v1474
    %v1508 = vadd.f32 %v1481, %v1475
    %v1509 = vadd.f32 %v1481, %v1476
    %v1510 = vadd.f32 %v1481, %v1477
    %v1511 = vadd.f32 %v1481, %v1478
    %v1512 = vadd.f32 %v1481, %v1479
    %v1513 = vadd.f32 %v1481, %v1480
    %v1514 = vmul.f32 %v1482, 1.442695
    %v1515 = vpow.pop %v1514
    %v1516 = vmul.f32 %v1483, 1.442695
    %v1517 = vpow.pop %v1516
    %v1518 = vmul.f32 %v1484, 1.442695
    %v1519 = vpow.pop %v1518
    %v1520 = vmul.f32 %v1485, 1.442695
    %v1521 = vpow.pop %v1520
    %v1522 = vmul.f32 %v1486, 1.442695
    %v1523 = vpow.pop %v1522
    %v1524 = vmul.f32 %v1487, 1.442695
    %v1525 = vpow.pop %v1524
    %v1526 = vmul.f32 %v1488, 1.442695
    %v1527 = vpow.pop %v1526
    %v1528 = vmul.f32 %v1489, 1.442695
    %v1529 = vpow.pop %v1528
    %v1530 = vmul.f32 %v1490, 1.442695
    %v1531 = vpow.pop %v1530
    %v1532 = vmul.f32 %v1491, 1.442695
    %v1533 = vpow.pop %v1532
    %v1534 = vmul.f32 %v1492, 1.442695
    %v1535 = vpow.pop %v1534
    %v1536 = vmul.f32 %v1493, 1.442695
    %v1537 = vpow.pop %v1536
    %v1538 = vmul.f32 %v1494, 1.442695
    %v1539 = vpow.pop %v1538
    %v1540 = vmul.f32 %v1495, 1.442695
    %v1541 = vpow.pop %v1540
    %v1542 = vmul.f32 %v1496, 1.442695
    %v1543 = vpow.pop %v1542
    %v1544 = vmul.f32 %v1497, 1.442695
    %v1545 = vpow.pop %v1544
    %v1546 = vmul.f32 %v1498, 1.442695
    %v1547 = vpow.pop %v1546
    %v1548 = vmul.f32 %v1499, 1.442695
    %v1549 = vpow.pop %v1548
    %v1550 = vmul.f32 %v1500, 1.442695
    %v1551 = vpow.pop %v1550
    %v1552 = vmul.f32 %v1501, 1.442695
    %v1553 = vpow.pop %v1552
    %v1554 = vmul.f32 %v1502, 1.442695
    %v1555 = vpow.pop %v1554
    %v1556 = vmul.f32 %v1503, 1.442695
    %v1557 = vpow.pop %v1556
    %v1558 = vmul.f32 %v1504, 1.442695
    %v1559 = vpow.pop %v1558
    %v1560 = vmul.f32 %v1505, 1.442695
    %v1561 = vpow.pop %v1560
    %v1562 = vmul.f32 %v1506, 1.442695
    %v1563 = vpow.pop %v1562
    %v1564 = vmul.f32 %v1507, 1.442695
    %v1565 = vpow.pop %v1564
    %v1566 = vmul.f32 %v1508, 1.442695
    %v1567 = vpow.pop %v1566
    %v1568 = vmul.f32 %v1509, 1.442695
    %v1569 = vpow.pop %v1568
    %v1570 = vmul.f32 %v1510, 1.442695
    %v1571 = vpow.pop %v1570
    %v1572 = vmul.f32 %v1511, 1.442695
    %v1573 = vpow.pop %v1572
    %v1574 = vmul.f32 %v1512, 1.442695
    %v1575 = vpow.pop %v1574
    %v1576 = vmul.f32 %v1513, 1.442695
    %v1577 = vpow.pop %v1576
    %v1578 = vadd.f32 %v1515, 1.0
    %v1579 = vadd.f32 %v1517, 1.0
    %v1580 = vadd.f32 %v1519, 1.0
    %v1581 = vadd.f32 %v1521, 1.0
    %v1582 = vadd.f32 %v1523, 1.0
    %v1583 = vadd.f32 %v1525, 1.0
    %v1584 = vadd.f32 %v1527, 1.0
    %v1585 = vadd.f32 %v1529, 1.0
    %v1586 = vadd.f32 %v1531, 1.0
    %v1587 = vadd.f32 %v1533, 1.0
    %v1588 = vadd.f32 %v1535, 1.0
    %v1589 = vadd.f32 %v1537, 1.0
    %v1590 = vadd.f32 %v1539, 1.0
    %v1591 = vadd.f32 %v1541, 1.0
    %v1592 = vadd.f32 %v1543, 1.0
    %v1593 = vadd.f32 %v1545, 1.0
    %v1594 = vadd.f32 %v1547, 1.0
    %v1595 = vadd.f32 %v1549, 1.0
    %v1596 = vadd.f32 %v1551, 1.0
    %v1597 = vadd.f32 %v1553, 1.0
    %v1598 = vadd.f32 %v1555, 1.0
    %v1599 = vadd.f32 %v1557, 1.0
    %v1600 = vadd.f32 %v1559, 1.0
    %v1601 = vadd.f32 %v1561, 1.0
    %v1602 = vadd.f32 %v1563, 1.0
    %v1603 = vadd.f32 %v1565, 1.0
    %v1604 = vadd.f32 %v1567, 1.0
    %v1605 = vadd.f32 %v1569, 1.0
    %v1606 = vadd.f32 %v1571, 1.0
    %v1607 = vadd.f32 %v1573, 1.0
    %v1608 = vadd.f32 %v1575, 1.0
    %v1609 = vadd.f32 %v1577, 1.0
    %v1610 = vmul.f32 %v1416, %v1578
    %v1611 = vmul.f32 %v1417, %v1579
    %v1612 = vmul.f32 %v1418, %v1580
    %v1613 = vmul.f32 %v1419, %v1581
    %v1614 = vmul.f32 %v1420, %v1582
    %v1615 = vmul.f32 %v1421, %v1583
    %v1616 = vmul.f32 %v1422, %v1584
    %v1617 = vmul.f32 %v1423, %v1585
    %v1618 = vmul.f32 %v1424, %v1586
    %v1619 = vmul.f32 %v1425, %v1587
    %v1620 = vmul.f32 %v1426, %v1588
    %v1621 = vmul.f32 %v1427, %v1589
    %v1622 = vmul.f32 %v1428, %v1590
    %v1623 = vmul.f32 %v1429, %v1591
    %v1624 = vmul.f32 %v1430, %v1592
    %v1625 = vmul.f32 %v1431, %v1593
    %v1626 = vmul.f32 %v1432, %v1594
    %v1627 = vmul.f32 %v1433, %v1595
    %v1628 = vmul.f32 %v1434, %v1596
    %v1629 = vmul.f32 %v1435, %v1597
    %v1630 = vmul.f32 %v1436, %v1598
    %v1631 = vmul.f32 %v1437, %v1599
    %v1632 = vmul.f32 %v1438, %v1600
    %v1633 = vmul.f32 %v1439, %v1601
    %v1634 = vmul.f32 %v1440, %v1602
    %v1635 = vmul.f32 %v1441, %v1603
    %v1636 = vmul.f32 %v1442, %v1604
    %v1637 = vmul.f32 %v1443, %v1605
    %v1638 = vmul.f32 %v1444, %v1606
    %v1639 = vmul.f32 %v1445, %v1607
    %v1640 = vmul.f32 %v1446, %v1608
    %v1641 = vmul.f32 %v1447, %v1609
    %v1642 = vstv %s82
    %v1643 = vmul.f32 %v91, %v1642
    %v1644 = vmul.f32 %v92, %v1642
    %v1645 = vmul.f32 %v93, %v1642
    %v1646 = vmul.f32 %v94, %v1642
    %v1647 = vmul.f32 %v95, %v1642
    %v1648 = vmul.f32 %v96, %v1642
    %v1649 = vmul.f32 %v97, %v1642
    %v1650 = vmul.f32 %v98, %v1642
    %v1651 = vmul.f32 %v99, %v1642
    %v1652 = vmul.f32 %v100, %v1642
    %v1653 = vmul.f32 %v101, %v1642
    %v1654 = vmul.f32 %v102, %v1642
    %v1655 = vmul.f32 %v103, %v1642
    %v1656 = vmul.f32 %v104, %v1642
    %v1657 = vmul.f32 %v105, %v1642
    %v1658 = vmul.f32 %v106, %v1642
    %v1659 = vmul.f32 %v107, %v1642
    %v1660 = vmul.f32 %v108, %v1642
    %v1661 = vmul.f32 %v109, %v1642
    %v1662 = vmul.f32 %v110, %v1642
    %v1663 = vmul.f32 %v111, %v1642
    %v1664 = vmul.f32 %v112, %v1642
    %v1665 = vmul.f32 %v113, %v1642
    %v1666 = vmul.f32 %v114, %v1642
    %v1667 = vmul.f32 %v115, %v1642
    %v1668 = vmul.f32 %v116, %v1642
    %v1669 = vmul.f32 %v117, %v1642
    %v1670 = vmul.f32 %v118, %v1642
    %v1671 = vmul.f32 %v119, %v1642
    %v1672 = vmul.f32 %v120, %v1642
    %v1673 = vmul.f32 %v121, %v1642
    %v1674 = vmul.f32 %v122, %v1642
    %v1675 = vstv %s66
    %v1676 = vadd.f32 %v1675, %v1643
    %v1677 = vadd.f32 %v1675, %v1644
    %v1678 = vadd.f32 %v1675, %v1645
    %v1679 = vadd.f32 %v1675, %v1646
    %v1680 = vadd.f32 %v1675, %v1647
    %v1681 = vadd.f32 %v1675, %v1648
    %v1682 = vadd.f32 %v1675, %v1649
    %v1683 = vadd.f32 %v1675, %v1650
    %v1684 = vadd.f32 %v1675, %v1651
    %v1685 = vadd.f32 %v1675, %v1652
    %v1686 = vadd.f32 %v1675, %v1653
    %v1687 = vadd.f32 %v1675, %v1654
    %v1688 = vadd.f32 %v1675, %v1655
    %v1689 = vadd.f32 %v1675, %v1656
    %v1690 = vadd.f32 %v1675, %v1657
    %v1691 = vadd.f32 %v1675, %v1658
    %v1692 = vadd.f32 %v1675, %v1659
    %v1693 = vadd.f32 %v1675, %v1660
    %v1694 = vadd.f32 %v1675, %v1661
    %v1695 = vadd.f32 %v1675, %v1662
    %v1696 = vadd.f32 %v1675, %v1663
    %v1697 = vadd.f32 %v1675, %v1664
    %v1698 = vadd.f32 %v1675, %v1665
    %v1699 = vadd.f32 %v1675, %v1666
    %v1700 = vadd.f32 %v1675, %v1667
    %v1701 = vadd.f32 %v1675, %v1668
    %v1702 = vadd.f32 %v1675, %v1669
    %v1703 = vadd.f32 %v1675, %v1670
    %v1704 = vadd.f32 %v1675, %v1671
    %v1705 = vadd.f32 %v1675, %v1672
    %v1706 = vadd.f32 %v1675, %v1673
    %v1707 = vadd.f32 %v1675, %v1674
    %v1708 = vmul.f32 %v1676, 1.442695
    %v1709 = vpow.pop %v1708
    %v1710 = vmul.f32 %v1677, 1.442695
    %v1711 = vpow.pop %v1710
    %v1712 = vmul.f32 %v1678, 1.442695
    %v1713 = vpow.pop %v1712
    %v1714 = vmul.f32 %v1679, 1.442695
    %v1715 = vpow.pop %v1714
    %v1716 = vmul.f32 %v1680, 1.442695
    %v1717 = vpow.pop %v1716
    %v1718 = vmul.f32 %v1681, 1.442695
    %v1719 = vpow.pop %v1718
    %v1720 = vmul.f32 %v1682, 1.442695
    %v1721 = vpow.pop %v1720
    %v1722 = vmul.f32 %v1683, 1.442695
    %v1723 = vpow.pop %v1722
    %v1724 = vmul.f32 %v1684, 1.442695
    %v1725 = vpow.pop %v1724
    %v1726 = vmul.f32 %v1685, 1.442695
    %v1727 = vpow.pop %v1726
    %v1728 = vmul.f32 %v1686, 1.442695
    %v1729 = vpow.pop %v1728
    %v1730 = vmul.f32 %v1687, 1.442695
    %v1731 = vpow.pop %v1730
    %v1732 = vmul.f32 %v1688, 1.442695
    %v1733 = vpow.pop %v1732
    %v1734 = vmul.f32 %v1689, 1.442695
    %v1735 = vpow.pop %v1734
    %v1736 = vmul.f32 %v1690, 1.442695
    %v1737 = vpow.pop %v1736
    %v1738 = vmul.f32 %v1691, 1.442695
    %v1739 = vpow.pop %v1738
    %v1740 = vmul.f32 %v1692, 1.442695
    %v1741 = vpow.pop %v1740
    %v1742 = vmul.f32 %v1693, 1.442695
    %v1743 = vpow.pop %v1742
    %v1744 = vmul.f32 %v1694, 1.442695
    %v1745 = vpow.pop %v1744
    %v1746 = vmul.f32 %v1695, 1.442695
    %v1747 = vpow.pop %v1746
    %v1748 = vmul.f32 %v1696, 1.442695
    %v1749 = vpow.pop %v1748
    %v1750 = vmul.f32 %v1697, 1.442695
    %v1751 = vpow.pop %v1750
    %v1752 = vmul.f32 %v1698, 1.442695
    %v1753 = vpow.pop %v1752
    %v1754 = vmul.f32 %v1699, 1.442695
    %v1755 = vpow.pop %v1754
    %v1756 = vmul.f32 %v1700, 1.442695
    %v1757 = vpow.pop %v1756
    %v1758 = vmul.f32 %v1701, 1.442695
    %v1759 = vpow.pop %v1758
    %v1760 = vmul.f32 %v1702, 1.442695
    %v1761 = vpow.pop %v1760
    %v1762 = vmul.f32 %v1703, 1.442695
    %v1763 = vpow.pop %v1762
    %v1764 = vmul.f32 %v1704, 1.442695
    %v1765 = vpow.pop %v1764
    %v1766 = vmul.f32 %v1705, 1.442695
    %v1767 = vpow.pop %v1766
    %v1768 = vmul.f32 %v1706, 1.442695
    %v1769 = vpow.pop %v1768
    %v1770 = vmul.f32 %v1707, 1.442695
    %v1771 = vpow.pop %v1770
    %v1772 = vadd.f32 %v1709, 1.0
    %v1773 = vadd.f32 %v1711, 1.0
    %v1774 = vadd.f32 %v1713, 1.0
    %v1775 = vadd.f32 %v1715, 1.0
    %v1776 = vadd.f32 %v1717, 1.0
    %v1777 = vadd.f32 %v1719, 1.0
    %v1778 = vadd.f32 %v1721, 1.0
    %v1779 = vadd.f32 %v1723, 1.0
    %v1780 = vadd.f32 %v1725, 1.0
    %v1781 = vadd.f32 %v1727, 1.0
    %v1782 = vadd.f32 %v1729, 1.0
    %v1783 = vadd.f32 %v1731, 1.0
    %v1784 = vadd.f32 %v1733, 1.0
    %v1785 = vadd.f32 %v1735, 1.0
    %v1786 = vadd.f32 %v1737, 1.0
    %v1787 = vadd.f32 %v1739, 1.0
    %v1788 = vadd.f32 %v1741, 1.0
    %v1789 = vadd.f32 %v1743, 1.0
    %v1790 = vadd.f32 %v1745, 1.0
    %v1791 = vadd.f32 %v1747, 1.0
    %v1792 = vadd.f32 %v1749, 1.0
    %v1793 = vadd.f32 %v1751, 1.0
    %v1794 = vadd.f32 %v1753, 1.0
    %v1795 = vadd.f32 %v1755, 1.0
    %v1796 = vadd.f32 %v1757, 1.0
    %v1797 = vadd.f32 %v1759, 1.0
    %v1798 = vadd.f32 %v1761, 1.0
    %v1799 = vadd.f32 %v1763, 1.0
    %v1800 = vadd.f32 %v1765, 1.0
    %v1801 = vadd.f32 %v1767, 1.0
    %v1802 = vadd.f32 %v1769, 1.0
    %v1803 = vadd.f32 %v1771, 1.0
    %v1804 = vmul.f32 %v1610, %v1772
    %v1805 = vmul.f32 %v1611, %v1773
    %v1806 = vmul.f32 %v1612, %v1774
    %v1807 = vmul.f32 %v1613, %v1775
    %v1808 = vmul.f32 %v1614, %v1776
    %v1809 = vmul.f32 %v1615, %v1777
    %v1810 = vmul.f32 %v1616, %v1778
    %v1811 = vmul.f32 %v1617, %v1779
    %v1812 = vmul.f32 %v1618, %v1780
    %v1813 = vmul.f32 %v1619, %v1781
    %v1814 = vmul.f32 %v1620, %v1782
    %v1815 = vmul.f32 %v1621, %v1783
    %v1816 = vmul.f32 %v1622, %v1784
    %v1817 = vmul.f32 %v1623, %v1785
    %v1818 = vmul.f32 %v1624, %v1786
    %v1819 = vmul.f32 %v1625, %v1787
    %v1820 = vmul.f32 %v1626, %v1788
    %v1821 = vmul.f32 %v1627, %v1789
    %v1822 = vmul.f32 %v1628, %v1790
    %v1823 = vmul.f32 %v1629, %v1791
    %v1824 = vmul.f32 %v1630, %v1792
    %v1825 = vmul.f32 %v1631, %v1793
    %v1826 = vmul.f32 %v1632, %v1794
    %v1827 = vmul.f32 %v1633, %v1795
    %v1828 = vmul.f32 %v1634, %v1796
    %v1829 = vmul.f32 %v1635, %v1797
    %v1830 = vmul.f32 %v1636, %v1798
    %v1831 = vmul.f32 %v1637, %v1799
    %v1832 = vmul.f32 %v1638, %v1800
    %v1833 = vmul.f32 %v1639, %v1801
    %v1834 = vmul.f32 %v1640, %v1802
    %v1835 = vmul.f32 %v1641, %v1803
    %v1836 = vstv %s83
    %v1837 = vmul.f32 %v91, %v1836
    %v1838 = vmul.f32 %v92, %v1836
    %v1839 = vmul.f32 %v93, %v1836
    %v1840 = vmul.f32 %v94, %v1836
    %v1841 = vmul.f32 %v95, %v1836
    %v1842 = vmul.f32 %v96, %v1836
    %v1843 = vmul.f32 %v97, %v1836
    %v1844 = vmul.f32 %v98, %v1836
    %v1845 = vmul.f32 %v99, %v1836
    %v1846 = vmul.f32 %v100, %v1836
    %v1847 = vmul.f32 %v101, %v1836
    %v1848 = vmul.f32 %v102, %v1836
    %v1849 = vmul.f32 %v103, %v1836
    %v1850 = vmul.f32 %v104, %v1836
    %v1851 = vmul.f32 %v105, %v1836
    %v1852 = vmul.f32 %v106, %v1836
    %v1853 = vmul.f32 %v107, %v1836
    %v1854 = vmul.f32 %v108, %v1836
    %v1855 = vmul.f32 %v109, %v1836
    %v1856 = vmul.f32 %v110, %v1836
    %v1857 = vmul.f32 %v111, %v1836
    %v1858 = vmul.f32 %v112, %v1836
    %v1859 = vmul.f32 %v113, %v1836
    %v1860 = vmul.f32 %v114, %v1836
    %v1861 = vmul.f32 %v115, %v1836
    %v1862 = vmul.f32 %v116, %v1836
    %v1863 = vmul.f32 %v117, %v1836
    %v1864 = vmul.f32 %v118, %v1836
    %v1865 = vmul.f32 %v119, %v1836
    %v1866 = vmul.f32 %v120, %v1836
    %v1867 = vmul.f32 %v121, %v1836
    %v1868 = vmul.f32 %v122, %v1836
    %v1869 = vstv %s67
    %v1870 = vadd.f32 %v1869, %v1837
    %v1871 = vadd.f32 %v1869, %v1838
    %v1872 = vadd.f32 %v1869, %v1839
    %v1873 = vadd.f32 %v1869, %v1840
    %v1874 = vadd.f32 %v1869, %v1841
    %v1875 = vadd.f32 %v1869, %v1842
    %v1876 = vadd.f32 %v1869, %v1843
    %v1877 = vadd.f32 %v1869, %v1844
    %v1878 = vadd.f32 %v1869, %v1845
    %v1879 = vadd.f32 %v1869, %v1846
    %v1880 = vadd.f32 %v1869, %v1847
    %v1881 = vadd.f32 %v1869, %v1848
    %v1882 = vadd.f32 %v1869, %v1849
    %v1883 = vadd.f32 %v1869, %v1850
    %v1884 = vadd.f32 %v1869, %v1851
    %v1885 = vadd.f32 %v1869, %v1852
    %v1886 = vadd.f32 %v1869, %v1853
    %v1887 = vadd.f32 %v1869, %v1854
    %v1888 = vadd.f32 %v1869, %v1855
    %v1889 = vadd.f32 %v1869, %v1856
    %v1890 = vadd.f32 %v1869, %v1857
    %v1891 = vadd.f32 %v1869, %v1858
    %v1892 = vadd.f32 %v1869, %v1859
    %v1893 = vadd.f32 %v1869, %v1860
    %v1894 = vadd.f32 %v1869, %v1861
    %v1895 = vadd.f32 %v1869, %v1862
    %v1896 = vadd.f32 %v1869, %v1863
    %v1897 = vadd.f32 %v1869, %v1864
    %v1898 = vadd.f32 %v1869, %v1865
    %v1899 = vadd.f32 %v1869, %v1866
    %v1900 = vadd.f32 %v1869, %v1867
    %v1901 = vadd.f32 %v1869, %v1868
    %v1902 = vmul.f32 %v1870, 1.442695
    %v1903 = vpow.pop %v1902
    %v1904 = vmul.f32 %v1871, 1.442695
    %v1905 = vpow.pop %v1904
    %v1906 = vmul.f32 %v1872, 1.442695
    %v1907 = vpow.pop %v1906
    %v1908 = vmul.f32 %v1873, 1.442695
    %v1909 = vpow.pop %v1908
    %v1910 = vmul.f32 %v1874, 1.442695
    %v1911 = vpow.pop %v1910
    %v1912 = vmul.f32 %v1875, 1.442695
    %v1913 = vpow.pop %v1912
    %v1914 = vmul.f32 %v1876, 1.442695
    %v1915 = vpow.pop %v1914
    %v1916 = vmul.f32 %v1877, 1.442695
    %v1917 = vpow.pop %v1916
    %v1918 = vmul.f32 %v1878, 1.442695
    %v1919 = vpow.pop %v1918
    %v1920 = vmul.f32 %v1879, 1.442695
    %v1921 = vpow.pop %v1920
    %v1922 = vmul.f32 %v1880, 1.442695
    %v1923 = vpow.pop %v1922
    %v1924 = vmul.f32 %v1881, 1.442695
    %v1925 = vpow.pop %v1924
    %v1926 = vmul.f32 %v1882, 1.442695
    %v1927 = vpow.pop %v1926
    %v1928 = vmul.f32 %v1883, 1.442695
    %v1929 = vpow.pop %v1928
    %v1930 = vmul.f32 %v1884, 1.442695
    %v1931 = vpow.pop %v1930
    %v1932 = vmul.f32 %v1885, 1.442695
    %v1933 = vpow.pop %v1932
    %v1934 = vmul.f32 %v1886, 1.442695
    %v1935 = vpow.pop %v1934
    %v1936 = vmul.f32 %v1887, 1.442695
    %v1937 = vpow.pop %v1936
    %v1938 = vmul.f32 %v1888, 1.442695
    %v1939 = vpow.pop %v1938
    %v1940 = vmul.f32 %v1889, 1.442695
    %v1941 = vpow.pop %v1940
    %v1942 = vmul.f32 %v1890, 1.442695
    %v1943 = vpow.pop %v1942
    %v1944 = vmul.f32 %v1891, 1.442695
    %v1945 = vpow.pop %v1944
    %v1946 = vmul.f32 %v1892, 1.442695
    %v1947 = vpow.pop %v1946
    %v1948 = vmul.f32 %v1893, 1.442695
    %v1949 = vpow.pop %v1948
    %v1950 = vmul.f32 %v1894, 1.442695
    %v1951 = vpow.pop %v1950
    %v1952 = vmul.f32 %v1895, 1.442695
    %v1953 = vpow.pop %v1952
    %v1954 = vmul.f32 %v1896, 1.442695
    %v1955 = vpow.pop %v1954
    %v1956 = vmul.f32 %v1897, 1.442695
    %v1957 = vpow.pop %v1956
    %v1958 = vmul.f32 %v1898, 1.442695
    %v1959 = vpow.pop %v1958
    %v1960 = vmul.f32 %v1899, 1.442695
    %v1961 = vpow.pop %v1960
    %v1962 = vmul.f32 %v1900, 1.442695
    %v1963 = vpow.pop %v1962
    %v1964 = vmul.f32 %v1901, 1.442695
    %v1965 = vpow.pop %v1964
    %v1966 = vadd.f32 %v1903, 1.0
    %v1967 = vadd.f32 %v1905, 1.0
    %v1968 = vadd.f32 %v1907, 1.0
    %v1969 = vadd.f32 %v1909, 1.0
    %v1970 = vadd.f32 %v1911, 1.0
    %v1971 = vadd.f32 %v1913, 1.0
    %v1972 = vadd.f32 %v1915, 1.0
    %v1973 = vadd.f32 %v1917, 1.0
    %v1974 = vadd.f32 %v1919, 1.0
    %v1975 = vadd.f32 %v1921, 1.0
    %v1976 = vadd.f32 %v1923, 1.0
    %v1977 = vadd.f32 %v1925, 1.0
    %v1978 = vadd.f32 %v1927, 1.0
    %v1979 = vadd.f32 %v1929, 1.0
    %v1980 = vadd.f32 %v1931, 1.0
    %v1981 = vadd.f32 %v1933, 1.0
    %v1982 = vadd.f32 %v1935, 1.0
    %v1983 = vadd.f32 %v1937, 1.0
    %v1984 = vadd.f32 %v1939, 1.0
    %v1985 = vadd.f32 %v1941, 1.0
    %v1986 = vadd.f32 %v1943, 1.0
    %v1987 = vadd.f32 %v1945, 1.0
    %v1988 = vadd.f32 %v1947, 1.0
    %v1989 = vadd.f32 %v1949, 1.0
    %v1990 = vadd.f32 %v1951, 1.0
    %v1991 = vadd.f32 %v1953, 1.0
    %v1992 = vadd.f32 %v1955, 1.0
    %v1993 = vadd.f32 %v1957, 1.0
    %v1994 = vadd.f32 %v1959, 1.0
    %v1995 = vadd.f32 %v1961, 1.0
    %v1996 = vadd.f32 %v1963, 1.0
    %v1997 = vadd.f32 %v1965, 1.0
    %v1998 = vmul.f32 %v1804, %v1966
    %v1999 = vmul.f32 %v1805, %v1967
    %v2000 = vmul.f32 %v1806, %v1968
    %v2001 = vmul.f32 %v1807, %v1969
    %v2002 = vmul.f32 %v1808, %v1970
    %v2003 = vmul.f32 %v1809, %v1971
    %v2004 = vmul.f32 %v1810, %v1972
    %v2005 = vmul.f32 %v1811, %v1973
    %v2006 = vmul.f32 %v1812, %v1974
    %v2007 = vmul.f32 %v1813, %v1975
    %v2008 = vmul.f32 %v1814, %v1976
    %v2009 = vmul.f32 %v1815, %v1977
    %v2010 = vmul.f32 %v1816, %v1978
    %v2011 = vmul.f32 %v1817, %v1979
    %v2012 = vmul.f32 %v1818, %v1980
    %v2013 = vmul.f32 %v1819, %v1981
    %v2014 = vmul.f32 %v1820, %v1982
    %v2015 = vmul.f32 %v1821, %v1983
    %v2016 = vmul.f32 %v1822, %v1984
    %v2017 = vmul.f32 %v1823, %v1985
    %v2018 = vmul.f32 %v1824, %v1986
    %v2019 = vmul.f32 %v1825, %v1987
    %v2020 = vmul.f32 %v1826, %v1988
    %v2021 = vmul.f32 %v1827, %v1989
    %v2022 = vmul.f32 %v1828, %v1990
    %v2023 = vmul.f32 %v1829, %v1991
    %v2024 = vmul.f32 %v1830, %v1992
    %v2025 = vmul.f32 %v1831, %v1993
    %v2026 = vmul.f32 %v1832, %v1994
    %v2027 = vmul.f32 %v1833, %v1995
    %v2028 = vmul.f32 %v1834, %v1996
    %v2029 = vmul.f32 %v1835, %v1997
    %v2030 = vstv %s84
    %v2031 = vmul.f32 %v91, %v2030
    %v2032 = vmul.f32 %v92, %v2030
    %v2033 = vmul.f32 %v93, %v2030
    %v2034 = vmul.f32 %v94, %v2030
    %v2035 = vmul.f32 %v95, %v2030
    %v2036 = vmul.f32 %v96, %v2030
    %v2037 = vmul.f32 %v97, %v2030
    %v2038 = vmul.f32 %v98, %v2030
    %v2039 = vmul.f32 %v99, %v2030
    %v2040 = vmul.f32 %v100, %v2030
    %v2041 = vmul.f32 %v101, %v2030
    %v2042 = vmul.f32 %v102, %v2030
    %v2043 = vmul.f32 %v103, %v2030
    %v2044 = vmul.f32 %v104, %v2030
    %v2045 = vmul.f32 %v105, %v2030
    %v2046 = vmul.f32 %v106, %v2030
    %v2047 = vmul.f32 %v107, %v2030
    %v2048 = vmul.f32 %v108, %v2030
    %v2049 = vmul.f32 %v109, %v2030
    %v2050 = vmul.f32 %v110, %v2030
    %v2051 = vmul.f32 %v111, %v2030
    %v2052 = vmul.f32 %v112, %v2030
    %v2053 = vmul.f32 %v113, %v2030
    %v2054 = vmul.f32 %v114, %v2030
    %v2055 = vmul.f32 %v115, %v2030
    %v2056 = vmul.f32 %v116, %v2030
    %v2057 = vmul.f32 %v117, %v2030
    %v2058 = vmul.f32 %v118, %v2030
    %v2059 = vmul.f32 %v119, %v2030
    %v2060 = vmul.f32 %v120, %v2030
    %v2061 = vmul.f32 %v121, %v2030
    %v2062 = vmul.f32 %v122, %v2030
    %v2063 = vstv %s68
    %v2064 = vadd.f32 %v2063, %v2031
    %v2065 = vadd.f32 %v2063, %v2032
    %v2066 = vadd.f32 %v2063, %v2033
    %v2067 = vadd.f32 %v2063, %v2034
    %v2068 = vadd.f32 %v2063, %v2035
    %v2069 = vadd.f32 %v2063, %v2036
    %v2070 = vadd.f32 %v2063, %v2037
    %v2071 = vadd.f32 %v2063, %v2038
    %v2072 = vadd.f32 %v2063, %v2039
    %v2073 = vadd.f32 %v2063, %v2040
    %v2074 = vadd.f32 %v2063, %v2041
    %v2075 = vadd.f32 %v2063, %v2042
    %v2076 = vadd.f32 %v2063, %v2043
    %v2077 = vadd.f32 %v2063, %v2044
    %v2078 = vadd.f32 %v2063, %v2045
    %v2079 = vadd.f32 %v2063, %v2046
    %v2080 = vadd.f32 %v2063, %v2047
    %v2081 = vadd.f32 %v2063, %v2048
    %v2082 = vadd.f32 %v2063, %v2049
    %v2083 = vadd.f32 %v2063, %v2050
    %v2084 = vadd.f32 %v2063, %v2051
    %v2085 = vadd.f32 %v2063, %v2052
    %v2086 = vadd.f32 %v2063, %v2053
    %v2087 = vadd.f32 %v2063, %v2054
    %v2088 = vadd.f32 %v2063, %v2055
    %v2089 = vadd.f32 %v2063, %v2056
    %v2090 = vadd.f32 %v2063, %v2057
    %v2091 = vadd.f32 %v2063, %v2058
    %v2092 = vadd.f32 %v2063, %v2059
    %v2093 = vadd.f32 %v2063, %v2060
    %v2094 = vadd.f32 %v2063, %v2061
    %v2095 = vadd.f32 %v2063, %v2062
    %v2096 = vmul.f32 %v2064, 1.442695
    %v2097 = vpow.pop %v2096
    %v2098 = vmul.f32 %v2065, 1.442695
    %v2099 = vpow.pop %v2098
    %v2100 = vmul.f32 %v2066, 1.442695
    %v2101 = vpow.pop %v2100
    %v2102 = vmul.f32 %v2067, 1.442695
    %v2103 = vpow.pop %v2102
    %v2104 = vmul.f32 %v2068, 1.442695
    %v2105 = vpow.pop %v2104
    %v2106 = vmul.f32 %v2069, 1.442695
    %v2107 = vpow.pop %v2106
    %v2108 = vmul.f32 %v2070, 1.442695
    %v2109 = vpow.pop %v2108
    %v2110 = vmul.f32 %v2071, 1.442695
    %v2111 = vpow.pop %v2110
    %v2112 = vmul.f32 %v2072, 1.442695
    %v2113 = vpow.pop %v2112
    %v2114 = vmul.f32 %v2073, 1.442695
    %v2115 = vpow.pop %v2114
    %v2116 = vmul.f32 %v2074, 1.442695
    %v2117 = vpow.pop %v2116
    %v2118 = vmul.f32 %v2075, 1.442695
    %v2119 = vpow.pop %v2118
    %v2120 = vmul.f32 %v2076, 1.442695
    %v2121 = vpow.pop %v2120
    %v2122 = vmul.f32 %v2077, 1.442695
    %v2123 = vpow.pop %v2122
    %v2124 = vmul.f32 %v2078, 1.442695
    %v2125 = vpow.pop %v2124
    %v2126 = vmul.f32 %v2079, 1.442695
    %v2127 = vpow.pop %v2126
    %v2128 = vmul.f32 %v2080, 1.442695
    %v2129 = vpow.pop %v2128
    %v2130 = vmul.f32 %v2081, 1.442695
    %v2131 = vpow.pop %v2130
    %v2132 = vmul.f32 %v2082, 1.442695
    %v2133 = vpow.pop %v2132
    %v2134 = vmul.f32 %v2083, 1.442695
    %v2135 = vpow.pop %v2134
    %v2136 = vmul.f32 %v2084, 1.442695
    %v2137 = vpow.pop %v2136
    %v2138 = vmul.f32 %v2085, 1.442695
    %v2139 = vpow.pop %v2138
    %v2140 = vmul.f32 %v2086, 1.442695
    %v2141 = vpow.pop %v2140
    %v2142 = vmul.f32 %v2087, 1.442695
    %v2143 = vpow.pop %v2142
    %v2144 = vmul.f32 %v2088, 1.442695
    %v2145 = vpow.pop %v2144
    %v2146 = vmul.f32 %v2089, 1.442695
    %v2147 = vpow.pop %v2146
    %v2148 = vmul.f32 %v2090, 1.442695
    %v2149 = vpow.pop %v2148
    %v2150 = vmul.f32 %v2091, 1.442695
    %v2151 = vpow.pop %v2150
    %v2152 = vmul.f32 %v2092, 1.442695
    %v2153 = vpow.pop %v2152
    %v2154 = vmul.f32 %v2093, 1.442695
    %v2155 = vpow.pop %v2154
    %v2156 = vmul.f32 %v2094, 1.442695
    %v2157 = vpow.pop %v2156
    %v2158 = vmul.f32 %v2095, 1.442695
    %v2159 = vpow.pop %v2158
    %v2160 = vadd.f32 %v2097, 1.0
    %v2161 = vadd.f32 %v2099, 1.0
    %v2162 = vadd.f32 %v2101, 1.0
    %v2163 = vadd.f32 %v2103, 1.0
    %v2164 = vadd.f32 %v2105, 1.0
    %v2165 = vadd.f32 %v2107, 1.0
    %v2166 = vadd.f32 %v2109, 1.0
    %v2167 = vadd.f32 %v2111, 1.0
    %v2168 = vadd.f32 %v2113, 1.0
    %v2169 = vadd.f32 %v2115, 1.0
    %v2170 = vadd.f32 %v2117, 1.0
    %v2171 = vadd.f32 %v2119, 1.0
    %v2172 = vadd.f32 %v2121, 1.0
    %v2173 = vadd.f32 %v2123, 1.0
    %v2174 = vadd.f32 %v2125, 1.0
    %v2175 = vadd.f32 %v2127, 1.0
    %v2176 = vadd.f32 %v2129, 1.0
    %v2177 = vadd.f32 %v2131, 1.0
    %v2178 = vadd.f32 %v2133, 1.0
    %v2179 = vadd.f32 %v2135, 1.0
    %v2180 = vadd.f32 %v2137, 1.0
    %v2181 = vadd.f32 %v2139, 1.0
    %v2182 = vadd.f32 %v2141, 1.0
    %v2183 = vadd.f32 %v2143, 1.0
    %v2184 = vadd.f32 %v2145, 1.0
    %v2185 = vadd.f32 %v2147, 1.0
    %v2186 = vadd.f32 %v2149, 1.0
    %v2187 = vadd.f32 %v2151, 1.0
    %v2188 = vadd.f32 %v2153, 1.0
    %v2189 = vadd.f32 %v2155, 1.0
    %v2190 = vadd.f32 %v2157, 1.0
    %v2191 = vadd.f32 %v2159, 1.0
    %v2192 = vmul.f32 %v1998, %v2160
    %v2193 = vmul.f32 %v1999, %v2161
    %v2194 = vmul.f32 %v2000, %v2162
    %v2195 = vmul.f32 %v2001, %v2163
    %v2196 = vmul.f32 %v2002, %v2164
    %v2197 = vmul.f32 %v2003, %v2165
    %v2198 = vmul.f32 %v2004, %v2166
    %v2199 = vmul.f32 %v2005, %v2167
    %v2200 = vmul.f32 %v2006, %v2168
    %v2201 = vmul.f32 %v2007, %v2169
    %v2202 = vmul.f32 %v2008, %v2170
    %v2203 = vmul.f32 %v2009, %v2171
    %v2204 = vmul.f32 %v2010, %v2172
    %v2205 = vmul.f32 %v2011, %v2173
    %v2206 = vmul.f32 %v2012, %v2174
    %v2207 = vmul.f32 %v2013, %v2175
    %v2208 = vmul.f32 %v2014, %v2176
    %v2209 = vmul.f32 %v2015, %v2177
    %v2210 = vmul.f32 %v2016, %v2178
    %v2211 = vmul.f32 %v2017, %v2179
    %v2212 = vmul.f32 %v2018, %v2180
    %v2213 = vmul.f32 %v2019, %v2181
    %v2214 = vmul.f32 %v2020, %v2182
    %v2215 = vmul.f32 %v2021, %v2183
    %v2216 = vmul.f32 %v2022, %v2184
    %v2217 = vmul.f32 %v2023, %v2185
    %v2218 = vmul.f32 %v2024, %v2186
    %v2219 = vmul.f32 %v2025, %v2187
    %v2220 = vmul.f32 %v2026, %v2188
    %v2221 = vmul.f32 %v2027, %v2189
    %v2222 = vmul.f32 %v2028, %v2190
    %v2223 = vmul.f32 %v2029, %v2191
    %v2224 = vstv %s85
    %v2225 = vmul.f32 %v91, %v2224
    %v2226 = vmul.f32 %v92, %v2224
    %v2227 = vmul.f32 %v93, %v2224
    %v2228 = vmul.f32 %v94, %v2224
    %v2229 = vmul.f32 %v95, %v2224
    %v2230 = vmul.f32 %v96, %v2224
    %v2231 = vmul.f32 %v97, %v2224
    %v2232 = vmul.f32 %v98, %v2224
    %v2233 = vmul.f32 %v99, %v2224
    %v2234 = vmul.f32 %v100, %v2224
    %v2235 = vmul.f32 %v101, %v2224
    %v2236 = vmul.f32 %v102, %v2224
    %v2237 = vmul.f32 %v103, %v2224
    %v2238 = vmul.f32 %v104, %v2224
    %v2239 = vmul.f32 %v105, %v2224
    %v2240 = vmul.f32 %v106, %v2224
    %v2241 = vmul.f32 %v107, %v2224
    %v2242 = vmul.f32 %v108, %v2224
    %v2243 = vmul.f32 %v109, %v2224
    %v2244 = vmul.f32 %v110, %v2224
    %v2245 = vmul.f32 %v111, %v2224
    %v2246 = vmul.f32 %v112, %v2224
    %v2247 = vmul.f32 %v113, %v2224
    %v2248 = vmul.f32 %v114, %v2224
    %v2249 = vmul.f32 %v115, %v2224
    %v2250 = vmul.f32 %v116, %v2224
    %v2251 = vmul.f32 %v117, %v2224
    %v2252 = vmul.f32 %v118, %v2224
    %v2253 = vmul.f32 %v119, %v2224
    %v2254 = vmul.f32 %v120, %v2224
    %v2255 = vmul.f32 %v121, %v2224
    %v2256 = vmul.f32 %v122, %v2224
    %v2257 = vstv %s69
    %v2258 = vadd.f32 %v2257, %v2225
    %v2259 = vadd.f32 %v2257, %v2226
    %v2260 = vadd.f32 %v2257, %v2227
    %v2261 = vadd.f32 %v2257, %v2228
    %v2262 = vadd.f32 %v2257, %v2229
    %v2263 = vadd.f32 %v2257, %v2230
    %v2264 = vadd.f32 %v2257, %v2231
    %v2265 = vadd.f32 %v2257, %v2232
    %v2266 = vadd.f32 %v2257, %v2233
    %v2267 = vadd.f32 %v2257, %v2234
    %v2268 = vadd.f32 %v2257, %v2235
    %v2269 = vadd.f32 %v2257, %v2236
    %v2270 = vadd.f32 %v2257, %v2237
    %v2271 = vadd.f32 %v2257, %v2238
    %v2272 = vadd.f32 %v2257, %v2239
    %v2273 = vadd.f32 %v2257, %v2240
    %v2274 = vadd.f32 %v2257, %v2241
    %v2275 = vadd.f32 %v2257, %v2242
    %v2276 = vadd.f32 %v2257, %v2243
    %v2277 = vadd.f32 %v2257, %v2244
    %v2278 = vadd.f32 %v2257, %v2245
    %v2279 = vadd.f32 %v2257, %v2246
    %v2280 = vadd.f32 %v2257, %v2247
    %v2281 = vadd.f32 %v2257, %v2248
    %v2282 = vadd.f32 %v2257, %v2249
    %v2283 = vadd.f32 %v2257, %v2250
    %v2284 = vadd.f32 %v2257, %v2251
    %v2285 = vadd.f32 %v2257, %v2252
    %v2286 = vadd.f32 %v2257, %v2253
    %v2287 = vadd.f32 %v2257, %v2254
    %v2288 = vadd.f32 %v2257, %v2255
    %v2289 = vadd.f32 %v2257, %v2256
    %v2290 = vmul.f32 %v2258, 1.442695
    %v2291 = vpow.pop %v2290
    %v2292 = vmul.f32 %v2259, 1.442695
    %v2293 = vpow.pop %v2292
    %v2294 = vmul.f32 %v2260, 1.442695
    %v2295 = vpow.pop %v2294
    %v2296 = vmul.f32 %v2261, 1.442695
    %v2297 = vpow.pop %v2296
    %v2298 = vmul.f32 %v2262, 1.442695
    %v2299 = vpow.pop %v2298
    %v2300 = vmul.f32 %v2263, 1.442695
    %v2301 = vpow.pop %v2300
    %v2302 = vmul.f32 %v2264, 1.442695
    %v2303 = vpow.pop %v2302
    %v2304 = vmul.f32 %v2265, 1.442695
    %v2305 = vpow.pop %v2304
    %v2306 = vmul.f32 %v2266, 1.442695
    %v2307 = vpow.pop %v2306
    %v2308 = vmul.f32 %v2267, 1.442695
    %v2309 = vpow.pop %v2308
    %v2310 = vmul.f32 %v2268, 1.442695
    %v2311 = vpow.pop %v2310
    %v2312 = vmul.f32 %v2269, 1.442695
    %v2313 = vpow.pop %v2312
    %v2314 = vmul.f32 %v2270, 1.442695
    %v2315 = vpow.pop %v2314
    %v2316 = vmul.f32 %v2271, 1.442695
    %v2317 = vpow.pop %v2316
    %v2318 = vmul.f32 %v2272, 1.442695
    %v2319 = vpow.pop %v2318
    %v2320 = vmul.f32 %v2273, 1.442695
    %v2321 = vpow.pop %v2320
    %v2322 = vmul.f32 %v2274, 1.442695
    %v2323 = vpow.pop %v2322
    %v2324 = vmul.f32 %v2275, 1.442695
    %v2325 = vpow.pop %v2324
    %v2326 = vmul.f32 %v2276, 1.442695
    %v2327 = vpow.pop %v2326
    %v2328 = vmul.f32 %v2277, 1.442695
    %v2329 = vpow.pop %v2328
    %v2330 = vmul.f32 %v2278, 1.442695
    %v2331 = vpow.pop %v2330
    %v2332 = vmul.f32 %v2279, 1.442695
    %v2333 = vpow.pop %v2332
    %v2334 = vmul.f32 %v2280, 1.442695
    %v2335 = vpow.pop %v2334
    %v2336 = vmul.f32 %v2281, 1.442695
    %v2337 = vpow.pop %v2336
    %v2338 = vmul.f32 %v2282, 1.442695
    %v2339 = vpow.pop %v2338
    %v2340 = vmul.f32 %v2283, 1.442695
    %v2341 = vpow.pop %v2340
    %v2342 = vmul.f32 %v2284, 1.442695
    %v2343 = vpow.pop %v2342
    %v2344 = vmul.f32 %v2285, 1.442695
    %v2345 = vpow.pop %v2344
    %v2346 = vmul.f32 %v2286, 1.442695
    %v2347 = vpow.pop %v2346
    %v2348 = vmul.f32 %v2287, 1.442695
    %v2349 = vpow.pop %v2348
    %v2350 = vmul.f32 %v2288, 1.442695
    %v2351 = vpow.pop %v2350
    %v2352 = vmul.f32 %v2289, 1.442695
    %v2353 = vpow.pop %v2352
    %v2354 = vadd.f32 %v2291, 1.0
    %v2355 = vadd.f32 %v2293, 1.0
    %v2356 = vadd.f32 %v2295, 1.0
    %v2357 = vadd.f32 %v2297, 1.0
    %v2358 = vadd.f32 %v2299, 1.0
    %v2359 = vadd.f32 %v2301, 1.0
    %v2360 = vadd.f32 %v2303, 1.0
    %v2361 = vadd.f32 %v2305, 1.0
    %v2362 = vadd.f32 %v2307, 1.0
    %v2363 = vadd.f32 %v2309, 1.0
    %v2364 = vadd.f32 %v2311, 1.0
    %v2365 = vadd.f32 %v2313, 1.0
    %v2366 = vadd.f32 %v2315, 1.0
    %v2367 = vadd.f32 %v2317, 1.0
    %v2368 = vadd.f32 %v2319, 1.0
    %v2369 = vadd.f32 %v2321, 1.0
    %v2370 = vadd.f32 %v2323, 1.0
    %v2371 = vadd.f32 %v2325, 1.0
    %v2372 = vadd.f32 %v2327, 1.0
    %v2373 = vadd.f32 %v2329, 1.0
    %v2374 = vadd.f32 %v2331, 1.0
    %v2375 = vadd.f32 %v2333, 1.0
    %v2376 = vadd.f32 %v2335, 1.0
    %v2377 = vadd.f32 %v2337, 1.0
    %v2378 = vadd.f32 %v2339, 1.0
    %v2379 = vadd.f32 %v2341, 1.0
    %v2380 = vadd.f32 %v2343, 1.0
    %v2381 = vadd.f32 %v2345, 1.0
    %v2382 = vadd.f32 %v2347, 1.0
    %v2383 = vadd.f32 %v2349, 1.0
    %v2384 = vadd.f32 %v2351, 1.0
    %v2385 = vadd.f32 %v2353, 1.0
    %v2386 = vmul.f32 %v2192, %v2354
    %v2387 = vmul.f32 %v2193, %v2355
    %v2388 = vmul.f32 %v2194, %v2356
    %v2389 = vmul.f32 %v2195, %v2357
    %v2390 = vmul.f32 %v2196, %v2358
    %v2391 = vmul.f32 %v2197, %v2359
    %v2392 = vmul.f32 %v2198, %v2360
    %v2393 = vmul.f32 %v2199, %v2361
    %v2394 = vmul.f32 %v2200, %v2362
    %v2395 = vmul.f32 %v2201, %v2363
    %v2396 = vmul.f32 %v2202, %v2364
    %v2397 = vmul.f32 %v2203, %v2365
    %v2398 = vmul.f32 %v2204, %v2366
    %v2399 = vmul.f32 %v2205, %v2367
    %v2400 = vmul.f32 %v2206, %v2368
    %v2401 = vmul.f32 %v2207, %v2369
    %v2402 = vmul.f32 %v2208, %v2370
    %v2403 = vmul.f32 %v2209, %v2371
    %v2404 = vmul.f32 %v2210, %v2372
    %v2405 = vmul.f32 %v2211, %v2373
    %v2406 = vmul.f32 %v2212, %v2374
    %v2407 = vmul.f32 %v2213, %v2375
    %v2408 = vmul.f32 %v2214, %v2376
    %v2409 = vmul.f32 %v2215, %v2377
    %v2410 = vmul.f32 %v2216, %v2378
    %v2411 = vmul.f32 %v2217, %v2379
    %v2412 = vmul.f32 %v2218, %v2380
    %v2413 = vmul.f32 %v2219, %v2381
    %v2414 = vmul.f32 %v2220, %v2382
    %v2415 = vmul.f32 %v2221, %v2383
    %v2416 = vmul.f32 %v2222, %v2384
    %v2417 = vmul.f32 %v2223, %v2385
    %v2418 = vstv %s86
    %v2419 = vmul.f32 %v91, %v2418
    %v2420 = vmul.f32 %v92, %v2418
    %v2421 = vmul.f32 %v93, %v2418
    %v2422 = vmul.f32 %v94, %v2418
    %v2423 = vmul.f32 %v95, %v2418
    %v2424 = vmul.f32 %v96, %v2418
    %v2425 = vmul.f32 %v97, %v2418
    %v2426 = vmul.f32 %v98, %v2418
    %v2427 = vmul.f32 %v99, %v2418
    %v2428 = vmul.f32 %v100, %v2418
    %v2429 = vmul.f32 %v101, %v2418
    %v2430 = vmul.f32 %v102, %v2418
    %v2431 = vmul.f32 %v103, %v2418
    %v2432 = vmul.f32 %v104, %v2418
    %v2433 = vmul.f32 %v105, %v2418
    %v2434 = vmul.f32 %v106, %v2418
    %v2435 = vmul.f32 %v107, %v2418
    %v2436 = vmul.f32 %v108, %v2418
    %v2437 = vmul.f32 %v109, %v2418
    %v2438 = vmul.f32 %v110, %v2418
    %v2439 = vmul.f32 %v111, %v2418
    %v2440 = vmul.f32 %v112, %v2418
    %v2441 = vmul.f32 %v113, %v2418
    %v2442 = vmul.f32 %v114, %v2418
    %v2443 = vmul.f32 %v115, %v2418
    %v2444 = vmul.f32 %v116, %v2418
    %v2445 = vmul.f32 %v117, %v2418
    %v2446 = vmul.f32 %v118, %v2418
    %v2447 = vmul.f32 %v119, %v2418
    %v2448 = vmul.f32 %v120, %v2418
    %v2449 = vmul.f32 %v121, %v2418
    %v2450 = vmul.f32 %v122, %v2418
    %v2451 = vstv %s70
    %v2452 = vadd.f32 %v2451, %v2419
    %v2453 = vadd.f32 %v2451, %v2420
    %v2454 = vadd.f32 %v2451, %v2421
    %v2455 = vadd.f32 %v2451, %v2422
    %v2456 = vadd.f32 %v2451, %v2423
    %v2457 = vadd.f32 %v2451, %v2424
    %v2458 = vadd.f32 %v2451, %v2425
    %v2459 = vadd.f32 %v2451, %v2426
    %v2460 = vadd.f32 %v2451, %v2427
    %v2461 = vadd.f32 %v2451, %v2428
    %v2462 = vadd.f32 %v2451, %v2429
    %v2463 = vadd.f32 %v2451, %v2430
    %v2464 = vadd.f32 %v2451, %v2431
    %v2465 = vadd.f32 %v2451, %v2432
    %v2466 = vadd.f32 %v2451, %v2433
    %v2467 = vadd.f32 %v2451, %v2434
    %v2468 = vadd.f32 %v2451, %v2435
    %v2469 = vadd.f32 %v2451, %v2436
    %v2470 = vadd.f32 %v2451, %v2437
    %v2471 = vadd.f32 %v2451, %v2438
    %v2472 = vadd.f32 %v2451, %v2439
    %v2473 = vadd.f32 %v2451, %v2440
    %v2474 = vadd.f32 %v2451, %v2441
    %v2475 = vadd.f32 %v2451, %v2442
    %v2476 = vadd.f32 %v2451, %v2443
    %v2477 = vadd.f32 %v2451, %v2444
    %v2478 = vadd.f32 %v2451, %v2445
    %v2479 = vadd.f32 %v2451, %v2446
    %v2480 = vadd.f32 %v2451, %v2447
    %v2481 = vadd.f32 %v2451, %v2448
    %v2482 = vadd.f32 %v2451, %v2449
    %v2483 = vadd.f32 %v2451, %v2450
    %v2484 = vmul.f32 %v2452, 1.442695
    %v2485 = vpow.pop %v2484
    %v2486 = vmul.f32 %v2453, 1.442695
    %v2487 = vpow.pop %v2486
    %v2488 = vmul.f32 %v2454, 1.442695
    %v2489 = vpow.pop %v2488
    %v2490 = vmul.f32 %v2455, 1.442695
    %v2491 = vpow.pop %v2490
    %v2492 = vmul.f32 %v2456, 1.442695
    %v2493 = vpow.pop %v2492
    %v2494 = vmul.f32 %v2457, 1.442695
    %v2495 = vpow.pop %v2494
    %v2496 = vmul.f32 %v2458, 1.442695
    %v2497 = vpow.pop %v2496
    %v2498 = vmul.f32 %v2459, 1.442695
    %v2499 = vpow.pop %v2498
    %v2500 = vmul.f32 %v2460, 1.442695
    %v2501 = vpow.pop %v2500
    %v2502 = vmul.f32 %v2461, 1.442695
    %v2503 = vpow.pop %v2502
    %v2504 = vmul.f32 %v2462, 1.442695
    %v2505 = vpow.pop %v2504
    %v2506 = vmul.f32 %v2463, 1.442695
    %v2507 = vpow.pop %v2506
    %v2508 = vmul.f32 %v2464, 1.442695
    %v2509 = vpow.pop %v2508
    %v2510 = vmul.f32 %v2465, 1.442695
    %v2511 = vpow.pop %v2510
    %v2512 = vmul.f32 %v2466, 1.442695
    %v2513 = vpow.pop %v2512
    %v2514 = vmul.f32 %v2467, 1.442695
    %v2515 = vpow.pop %v2514
    %v2516 = vmul.f32 %v2468, 1.442695
    %v2517 = vpow.pop %v2516
    %v2518 = vmul.f32 %v2469, 1.442695
    %v2519 = vpow.pop %v2518
    %v2520 = vmul.f32 %v2470, 1.442695
    %v2521 = vpow.pop %v2520
    %v2522 = vmul.f32 %v2471, 1.442695
    %v2523 = vpow.pop %v2522
    %v2524 = vmul.f32 %v2472, 1.442695
    %v2525 = vpow.pop %v2524
    %v2526 = vmul.f32 %v2473, 1.442695
    %v2527 = vpow.pop %v2526
    %v2528 = vmul.f32 %v2474, 1.442695
    %v2529 = vpow.pop %v2528
    %v2530 = vmul.f32 %v2475, 1.442695
    %v2531 = vpow.pop %v2530
    %v2532 = vmul.f32 %v2476, 1.442695
    %v2533 = vpow.pop %v2532
    %v2534 = vmul.f32 %v2477, 1.442695
    %v2535 = vpow.pop %v2534
    %v2536 = vmul.f32 %v2478, 1.442695
    %v2537 = vpow.pop %v2536
    %v2538 = vmul.f32 %v2479, 1.442695
    %v2539 = vpow.pop %v2538
    %v2540 = vmul.f32 %v2480, 1.442695
    %v2541 = vpow.pop %v2540
    %v2542 = vmul.f32 %v2481, 1.442695
    %v2543 = vpow.pop %v2542
    %v2544 = vmul.f32 %v2482, 1.442695
    %v2545 = vpow.pop %v2544
    %v2546 = vmul.f32 %v2483, 1.442695
    %v2547 = vpow.pop %v2546
    %v2548 = vadd.f32 %v2485, 1.0
    %v2549 = vadd.f32 %v2487, 1.0
    %v2550 = vadd.f32 %v2489, 1.0
    %v2551 = vadd.f32 %v2491, 1.0
    %v2552 = vadd.f32 %v2493, 1.0
    %v2553 = vadd.f32 %v2495, 1.0
    %v2554 = vadd.f32 %v2497, 1.0
    %v2555 = vadd.f32 %v2499, 1.0
    %v2556 = vadd.f32 %v2501, 1.0
    %v2557 = vadd.f32 %v2503, 1.0
    %v2558 = vadd.f32 %v2505, 1.0
    %v2559 = vadd.f32 %v2507, 1.0
    %v2560 = vadd.f32 %v2509, 1.0
    %v2561 = vadd.f32 %v2511, 1.0
    %v2562 = vadd.f32 %v2513, 1.0
    %v2563 = vadd.f32 %v2515, 1.0
    %v2564 = vadd.f32 %v2517, 1.0
    %v2565 = vadd.f32 %v2519, 1.0
    %v2566 = vadd.f32 %v2521, 1.0
    %v2567 = vadd.f32 %v2523, 1.0
    %v2568 = vadd.f32 %v2525, 1.0
    %v2569 = vadd.f32 %v2527, 1.0
    %v2570 = vadd.f32 %v2529, 1.0
    %v2571 = vadd.f32 %v2531, 1.0
    %v2572 = vadd.f32 %v2533, 1.0
    %v2573 = vadd.f32 %v2535, 1.0
    %v2574 = vadd.f32 %v2537, 1.0
    %v2575 = vadd.f32 %v2539, 1.0
    %v2576 = vadd.f32 %v2541, 1.0
    %v2577 = vadd.f32 %v2543, 1.0
    %v2578 = vadd.f32 %v2545, 1.0
    %v2579 = vadd.f32 %v2547, 1.0
    %v2580 = vmul.f32 %v2386, %v2548
    %v2581 = vmul.f32 %v2387, %v2549
    %v2582 = vmul.f32 %v2388, %v2550
    %v2583 = vmul.f32 %v2389, %v2551
    %v2584 = vmul.f32 %v2390, %v2552
    %v2585 = vmul.f32 %v2391, %v2553
    %v2586 = vmul.f32 %v2392, %v2554
    %v2587 = vmul.f32 %v2393, %v2555
    %v2588 = vmul.f32 %v2394, %v2556
    %v2589 = vmul.f32 %v2395, %v2557
    %v2590 = vmul.f32 %v2396, %v2558
    %v2591 = vmul.f32 %v2397, %v2559
    %v2592 = vmul.f32 %v2398, %v2560
    %v2593 = vmul.f32 %v2399, %v2561
    %v2594 = vmul.f32 %v2400, %v2562
    %v2595 = vmul.f32 %v2401, %v2563
    %v2596 = vmul.f32 %v2402, %v2564
    %v2597 = vmul.f32 %v2403, %v2565
    %v2598 = vmul.f32 %v2404, %v2566
    %v2599 = vmul.f32 %v2405, %v2567
    %v2600 = vmul.f32 %v2406, %v2568
    %v2601 = vmul.f32 %v2407, %v2569
    %v2602 = vmul.f32 %v2408, %v2570
    %v2603 = vmul.f32 %v2409, %v2571
    %v2604 = vmul.f32 %v2410, %v2572
    %v2605 = vmul.f32 %v2411, %v2573
    %v2606 = vmul.f32 %v2412, %v2574
    %v2607 = vmul.f32 %v2413, %v2575
    %v2608 = vmul.f32 %v2414, %v2576
    %v2609 = vmul.f32 %v2415, %v2577
    %v2610 = vmul.f32 %v2416, %v2578
    %v2611 = vmul.f32 %v2417, %v2579
    %v2612 = vstv %s87
    %v2613 = vmul.f32 %v91, %v2612
    %v2614 = vmul.f32 %v92, %v2612
    %v2615 = vmul.f32 %v93, %v2612
    %v2616 = vmul.f32 %v94, %v2612
    %v2617 = vmul.f32 %v95, %v2612
    %v2618 = vmul.f32 %v96, %v2612
    %v2619 = vmul.f32 %v97, %v2612
    %v2620 = vmul.f32 %v98, %v2612
    %v2621 = vmul.f32 %v99, %v2612
    %v2622 = vmul.f32 %v100, %v2612
    %v2623 = vmul.f32 %v101, %v2612
    %v2624 = vmul.f32 %v102, %v2612
    %v2625 = vmul.f32 %v103, %v2612
    %v2626 = vmul.f32 %v104, %v2612
    %v2627 = vmul.f32 %v105, %v2612
    %v2628 = vmul.f32 %v106, %v2612
    %v2629 = vmul.f32 %v107, %v2612
    %v2630 = vmul.f32 %v108, %v2612
    %v2631 = vmul.f32 %v109, %v2612
    %v2632 = vmul.f32 %v110, %v2612
    %v2633 = vmul.f32 %v111, %v2612
    %v2634 = vmul.f32 %v112, %v2612
    %v2635 = vmul.f32 %v113, %v2612
    %v2636 = vmul.f32 %v114, %v2612
    %v2637 = vmul.f32 %v115, %v2612
    %v2638 = vmul.f32 %v116, %v2612
    %v2639 = vmul.f32 %v117, %v2612
    %v2640 = vmul.f32 %v118, %v2612
    %v2641 = vmul.f32 %v119, %v2612
    %v2642 = vmul.f32 %v120, %v2612
    %v2643 = vmul.f32 %v121, %v2612
    %v2644 = vmul.f32 %v122, %v2612
    %v2645 = vstv %s71
    %v2646 = vadd.f32 %v2645, %v2613
    %v2647 = vadd.f32 %v2645, %v2614
    %v2648 = vadd.f32 %v2645, %v2615
    %v2649 = vadd.f32 %v2645, %v2616
    %v2650 = vadd.f32 %v2645, %v2617
    %v2651 = vadd.f32 %v2645, %v2618
    %v2652 = vadd.f32 %v2645, %v2619
    %v2653 = vadd.f32 %v2645, %v2620
    %v2654 = vadd.f32 %v2645, %v2621
    %v2655 = vadd.f32 %v2645, %v2622
    %v2656 = vadd.f32 %v2645, %v2623
    %v2657 = vadd.f32 %v2645, %v2624
    %v2658 = vadd.f32 %v2645, %v2625
    %v2659 = vadd.f32 %v2645, %v2626
    %v2660 = vadd.f32 %v2645, %v2627
    %v2661 = vadd.f32 %v2645, %v2628
    %v2662 = vadd.f32 %v2645, %v2629
    %v2663 = vadd.f32 %v2645, %v2630
    %v2664 = vadd.f32 %v2645, %v2631
    %v2665 = vadd.f32 %v2645, %v2632
    %v2666 = vadd.f32 %v2645, %v2633
    %v2667 = vadd.f32 %v2645, %v2634
    %v2668 = vadd.f32 %v2645, %v2635
    %v2669 = vadd.f32 %v2645, %v2636
    %v2670 = vadd.f32 %v2645, %v2637
    %v2671 = vadd.f32 %v2645, %v2638
    %v2672 = vadd.f32 %v2645, %v2639
    %v2673 = vadd.f32 %v2645, %v2640
    %v2674 = vadd.f32 %v2645, %v2641
    %v2675 = vadd.f32 %v2645, %v2642
    %v2676 = vadd.f32 %v2645, %v2643
    %v2677 = vadd.f32 %v2645, %v2644
    %v2678 = vmul.f32 %v2646, 1.442695
    %v2679 = vpow.pop %v2678
    %v2680 = vmul.f32 %v2647, 1.442695
    %v2681 = vpow.pop %v2680
    %v2682 = vmul.f32 %v2648, 1.442695
    %v2683 = vpow.pop %v2682
    %v2684 = vmul.f32 %v2649, 1.442695
    %v2685 = vpow.pop %v2684
    %v2686 = vmul.f32 %v2650, 1.442695
    %v2687 = vpow.pop %v2686
    %v2688 = vmul.f32 %v2651, 1.442695
    %v2689 = vpow.pop %v2688
    %v2690 = vmul.f32 %v2652, 1.442695
    %v2691 = vpow.pop %v2690
    %v2692 = vmul.f32 %v2653, 1.442695
    %v2693 = vpow.pop %v2692
    %v2694 = vmul.f32 %v2654, 1.442695
    %v2695 = vpow.pop %v2694
    %v2696 = vmul.f32 %v2655, 1.442695
    %v2697 = vpow.pop %v2696
    %v2698 = vmul.f32 %v2656, 1.442695
    %v2699 = vpow.pop %v2698
    %v2700 = vmul.f32 %v2657, 1.442695
    %v2701 = vpow.pop %v2700
    %v2702 = vmul.f32 %v2658, 1.442695
    %v2703 = vpow.pop %v2702
    %v2704 = vmul.f32 %v2659, 1.442695
    %v2705 = vpow.pop %v2704
    %v2706 = vmul.f32 %v2660, 1.442695
    %v2707 = vpow.pop %v2706
    %v2708 = vmul.f32 %v2661, 1.442695
    %v2709 = vpow.pop %v2708
    %v2710 = vmul.f32 %v2662, 1.442695
    %v2711 = vpow.pop %v2710
    %v2712 = vmul.f32 %v2663, 1.442695
    %v2713 = vpow.pop %v2712
    %v2714 = vmul.f32 %v2664, 1.442695
    %v2715 = vpow.pop %v2714
    %v2716 = vmul.f32 %v2665, 1.442695
    %v2717 = vpow.pop %v2716
    %v2718 = vmul.f32 %v2666, 1.442695
    %v2719 = vpow.pop %v2718
    %v2720 = vmul.f32 %v2667, 1.442695
    %v2721 = vpow.pop %v2720
    %v2722 = vmul.f32 %v2668, 1.442695
    %v2723 = vpow.pop %v2722
    %v2724 = vmul.f32 %v2669, 1.442695
    %v2725 = vpow.pop %v2724
    %v2726 = vmul.f32 %v2670, 1.442695
    %v2727 = vpow.pop %v2726
    %v2728 = vmul.f32 %v2671, 1.442695
    %v2729 = vpow.pop %v2728
    %v2730 = vmul.f32 %v2672, 1.442695
    %v2731 = vpow.pop %v2730
    %v2732 = vmul.f32 %v2673, 1.442695
    %v2733 = vpow.pop %v2732
    %v2734 = vmul.f32 %v2674, 1.442695
    %v2735 = vpow.pop %v2734
    %v2736 = vmul.f32 %v2675, 1.442695
    %v2737 = vpow.pop %v2736
    %v2738 = vmul.f32 %v2676, 1.442695
    %v2739 = vpow.pop %v2738
    %v2740 = vmul.f32 %v2677, 1.442695
    %v2741 = vpow.pop %v2740
    %v2742 = vadd.f32 %v2679, 1.0
    %v2743 = vadd.f32 %v2681, 1.0
    %v2744 = vadd.f32 %v2683, 1.0
    %v2745 = vadd.f32 %v2685, 1.0
    %v2746 = vadd.f32 %v2687, 1.0
    %v2747 = vadd.f32 %v2689, 1.0
    %v2748 = vadd.f32 %v2691, 1.0
    %v2749 = vadd.f32 %v2693, 1.0
    %v2750 = vadd.f32 %v2695, 1.0
    %v2751 = vadd.f32 %v2697, 1.0
    %v2752 = vadd.f32 %v2699, 1.0
    %v2753 = vadd.f32 %v2701, 1.0
    %v2754 = vadd.f32 %v2703, 1.0
    %v2755 = vadd.f32 %v2705, 1.0
    %v2756 = vadd.f32 %v2707, 1.0
    %v2757 = vadd.f32 %v2709, 1.0
    %v2758 = vadd.f32 %v2711, 1.0
    %v2759 = vadd.f32 %v2713, 1.0
    %v2760 = vadd.f32 %v2715, 1.0
    %v2761 = vadd.f32 %v2717, 1.0
    %v2762 = vadd.f32 %v2719, 1.0
    %v2763 = vadd.f32 %v2721, 1.0
    %v2764 = vadd.f32 %v2723, 1.0
    %v2765 = vadd.f32 %v2725, 1.0
    %v2766 = vadd.f32 %v2727, 1.0
    %v2767 = vadd.f32 %v2729, 1.0
    %v2768 = vadd.f32 %v2731, 1.0
    %v2769 = vadd.f32 %v2733, 1.0
    %v2770 = vadd.f32 %v2735, 1.0
    %v2771 = vadd.f32 %v2737, 1.0
    %v2772 = vadd.f32 %v2739, 1.0
    %v2773 = vadd.f32 %v2741, 1.0
    %v2774 = vmul.f32 %v2580, %v2742
    %v2775 = vmul.f32 %v2581, %v2743
    %v2776 = vmul.f32 %v2582, %v2744
    %v2777 = vmul.f32 %v2583, %v2745
    %v2778 = vmul.f32 %v2584, %v2746
    %v2779 = vmul.f32 %v2585, %v2747
    %v2780 = vmul.f32 %v2586, %v2748
    %v2781 = vmul.f32 %v2587, %v2749
    %v2782 = vmul.f32 %v2588, %v2750
    %v2783 = vmul.f32 %v2589, %v2751
    %v2784 = vmul.f32 %v2590, %v2752
    %v2785 = vmul.f32 %v2591, %v2753
    %v2786 = vmul.f32 %v2592, %v2754
    %v2787 = vmul.f32 %v2593, %v2755
    %v2788 = vmul.f32 %v2594, %v2756
    %v2789 = vmul.f32 %v2595, %v2757
    %v2790 = vmul.f32 %v2596, %v2758
    %v2791 = vmul.f32 %v2597, %v2759
    %v2792 = vmul.f32 %v2598, %v2760
    %v2793 = vmul.f32 %v2599, %v2761
    %v2794 = vmul.f32 %v2600, %v2762
    %v2795 = vmul.f32 %v2601, %v2763
    %v2796 = vmul.f32 %v2602, %v2764
    %v2797 = vmul.f32 %v2603, %v2765
    %v2798 = vmul.f32 %v2604, %v2766
    %v2799 = vmul.f32 %v2605, %v2767
    %v2800 = vmul.f32 %v2606, %v2768
    %v2801 = vmul.f32 %v2607, %v2769
    %v2802 = vmul.f32 %v2608, %v2770
    %v2803 = vmul.f32 %v2609, %v2771
    %v2804 = vmul.f32 %v2610, %v2772
    %v2805 = vmul.f32 %v2611, %v2773
    %v2806 = vstv %s88
    %v2807 = vmul.f32 %v91, %v2806
    %v2808 = vmul.f32 %v92, %v2806
    %v2809 = vmul.f32 %v93, %v2806
    %v2810 = vmul.f32 %v94, %v2806
    %v2811 = vmul.f32 %v95, %v2806
    %v2812 = vmul.f32 %v96, %v2806
    %v2813 = vmul.f32 %v97, %v2806
    %v2814 = vmul.f32 %v98, %v2806
    %v2815 = vmul.f32 %v99, %v2806
    %v2816 = vmul.f32 %v100, %v2806
    %v2817 = vmul.f32 %v101, %v2806
    %v2818 = vmul.f32 %v102, %v2806
    %v2819 = vmul.f32 %v103, %v2806
    %v2820 = vmul.f32 %v104, %v2806
    %v2821 = vmul.f32 %v105, %v2806
    %v2822 = vmul.f32 %v106, %v2806
    %v2823 = vmul.f32 %v107, %v2806
    %v2824 = vmul.f32 %v108, %v2806
    %v2825 = vmul.f32 %v109, %v2806
    %v2826 = vmul.f32 %v110, %v2806
    %v2827 = vmul.f32 %v111, %v2806
    %v2828 = vmul.f32 %v112, %v2806
    %v2829 = vmul.f32 %v113, %v2806
    %v2830 = vmul.f32 %v114, %v2806
    %v2831 = vmul.f32 %v115, %v2806
    %v2832 = vmul.f32 %v116, %v2806
    %v2833 = vmul.f32 %v117, %v2806
    %v2834 = vmul.f32 %v118, %v2806
    %v2835 = vmul.f32 %v119, %v2806
    %v2836 = vmul.f32 %v120, %v2806
    %v2837 = vmul.f32 %v121, %v2806
    %v2838 = vmul.f32 %v122, %v2806
    %v2839 = vstv %s72
    %v2840 = vadd.f32 %v2839, %v2807
    %v2841 = vadd.f32 %v2839, %v2808
    %v2842 = vadd.f32 %v2839, %v2809
    %v2843 = vadd.f32 %v2839, %v2810
    %v2844 = vadd.f32 %v2839, %v2811
    %v2845 = vadd.f32 %v2839, %v2812
    %v2846 = vadd.f32 %v2839, %v2813
    %v2847 = vadd.f32 %v2839, %v2814
    %v2848 = vadd.f32 %v2839, %v2815
    %v2849 = vadd.f32 %v2839, %v2816
    %v2850 = vadd.f32 %v2839, %v2817
    %v2851 = vadd.f32 %v2839, %v2818
    %v2852 = vadd.f32 %v2839, %v2819
    %v2853 = vadd.f32 %v2839, %v2820
    %v2854 = vadd.f32 %v2839, %v2821
    %v2855 = vadd.f32 %v2839, %v2822
    %v2856 = vadd.f32 %v2839, %v2823
    %v2857 = vadd.f32 %v2839, %v2824
    %v2858 = vadd.f32 %v2839, %v2825
    %v2859 = vadd.f32 %v2839, %v2826
    %v2860 = vadd.f32 %v2839, %v2827
    %v2861 = vadd.f32 %v2839, %v2828
    %v2862 = vadd.f32 %v2839, %v2829
    %v2863 = vadd.f32 %v2839, %v2830
    %v2864 = vadd.f32 %v2839, %v2831
    %v2865 = vadd.f32 %v2839, %v2832
    %v2866 = vadd.f32 %v2839, %v2833
    %v2867 = vadd.f32 %v2839, %v2834
    %v2868 = vadd.f32 %v2839, %v2835
    %v2869 = vadd.f32 %v2839, %v2836
    %v2870 = vadd.f32 %v2839, %v2837
    %v2871 = vadd.f32 %v2839, %v2838
    %v2872 = vmul.f32 %v2840, 1.442695
    %v2873 = vpow.pop %v2872
    %v2874 = vmul.f32 %v2841, 1.442695
    %v2875 = vpow.pop %v2874
    %v2876 = vmul.f32 %v2842, 1.442695
    %v2877 = vpow.pop %v2876
    %v2878 = vmul.f32 %v2843, 1.442695
    %v2879 = vpow.pop %v2878
    %v2880 = vmul.f32 %v2844, 1.442695
    %v2881 = vpow.pop %v2880
    %v2882 = vmul.f32 %v2845, 1.442695
    %v2883 = vpow.pop %v2882
    %v2884 = vmul.f32 %v2846, 1.442695
    %v2885 = vpow.pop %v2884
    %v2886 = vmul.f32 %v2847, 1.442695
    %v2887 = vpow.pop %v2886
    %v2888 = vmul.f32 %v2848, 1.442695
    %v2889 = vpow.pop %v2888
    %v2890 = vmul.f32 %v2849, 1.442695
    %v2891 = vpow.pop %v2890
    %v2892 = vmul.f32 %v2850, 1.442695
    %v2893 = vpow.pop %v2892
    %v2894 = vmul.f32 %v2851, 1.442695
    %v2895 = vpow.pop %v2894
    %v2896 = vmul.f32 %v2852, 1.442695
    %v2897 = vpow.pop %v2896
    %v2898 = vmul.f32 %v2853, 1.442695
    %v2899 = vpow.pop %v2898
    %v2900 = vmul.f32 %v2854, 1.442695
    %v2901 = vpow.pop %v2900
    %v2902 = vmul.f32 %v2855, 1.442695
    %v2903 = vpow.pop %v2902
    %v2904 = vmul.f32 %v2856, 1.442695
    %v2905 = vpow.pop %v2904
    %v2906 = vmul.f32 %v2857, 1.442695
    %v2907 = vpow.pop %v2906
    %v2908 = vmul.f32 %v2858, 1.442695
    %v2909 = vpow.pop %v2908
    %v2910 = vmul.f32 %v2859, 1.442695
    %v2911 = vpow.pop %v2910
    %v2912 = vmul.f32 %v2860, 1.442695
    %v2913 = vpow.pop %v2912
    %v2914 = vmul.f32 %v2861, 1.442695
    %v2915 = vpow.pop %v2914
    %v2916 = vmul.f32 %v2862, 1.442695
    %v2917 = vpow.pop %v2916
    %v2918 = vmul.f32 %v2863, 1.442695
    %v2919 = vpow.pop %v2918
    %v2920 = vmul.f32 %v2864, 1.442695
    %v2921 = vpow.pop %v2920
    %v2922 = vmul.f32 %v2865, 1.442695
    %v2923 = vpow.pop %v2922
    %v2924 = vmul.f32 %v2866, 1.442695
    %v2925 = vpow.pop %v2924
    %v2926 = vmul.f32 %v2867, 1.442695
    %v2927 = vpow.pop %v2926
    %v2928 = vmul.f32 %v2868, 1.442695
    %v2929 = vpow.pop %v2928
    %v2930 = vmul.f32 %v2869, 1.442695
    %v2931 = vpow.pop %v2930
    %v2932 = vmul.f32 %v2870, 1.442695
    %v2933 = vpow.pop %v2932
    %v2934 = vmul.f32 %v2871, 1.442695
    %v2935 = vpow.pop %v2934
    %v2936 = vadd.f32 %v2873, 1.0
    %v2937 = vadd.f32 %v2875, 1.0
    %v2938 = vadd.f32 %v2877, 1.0
    %v2939 = vadd.f32 %v2879, 1.0
    %v2940 = vadd.f32 %v2881, 1.0
    %v2941 = vadd.f32 %v2883, 1.0
    %v2942 = vadd.f32 %v2885, 1.0
    %v2943 = vadd.f32 %v2887, 1.0
    %v2944 = vadd.f32 %v2889, 1.0
    %v2945 = vadd.f32 %v2891, 1.0
    %v2946 = vadd.f32 %v2893, 1.0
    %v2947 = vadd.f32 %v2895, 1.0
    %v2948 = vadd.f32 %v2897, 1.0
    %v2949 = vadd.f32 %v2899, 1.0
    %v2950 = vadd.f32 %v2901, 1.0
    %v2951 = vadd.f32 %v2903, 1.0
    %v2952 = vadd.f32 %v2905, 1.0
    %v2953 = vadd.f32 %v2907, 1.0
    %v2954 = vadd.f32 %v2909, 1.0
    %v2955 = vadd.f32 %v2911, 1.0
    %v2956 = vadd.f32 %v2913, 1.0
    %v2957 = vadd.f32 %v2915, 1.0
    %v2958 = vadd.f32 %v2917, 1.0
    %v2959 = vadd.f32 %v2919, 1.0
    %v2960 = vadd.f32 %v2921, 1.0
    %v2961 = vadd.f32 %v2923, 1.0
    %v2962 = vadd.f32 %v2925, 1.0
    %v2963 = vadd.f32 %v2927, 1.0
    %v2964 = vadd.f32 %v2929, 1.0
    %v2965 = vadd.f32 %v2931, 1.0
    %v2966 = vadd.f32 %v2933, 1.0
    %v2967 = vadd.f32 %v2935, 1.0
    %v2968 = vmul.f32 %v2774, %v2936
    %v2969 = vmul.f32 %v2775, %v2937
    %v2970 = vmul.f32 %v2776, %v2938
    %v2971 = vmul.f32 %v2777, %v2939
    %v2972 = vmul.f32 %v2778, %v2940
    %v2973 = vmul.f32 %v2779, %v2941
    %v2974 = vmul.f32 %v2780, %v2942
    %v2975 = vmul.f32 %v2781, %v2943
    %v2976 = vmul.f32 %v2782, %v2944
    %v2977 = vmul.f32 %v2783, %v2945
    %v2978 = vmul.f32 %v2784, %v2946
    %v2979 = vmul.f32 %v2785, %v2947
    %v2980 = vmul.f32 %v2786, %v2948
    %v2981 = vmul.f32 %v2787, %v2949
    %v2982 = vmul.f32 %v2788, %v2950
    %v2983 = vmul.f32 %v2789, %v2951
    %v2984 = vmul.f32 %v2790, %v2952
    %v2985 = vmul.f32 %v2791, %v2953
    %v2986 = vmul.f32 %v2792, %v2954
    %v2987 = vmul.f32 %v2793, %v2955
    %v2988 = vmul.f32 %v2794, %v2956
    %v2989 = vmul.f32 %v2795, %v2957
    %v2990 = vmul.f32 %v2796, %v2958
    %v2991 = vmul.f32 %v2797, %v2959
    %v2992 = vmul.f32 %v2798, %v2960
    %v2993 = vmul.f32 %v2799, %v2961
    %v2994 = vmul.f32 %v2800, %v2962
    %v2995 = vmul.f32 %v2801, %v2963
    %v2996 = vmul.f32 %v2802, %v2964
    %v2997 = vmul.f32 %v2803, %v2965
    %v2998 = vmul.f32 %v2804, %v2966
    %v2999 = vmul.f32 %v2805, %v2967
    %v3000 = vstv %s89
    %v3001 = vmul.f32 %v91, %v3000
    %v3002 = vmul.f32 %v92, %v3000
    %v3003 = vmul.f32 %v93, %v3000
    %v3004 = vmul.f32 %v94, %v3000
    %v3005 = vmul.f32 %v95, %v3000
    %v3006 = vmul.f32 %v96, %v3000
    %v3007 = vmul.f32 %v97, %v3000
    %v3008 = vmul.f32 %v98, %v3000
    %v3009 = vmul.f32 %v99, %v3000
    %v3010 = vmul.f32 %v100, %v3000
    %v3011 = vmul.f32 %v101, %v3000
    %v3012 = vmul.f32 %v102, %v3000
    %v3013 = vmul.f32 %v103, %v3000
    %v3014 = vmul.f32 %v104, %v3000
    %v3015 = vmul.f32 %v105, %v3000
    %v3016 = vmul.f32 %v106, %v3000
    %v3017 = vmul.f32 %v107, %v3000
    %v3018 = vmul.f32 %v108, %v3000
    %v3019 = vmul.f32 %v109, %v3000
    %v3020 = vmul.f32 %v110, %v3000
    %v3021 = vmul.f32 %v111, %v3000
    %v3022 = vmul.f32 %v112, %v3000
    %v3023 = vmul.f32 %v113, %v3000
    %v3024 = vmul.f32 %v114, %v3000
    %v3025 = vmul.f32 %v115, %v3000
    %v3026 = vmul.f32 %v116, %v3000
    %v3027 = vmul.f32 %v117, %v3000
    %v3028 = vmul.f32 %v118, %v3000
    %v3029 = vmul.f32 %v119, %v3000
    %v3030 = vmul.f32 %v120, %v3000
    %v3031 = vmul.f32 %v121, %v3000
    %v3032 = vmul.f32 %v122, %v3000
    %v3033 = vstv %s73
    %v3034 = vadd.f32 %v3033, %v3001
    %v3035 = vadd.f32 %v3033, %v3002
    %v3036 = vadd.f32 %v3033, %v3003
    %v3037 = vadd.f32 %v3033, %v3004
    %v3038 = vadd.f32 %v3033, %v3005
    %v3039 = vadd.f32 %v3033, %v3006
    %v3040 = vadd.f32 %v3033, %v3007
    %v3041 = vadd.f32 %v3033, %v3008
    %v3042 = vadd.f32 %v3033, %v3009
    %v3043 = vadd.f32 %v3033, %v3010
    %v3044 = vadd.f32 %v3033, %v3011
    %v3045 = vadd.f32 %v3033, %v3012
    %v3046 = vadd.f32 %v3033, %v3013
    %v3047 = vadd.f32 %v3033, %v3014
    %v3048 = vadd.f32 %v3033, %v3015
    %v3049 = vadd.f32 %v3033, %v3016
    %v3050 = vadd.f32 %v3033, %v3017
    %v3051 = vadd.f32 %v3033, %v3018
    %v3052 = vadd.f32 %v3033, %v3019
    %v3053 = vadd.f32 %v3033, %v3020
    %v3054 = vadd.f32 %v3033, %v3021
    %v3055 = vadd.f32 %v3033, %v3022
    %v3056 = vadd.f32 %v3033, %v3023
    %v3057 = vadd.f32 %v3033, %v3024
    %v3058 = vadd.f32 %v3033, %v3025
    %v3059 = vadd.f32 %v3033, %v3026
    %v3060 = vadd.f32 %v3033, %v3027
    %v3061 = vadd.f32 %v3033, %v3028
    %v3062 = vadd.f32 %v3033, %v3029
    %v3063 = vadd.f32 %v3033, %v3030
    %v3064 = vadd.f32 %v3033, %v3031
    %v3065 = vadd.f32 %v3033, %v3032
    %v3066 = vmul.f32 %v3034, 1.442695
    %v3067 = vpow.pop %v3066
    %v3068 = vmul.f32 %v3035, 1.442695
    %v3069 = vpow.pop %v3068
    %v3070 = vmul.f32 %v3036, 1.442695
    %v3071 = vpow.pop %v3070
    %v3072 = vmul.f32 %v3037, 1.442695
    %v3073 = vpow.pop %v3072
    %v3074 = vmul.f32 %v3038, 1.442695
    %v3075 = vpow.pop %v3074
    %v3076 = vmul.f32 %v3039, 1.442695
    %v3077 = vpow.pop %v3076
    %v3078 = vmul.f32 %v3040, 1.442695
    %v3079 = vpow.pop %v3078
    %v3080 = vmul.f32 %v3041, 1.442695
    %v3081 = vpow.pop %v3080
    %v3082 = vmul.f32 %v3042, 1.442695
    %v3083 = vpow.pop %v3082
    %v3084 = vmul.f32 %v3043, 1.442695
    %v3085 = vpow.pop %v3084
    %v3086 = vmul.f32 %v3044, 1.442695
    %v3087 = vpow.pop %v3086
    %v3088 = vmul.f32 %v3045, 1.442695
    %v3089 = vpow.pop %v3088
    %v3090 = vmul.f32 %v3046, 1.442695
    %v3091 = vpow.pop %v3090
    %v3092 = vmul.f32 %v3047, 1.442695
    %v3093 = vpow.pop %v3092
    %v3094 = vmul.f32 %v3048, 1.442695
    %v3095 = vpow.pop %v3094
    %v3096 = vmul.f32 %v3049, 1.442695
    %v3097 = vpow.pop %v3096
    %v3098 = vmul.f32 %v3050, 1.442695
    %v3099 = vpow.pop %v3098
    %v3100 = vmul.f32 %v3051, 1.442695
    %v3101 = vpow.pop %v3100
    %v3102 = vmul.f32 %v3052, 1.442695
    %v3103 = vpow.pop %v3102
    %v3104 = vmul.f32 %v3053, 1.442695
    %v3105 = vpow.pop %v3104
    %v3106 = vmul.f32 %v3054, 1.442695
    %v3107 = vpow.pop %v3106
    %v3108 = vmul.f32 %v3055, 1.442695
    %v3109 = vpow.pop %v3108
    %v3110 = vmul.f32 %v3056, 1.442695
    %v3111 = vpow.pop %v3110
    %v3112 = vmul.f32 %v3057, 1.442695
    %v3113 = vpow.pop %v3112
    %v3114 = vmul.f32 %v3058, 1.442695
    %v3115 = vpow.pop %v3114
    %v3116 = vmul.f32 %v3059, 1.442695
    %v3117 = vpow.pop %v3116
    %v3118 = vmul.f32 %v3060, 1.442695
    %v3119 = vpow.pop %v3118
    %v3120 = vmul.f32 %v3061, 1.442695
    %v3121 = vpow.pop %v3120
    %v3122 = vmul.f32 %v3062, 1.442695
    %v3123 = vpow.pop %v3122
    %v3124 = vmul.f32 %v3063, 1.442695
    %v3125 = vpow.pop %v3124
    %v3126 = vmul.f32 %v3064, 1.442695
    %v3127 = vpow.pop %v3126
    %v3128 = vmul.f32 %v3065, 1.442695
    %v3129 = vpow.pop %v3128
    %v3130 = vadd.f32 %v3067, 1.0
    %v3131 = vadd.f32 %v3069, 1.0
    %v3132 = vadd.f32 %v3071, 1.0
    %v3133 = vadd.f32 %v3073, 1.0
    %v3134 = vadd.f32 %v3075, 1.0
    %v3135 = vadd.f32 %v3077, 1.0
    %v3136 = vadd.f32 %v3079, 1.0
    %v3137 = vadd.f32 %v3081, 1.0
    %v3138 = vadd.f32 %v3083, 1.0
    %v3139 = vadd.f32 %v3085, 1.0
    %v3140 = vadd.f32 %v3087, 1.0
    %v3141 = vadd.f32 %v3089, 1.0
    %v3142 = vadd.f32 %v3091, 1.0
    %v3143 = vadd.f32 %v3093, 1.0
    %v3144 = vadd.f32 %v3095, 1.0
    %v3145 = vadd.f32 %v3097, 1.0
    %v3146 = vadd.f32 %v3099, 1.0
    %v3147 = vadd.f32 %v3101, 1.0
    %v3148 = vadd.f32 %v3103, 1.0
    %v3149 = vadd.f32 %v3105, 1.0
    %v3150 = vadd.f32 %v3107, 1.0
    %v3151 = vadd.f32 %v3109, 1.0
    %v3152 = vadd.f32 %v3111, 1.0
    %v3153 = vadd.f32 %v3113, 1.0
    %v3154 = vadd.f32 %v3115, 1.0
    %v3155 = vadd.f32 %v3117, 1.0
    %v3156 = vadd.f32 %v3119, 1.0
    %v3157 = vadd.f32 %v3121, 1.0
    %v3158 = vadd.f32 %v3123, 1.0
    %v3159 = vadd.f32 %v3125, 1.0
    %v3160 = vadd.f32 %v3127, 1.0
    %v3161 = vadd.f32 %v3129, 1.0
    %v3162 = vmul.f32 %v2968, %v3130
    %v3163 = vmul.f32 %v2969, %v3131
    %v3164 = vmul.f32 %v2970, %v3132
    %v3165 = vmul.f32 %v2971, %v3133
    %v3166 = vmul.f32 %v2972, %v3134
    %v3167 = vmul.f32 %v2973, %v3135
    %v3168 = vmul.f32 %v2974, %v3136
    %v3169 = vmul.f32 %v2975, %v3137
    %v3170 = vmul.f32 %v2976, %v3138
    %v3171 = vmul.f32 %v2977, %v3139
    %v3172 = vmul.f32 %v2978, %v3140
    %v3173 = vmul.f32 %v2979, %v3141
    %v3174 = vmul.f32 %v2980, %v3142
    %v3175 = vmul.f32 %v2981, %v3143
    %v3176 = vmul.f32 %v2982, %v3144
    %v3177 = vmul.f32 %v2983, %v3145
    %v3178 = vmul.f32 %v2984, %v3146
    %v3179 = vmul.f32 %v2985, %v3147
    %v3180 = vmul.f32 %v2986, %v3148
    %v3181 = vmul.f32 %v2987, %v3149
    %v3182 = vmul.f32 %v2988, %v3150
    %v3183 = vmul.f32 %v2989, %v3151
    %v3184 = vmul.f32 %v2990, %v3152
    %v3185 = vmul.f32 %v2991, %v3153
    %v3186 = vmul.f32 %v2992, %v3154
    %v3187 = vmul.f32 %v2993, %v3155
    %v3188 = vmul.f32 %v2994, %v3156
    %v3189 = vmul.f32 %v2995, %v3157
    %v3190 = vmul.f32 %v2996, %v3158
    %v3191 = vmul.f32 %v2997, %v3159
    %v3192 = vmul.f32 %v2998, %v3160
    %v3193 = vmul.f32 %v2999, %v3161
    %v3194 = vstv %s90
    %v3195 = vmul.f32 %v91, %v3194
    %v3196 = vmul.f32 %v92, %v3194
    %v3197 = vmul.f32 %v93, %v3194
    %v3198 = vmul.f32 %v94, %v3194
    %v3199 = vmul.f32 %v95, %v3194
    %v3200 = vmul.f32 %v96, %v3194
    %v3201 = vmul.f32 %v97, %v3194
    %v3202 = vmul.f32 %v98, %v3194
    %v3203 = vmul.f32 %v99, %v3194
    %v3204 = vmul.f32 %v100, %v3194
    %v3205 = vmul.f32 %v101, %v3194
    %v3206 = vmul.f32 %v102, %v3194
    %v3207 = vmul.f32 %v103, %v3194
    %v3208 = vmul.f32 %v104, %v3194
    %v3209 = vmul.f32 %v105, %v3194
    %v3210 = vmul.f32 %v106, %v3194
    %v3211 = vmul.f32 %v107, %v3194
    %v3212 = vmul.f32 %v108, %v3194
    %v3213 = vmul.f32 %v109, %v3194
    %v3214 = vmul.f32 %v110, %v3194
    %v3215 = vmul.f32 %v111, %v3194
    %v3216 = vmul.f32 %v112, %v3194
    %v3217 = vmul.f32 %v113, %v3194
    %v3218 = vmul.f32 %v114, %v3194
    %v3219 = vmul.f32 %v115, %v3194
    %v3220 = vmul.f32 %v116, %v3194
    %v3221 = vmul.f32 %v117, %v3194
    %v3222 = vmul.f32 %v118, %v3194
    %v3223 = vmul.f32 %v119, %v3194
    %v3224 = vmul.f32 %v120, %v3194
    %v3225 = vmul.f32 %v121, %v3194
    %v3226 = vmul.f32 %v122, %v3194
    %v3227 = vstv %s74
    %v3228 = vadd.f32 %v3227, %v3195
    %v3229 = vadd.f32 %v3227, %v3196
    %v3230 = vadd.f32 %v3227, %v3197
    %v3231 = vadd.f32 %v3227, %v3198
    %v3232 = vadd.f32 %v3227, %v3199
    %v3233 = vadd.f32 %v3227, %v3200
    %v3234 = vadd.f32 %v3227, %v3201
    %v3235 = vadd.f32 %v3227, %v3202
    %v3236 = vadd.f32 %v3227, %v3203
    %v3237 = vadd.f32 %v3227, %v3204
    %v3238 = vadd.f32 %v3227, %v3205
    %v3239 = vadd.f32 %v3227, %v3206
    %v3240 = vadd.f32 %v3227, %v3207
    %v3241 = vadd.f32 %v3227, %v3208
    %v3242 = vadd.f32 %v3227, %v3209
    %v3243 = vadd.f32 %v3227, %v3210
    %v3244 = vadd.f32 %v3227, %v3211
    %v3245 = vadd.f32 %v3227, %v3212
    %v3246 = vadd.f32 %v3227, %v3213
    %v3247 = vadd.f32 %v3227, %v3214
    %v3248 = vadd.f32 %v3227, %v3215
    %v3249 = vadd.f32 %v3227, %v3216
    %v3250 = vadd.f32 %v3227, %v3217
    %v3251 = vadd.f32 %v3227, %v3218
    %v3252 = vadd.f32 %v3227, %v3219
    %v3253 = vadd.f32 %v3227, %v3220
    %v3254 = vadd.f32 %v3227, %v3221
    %v3255 = vadd.f32 %v3227, %v3222
    %v3256 = vadd.f32 %v3227, %v3223
    %v3257 = vadd.f32 %v3227, %v3224
    %v3258 = vadd.f32 %v3227, %v3225
    %v3259 = vadd.f32 %v3227, %v3226
    %v3260 = vmul.f32 %v3228, 1.442695
    %v3261 = vpow.pop %v3260
    %v3262 = vmul.f32 %v3229, 1.442695
    %v3263 = vpow.pop %v3262
    %v3264 = vmul.f32 %v3230, 1.442695
    %v3265 = vpow.pop %v3264
    %v3266 = vmul.f32 %v3231, 1.442695
    %v3267 = vpow.pop %v3266
    %v3268 = vmul.f32 %v3232, 1.442695
    %v3269 = vpow.pop %v3268
    %v3270 = vmul.f32 %v3233, 1.442695
    %v3271 = vpow.pop %v3270
    %v3272 = vmul.f32 %v3234, 1.442695
    %v3273 = vpow.pop %v3272
    %v3274 = vmul.f32 %v3235, 1.442695
    %v3275 = vpow.pop %v3274
    %v3276 = vmul.f32 %v3236, 1.442695
    %v3277 = vpow.pop %v3276
    %v3278 = vmul.f32 %v3237, 1.442695
    %v3279 = vpow.pop %v3278
    %v3280 = vmul.f32 %v3238, 1.442695
    %v3281 = vpow.pop %v3280
    %v3282 = vmul.f32 %v3239, 1.442695
    %v3283 = vpow.pop %v3282
    %v3284 = vmul.f32 %v3240, 1.442695
    %v3285 = vpow.pop %v3284
    %v3286 = vmul.f32 %v3241, 1.442695
    %v3287 = vpow.pop %v3286
    %v3288 = vmul.f32 %v3242, 1.442695
    %v3289 = vpow.pop %v3288
    %v3290 = vmul.f32 %v3243, 1.442695
    %v3291 = vpow.pop %v3290
    %v3292 = vmul.f32 %v3244, 1.442695
    %v3293 = vpow.pop %v3292
    %v3294 = vmul.f32 %v3245, 1.442695
    %v3295 = vpow.pop %v3294
    %v3296 = vmul.f32 %v3246, 1.442695
    %v3297 = vpow.pop %v3296
    %v3298 = vmul.f32 %v3247, 1.442695
    %v3299 = vpow.pop %v3298
    %v3300 = vmul.f32 %v3248, 1.442695
    %v3301 = vpow.pop %v3300
    %v3302 = vmul.f32 %v3249, 1.442695
    %v3303 = vpow.pop %v3302
    %v3304 = vmul.f32 %v3250, 1.442695
    %v3305 = vpow.pop %v3304
    %v3306 = vmul.f32 %v3251, 1.442695
    %v3307 = vpow.pop %v3306
    %v3308 = vmul.f32 %v3252, 1.442695
    %v3309 = vpow.pop %v3308
    %v3310 = vmul.f32 %v3253, 1.442695
    %v3311 = vpow.pop %v3310
    %v3312 = vmul.f32 %v3254, 1.442695
    %v3313 = vpow.pop %v3312
    %v3314 = vmul.f32 %v3255, 1.442695
    %v3315 = vpow.pop %v3314
    %v3316 = vmul.f32 %v3256, 1.442695
    %v3317 = vpow.pop %v3316
    %v3318 = vmul.f32 %v3257, 1.442695
    %v3319 = vpow.pop %v3318
    %v3320 = vmul.f32 %v3258, 1.442695
    %v3321 = vpow.pop %v3320
    %v3322 = vmul.f32 %v3259, 1.442695
    %v3323 = vpow.pop %v3322
    %v3324 = vadd.f32 %v3261, 1.0
    %v3325 = vadd.f32 %v3263, 1.0
    %v3326 = vadd.f32 %v3265, 1.0
    %v3327 = vadd.f32 %v3267, 1.0
    %v3328 = vadd.f32 %v3269, 1.0
    %v3329 = vadd.f32 %v3271, 1.0
    %v3330 = vadd.f32 %v3273, 1.0
    %v3331 = vadd.f32 %v3275, 1.0
    %v3332 = vadd.f32 %v3277, 1.0
    %v3333 = vadd.f32 %v3279, 1.0
    %v3334 = vadd.f32 %v3281, 1.0
    %v3335 = vadd.f32 %v3283, 1.0
    %v3336 = vadd.f32 %v3285, 1.0
    %v3337 = vadd.f32 %v3287, 1.0
    %v3338 = vadd.f32 %v3289, 1.0
    %v3339 = vadd.f32 %v3291, 1.0
    %v3340 = vadd.f32 %v3293, 1.0
    %v3341 = vadd.f32 %v3295, 1.0
    %v3342 = vadd.f32 %v3297, 1.0
    %v3343 = vadd.f32 %v3299, 1.0
    %v3344 = vadd.f32 %v3301, 1.0
    %v3345 = vadd.f32 %v3303, 1.0
    %v3346 = vadd.f32 %v3305, 1.0
    %v3347 = vadd.f32 %v3307, 1.0
    %v3348 = vadd.f32 %v3309, 1.0
    %v3349 = vadd.f32 %v3311, 1.0
    %v3350 = vadd.f32 %v3313, 1.0
    %v3351 = vadd.f32 %v3315, 1.0
    %v3352 = vadd.f32 %v3317, 1.0
    %v3353 = vadd.f32 %v3319, 1.0
    %v3354 = vadd.f32 %v3321, 1.0
    %v3355 = vadd.f32 %v3323, 1.0
    %v3356 = vmul.f32 %v3162, %v3324
    %v3357 = vmul.f32 %v3163, %v3325
    %v3358 = vmul.f32 %v3164, %v3326
    %v3359 = vmul.f32 %v3165, %v3327
    %v3360 = vmul.f32 %v3166, %v3328
    %v3361 = vmul.f32 %v3167, %v3329
    %v3362 = vmul.f32 %v3168, %v3330
    %v3363 = vmul.f32 %v3169, %v3331
    %v3364 = vmul.f32 %v3170, %v3332
    %v3365 = vmul.f32 %v3171, %v3333
    %v3366 = vmul.f32 %v3172, %v3334
    %v3367 = vmul.f32 %v3173, %v3335
    %v3368 = vmul.f32 %v3174, %v3336
    %v3369 = vmul.f32 %v3175, %v3337
    %v3370 = vmul.f32 %v3176, %v3338
    %v3371 = vmul.f32 %v3177, %v3339
    %v3372 = vmul.f32 %v3178, %v3340
    %v3373 = vmul.f32 %v3179, %v3341
    %v3374 = vmul.f32 %v3180, %v3342
    %v3375 = vmul.f32 %v3181, %v3343
    %v3376 = vmul.f32 %v3182, %v3344
    %v3377 = vmul.f32 %v3183, %v3345
    %v3378 = vmul.f32 %v3184, %v3346
    %v3379 = vmul.f32 %v3185, %v3347
    %v3380 = vmul.f32 %v3186, %v3348
    %v3381 = vmul.f32 %v3187, %v3349
    %v3382 = vmul.f32 %v3188, %v3350
    %v3383 = vmul.f32 %v3189, %v3351
    %v3384 = vmul.f32 %v3190, %v3352
    %v3385 = vmul.f32 %v3191, %v3353
    %v3386 = vmul.f32 %v3192, %v3354
    %v3387 = vmul.f32 %v3193, %v3355
    %3388 = vst [vmem:[#allocation10] sm:$0xff] %v3356
    %3389 = vst [vmem:[#allocation10 + $0x8] sm:$0xff] %v3357
    %3390 = vst [vmem:[#allocation10 + $0x10] sm:$0xff] %v3358
    %3391 = vst [vmem:[#allocation10 + $0x18] sm:$0xff] %v3359
    %3392 = vst [vmem:[#allocation10 + $0x20] sm:$0xff] %v3360
    %3393 = vst [vmem:[#allocation10 + $0x28] sm:$0xff] %v3361
    %3394 = vst [vmem:[#allocation10 + $0x30] sm:$0xff] %v3362
    %3395 = vst [vmem:[#allocation10 + $0x38] sm:$0xff] %v3363
    %3396 = vst [vmem:[#allocation10 + $0x40] sm:$0xff] %v3364
    %3397 = vst [vmem:[#allocation10 + $0x48] sm:$0xff] %v3365
    %3398 = vst [vmem:[#allocation10 + $0x50] sm:$0xff] %v3366
    %3399 = vst [vmem:[#allocation10 + $0x58] sm:$0xff] %v3367
    %3400 = vst [vmem:[#allocation10 + $0x60] sm:$0xff] %v3368
    %3401 = vst [vmem:[#allocation10 + $0x68] sm:$0xff] %v3369
    %3402 = vst [vmem:[#allocation10 + $0x70] sm:$0xff] %v3370
    %3403 = vst [vmem:[#allocation10 + $0x78] sm:$0xff] %v3371
    %3404 = vst [vmem:[#allocation10 + $0x80] sm:$0xff] %v3372
    %3405 = vst [vmem:[#allocation10 + $0x88] sm:$0xff] %v3373
    %3406 = vst [vmem:[#allocation10 + $0x90] sm:$0xff] %v3374
    %3407 = vst [vmem:[#allocation10 + $0x98] sm:$0xff] %v3375
    %3408 = vst [vmem:[#allocation10 + $0xa0] sm:$0xff] %v3376
    %3409 = vst [vmem:[#allocation10 + $0xa8] sm:$0xff] %v3377
    %3410 = vst [vmem:[#allocation10 + $0xb0] sm:$0xff] %v3378
    %3411 = vst [vmem:[#allocation10 + $0xb8] sm:$0xff] %v3379
    %3412 = vst [vmem:[#allocation10 + $0xc0] sm:$0xff] %v3380
    %3413 = vst [vmem:[#allocation10 + $0xc8] sm:$0xff] %v3381
    %3414 = vst [vmem:[#allocation10 + $0xd0] sm:$0xff] %v3382
    %3415 = vst [vmem:[#allocation10 + $0xd8] sm:$0xff] %v3383
    %3416 = vst [vmem:[#allocation10 + $0xe0] sm:$0xff] %v3384
    %3417 = vst [vmem:[#allocation10 + $0xe8] sm:$0xff] %v3385
    %3418 = vst [vmem:[#allocation10 + $0xf0] sm:$0xff] %v3386
    %3419 = vst [vmem:[#allocation10 + $0xf8] sm:$0xff] %v3387
    // Predicated region
    $region30: #{tpu_custom_call.1} parent=1 // pred_check
      _
    $region31: #{tpu_custom_call.1} parent=1 // pred_check_branch
      %3421 = sbr.rel (0) target = $region33
    $region32: #{tpu_custom_call.1} parent=1 // pred_region
      %s3423 = ssub.s32 4096, 4096
      %3424 = vsyncadd [#allocation5], %s3423
      %s3425 = sshll.u32 [#allocation10], 4
      %s3426 = int_to_ptr.vmem [resolvable:$true] %s3425
      %3431 = dma.vmem_to_hbm [thread:$0]  %s3426, 4096, %s4, [#allocation5], 1024, 1024, 64
    $region33: #{tpu_custom_call.1} parent=1 // pred_fallthru
      _
    // Predicated region
    $region34: #{tpu_custom_call.1} parent=1 // pred_check
      _
    $region35: #{tpu_custom_call.1} parent=1 // pred_check_branch
      %3433 = sbr.rel (0) target = $region37
    $region36: #{tpu_custom_call.1} parent=1 // pred_region
      %3434 = dma.done [#allocation5], 4096
    $region37: #{tpu_custom_call.1} parent=1 // pred_fallthru
      _
    %3435 = vsyncpa [#allocation4], 1
    %3436 = vsyncpa [#allocation5], 1
    %3437 = vsyncpa [#allocation6], 1
    %3438 = vsyncpa [#allocation8], 1

</llo_original>
